<compile_context>
chip_gen: v6e
topology: v6e:2x2x1
jax: 0.10.0
libtpu: 0.0.40
codegen_flags: <defaults>
</compile_context>

<pallas_src>
import jax
import jax.numpy as jnp
from jax.experimental import pallas as pl
from jax.experimental.pallas import tpu as pltpu

NUM_BLOCKS = 9  # the module instantiates 9 ResidualBlocks (docstring says five, code says nine)


def _round_up(n, m):
    return ((n + m - 1) // m) * m


def model_with_residuals_kernel(x_ref, w0_ref, b0_ref, wb_ref, bb_ref,
                                wf_ref, bf_ref, o_ref):
    # Static half-split of the batch tile -> two independent dependency chains
    # the scheduler can interleave (sub-tile B's matmul issues while sub-tile A
    # runs its VPU epilogue, and vice versa). TB is a multiple of 16, so both
    # halves are 8-row (sublane) aligned: no masked loads/stores, no re-layout.
    half = x_ref.shape[0] // 2

    w0 = w0_ref[...]          # (IN_PAD, H) bf16, VMEM-resident
    b0 = b0_ref[...]          # (1, H) f32

    def initial(x_blk):
        # dropout p=0.0001 is identity in eval
        h = jnp.dot(x_blk.astype(jnp.bfloat16), w0,
                    preferred_element_type=jnp.float32)
        return jnp.maximum(h + b0, 0.0)          # f32 (half, H)

    ha = initial(x_ref[:half, :])
    hb = initial(x_ref[half:, :])

    # Nine residual blocks: relu(linear(h)) + h (dropout p=0.1 is identity in eval).
    # Fully unrolled; the two half-tile chains are independent per iteration.
    for i in range(NUM_BLOCKS):
        wi = wb_ref[i]                            # (H, H) bf16
        bi = bb_ref[i][None, :]                   # (1, H) f32
        lin_a = jnp.dot(ha.astype(jnp.bfloat16), wi,
                        preferred_element_type=jnp.float32)
        lin_b = jnp.dot(hb.astype(jnp.bfloat16), wi,
                        preferred_element_type=jnp.float32)
        ha = jnp.maximum(lin_a + bi, 0.0) + ha    # f32 elementwise path (v5e-friendly)
        hb = jnp.maximum(lin_b + bi, 0.0) + hb

    # Final layer into the lane-dense (128-wide, zero-padded) output.
    wf = wf_ref[...]
    bf = bf_ref[...]
    oa = jnp.dot(ha.astype(jnp.bfloat16), wf,
                 preferred_element_type=jnp.float32) + bf
    ob = jnp.dot(hb.astype(jnp.bfloat16), wf,
                 preferred_element_type=jnp.float32) + bf
    o_ref[:half, :] = oa.astype(o_ref.dtype)
    o_ref[half:, :] = ob.astype(o_ref.dtype)


def model_with_residuals(x, params, *, max_batch_tile=256):
    """x: [B, input_dim] float32. params: dict of pre-transposed f32 weights/biases."""
    B, IN = x.shape
    H = params["w0"].shape[1]
    OUT = params["wf"].shape[1]

    # Lane-dense padding: input features and output columns -> multiples of 128.
    IN_PAD = _round_up(max(IN, 128), 128)
    OUT_PAD = _round_up(max(OUT, 128), 128)

    # Right-sized batch tiling:
    #  * at least 2 tiles when the batch is big enough (balanced megacore work on v7x),
    #  * each tile <= max_batch_tile (bounds live vregs in the unrolled block loop),
    #  * TB a multiple of 16 so the in-kernel half-split stays 8-row aligned.
    ntiles = max(2 if B >= 64 else 1, pl.cdiv(B, max_batch_tile))
    TB = _round_up(pl.cdiv(B, ntiles), 16)
    B_pad = TB * ntiles

    # Inputs: x padded with zeros in both batch rows and feature columns (exact
    # under matmul; pad rows are sliced away at the end). x stays f32 in HBM and
    # is cast to bf16 at the MXU input inside the kernel.
    x_p = jnp.zeros((B_pad, IN_PAD), jnp.float32).at[:B, :IN].set(
        x.astype(jnp.float32))

    # Weights: bf16 MXU operands, pre-transposed [in, out]; w0 rows zero-padded
    # to IN_PAD, final layer zero-padded to OUT_PAD columns. Biases stay f32.
    w0 = jnp.zeros((IN_PAD, H), jnp.bfloat16).at[:IN, :].set(
        params["w0"].astype(jnp.bfloat16))
    wb = params["wb"].astype(jnp.bfloat16)                       # [9, H, H]
    b0 = params["b0"].reshape(1, H).astype(jnp.float32)          # [1, H]
    bb = params["bb"].reshape(NUM_BLOCKS, H).astype(jnp.float32) # [9, H]
    wf = jnp.zeros((H, OUT_PAD), jnp.bfloat16).at[:, :OUT].set(
        params["wf"].astype(jnp.bfloat16))
    bf = jnp.zeros((1, OUT_PAD), jnp.float32).at[:, :OUT].set(
        params["bf"].reshape(1, OUT).astype(jnp.float32))

    flops = 2 * B_pad * (IN_PAD * H + NUM_BLOCKS * H * H + H * OUT_PAD)
    bytes_accessed = (x_p.size * 4 + w0.size * 2 + wb.size * 2 + wf.size * 2
                      + b0.size * 4 + bb.size * 4 + bf.size * 4
                      + B_pad * OUT_PAD * 4)

    out = pl.pallas_call(
        model_with_residuals_kernel,
        out_shape=jax.ShapeDtypeStruct((B_pad, OUT_PAD), jnp.float32),
        grid=(ntiles,),
        in_specs=[
            # batch-tiled activation input (pipelined per grid step)
            pl.BlockSpec((TB, IN_PAD), lambda i: (i, 0)),
            # weights / biases: constant index_map -> stay VMEM-resident
            pl.BlockSpec((IN_PAD, H), lambda i: (0, 0)),
            pl.BlockSpec((1, H), lambda i: (0, 0)),
            pl.BlockSpec((NUM_BLOCKS, H, H), lambda i: (0, 0, 0)),
            pl.BlockSpec((NUM_BLOCKS, H), lambda i: (0, 0)),
            pl.BlockSpec((H, OUT_PAD), lambda i: (0, 0)),
            pl.BlockSpec((1, OUT_PAD), lambda i: (0, 0)),
        ],
        out_specs=pl.BlockSpec((TB, OUT_PAD), lambda i: (i, 0)),
        compiler_params=pltpu.CompilerParams(
            dimension_semantics=("parallel",),   # batch tiles shard across TCs on v7x
        ),
        cost_estimate=pl.CostEstimate(
            flops=flops, transcendentals=0, bytes_accessed=bytes_accessed),
    )(x_p, w0, b0, wb, bb, wf, bf)

    return out[:B, :OUT]


def init_params(key, input_dim, hidden, output_dim):
    """Deterministic synthetic parameters (PyTorch-Linear-like uniform init),
    already transposed to [in, out] layout for the kernel. Kept in f32; the
    wrapper handles bf16 casts and zero-padding."""
    ks = jax.random.split(key, 4 + 2 * NUM_BLOCKS)

    def linear(kw, kb, fan_in, fan_out):
        bound = 1.0 / jnp.sqrt(fan_in)
        w = jax.random.uniform(kw, (fan_in, fan_out), jnp.float32, -bound, bound)
        b = jax.random.uniform(kb, (fan_out,), jnp.float32, -bound, bound)
        return w, b

    w0, b0 = linear(ks[0], ks[1], input_dim, hidden)
    wb_list, bb_list = [], []
    for i in range(NUM_BLOCKS):
        w, b = linear(ks[2 + 2 * i], ks[3 + 2 * i], hidden, hidden)
        wb_list.append(w)
        bb_list.append(b)
    wb = jnp.stack(wb_list, axis=0)          # [9, H, H]
    bb = jnp.stack(bb_list, axis=0)          # [9, H]
    wf, bf = linear(ks[2 + 2 * NUM_BLOCKS], ks[3 + 2 * NUM_BLOCKS], hidden, output_dim)
    return {"w0": w0, "b0": b0, "wb": wb, "bb": bb, "wf": wf, "bf": bf}


def reference_forward_matched(x, p):
    """Pure-JAX reference using the SAME bf16-operand / f32-accumulate recipe
    as the kernel, so the comparison isolates kernel bugs from quantization."""
    bf16 = jnp.bfloat16
    h = jnp.dot(x.astype(bf16), p["w0"].astype(bf16),
                preferred_element_type=jnp.float32)
    h = jnp.maximum(h + p["b0"][None, :], 0.0)
    for i in range(NUM_BLOCKS):
        lin = jnp.dot(h.astype(bf16), p["wb"][i].astype(bf16),
                      preferred_element_type=jnp.float32)
        h = jnp.maximum(lin + p["bb"][i][None, :], 0.0) + h
    return jnp.dot(h.astype(bf16), p["wf"].astype(bf16),
                   preferred_element_type=jnp.float32) + p["bf"][None, :]


if __name__ == "__main__":
    # Shapes consistent with the module: input_dim=32, hidden=128, output_dim=16.
    # B=300 exercises the two-tile batch grid (2 x 160), the in-kernel half-split,
    # and the pad/slice path.
    B, IN, H, OUT = 300, 32, 128, 16
    key = jax.random.PRNGKey(0)
    kx, kp = jax.random.split(key)
    x = jax.random.normal(kx, (B, IN), jnp.float32)
    params = init_params(kp, IN, H, OUT)

    out = jax.block_until_ready(model_with_residuals(x, params))

    ref = reference_forward_matched(x, params)
    assert out.shape == (B, OUT)
    assert jnp.allclose(out, ref, atol=2e-2, rtol=2e-2), "mismatch vs pure-JAX reference"

    print("KERNEL_OK")
</pallas_src>

<mosaic_0001>
module attributes {stable_mosaic.version = 11 : i64} {
  func.func @model_with_residuals_kernel(%arg0: i32, %arg1: memref<160x128xf32, #tpu.memory_space<vmem>>, %arg2: memref<128x128xbf16, #tpu.memory_space<vmem>>, %arg3: memref<1x128xf32, #tpu.memory_space<vmem>>, %arg4: memref<9x128x128xbf16, #tpu.memory_space<vmem>>, %arg5: memref<9x128xf32, #tpu.memory_space<vmem>>, %arg6: memref<128x128xbf16, #tpu.memory_space<vmem>>, %arg7: memref<1x128xf32, #tpu.memory_space<vmem>>, %arg8: memref<160x128xf32, #tpu.memory_space<vmem>>) attributes {dimension_semantics = [#tpu.dimension_semantics<parallel>], iteration_bounds = array<i64: 2>, scalar_prefetch = 0 : i64, scratch_operands = 0 : i64, tpu.core_type = #tpu.core_type<tc>, window_params = [{transform_indices = @transform_0, window_bounds = array<i64: 160, 128>}, {pipeline_mode = #tpu.pipeline_mode<synchronous>, transform_indices = @transform_1, window_bounds = array<i64: 128, 128>}, {pipeline_mode = #tpu.pipeline_mode<synchronous>, transform_indices = @transform_2, window_bounds = array<i64: 1, 128>}, {pipeline_mode = #tpu.pipeline_mode<synchronous>, transform_indices = @transform_3, window_bounds = array<i64: 9, 128, 128>}, {pipeline_mode = #tpu.pipeline_mode<synchronous>, transform_indices = @transform_4, window_bounds = array<i64: 9, 128>}, {pipeline_mode = #tpu.pipeline_mode<synchronous>, transform_indices = @transform_5, window_bounds = array<i64: 128, 128>}, {pipeline_mode = #tpu.pipeline_mode<synchronous>, transform_indices = @transform_6, window_bounds = array<i64: 1, 128>}, {transform_indices = @transform_7, window_bounds = array<i64: 160, 128>}]} {
    %c0 = arith.constant 0 : index
    %c0_0 = arith.constant 0 : index
    %0 = vector.load %arg2[%c0, %c0_0] : memref<128x128xbf16, #tpu.memory_space<vmem>>, vector<128x128xbf16>
    %c0_1 = arith.constant 0 : index
    %c0_2 = arith.constant 0 : index
    %1 = vector.load %arg3[%c0_1, %c0_2] : memref<1x128xf32, #tpu.memory_space<vmem>>, vector<1x128xf32>
    %c0_3 = arith.constant 0 : index
    %c0_4 = arith.constant 0 : index
    %2 = vector.load %arg1[%c0_3, %c0_4] : memref<160x128xf32, #tpu.memory_space<vmem>>, vector<80x128xf32>
    %3 = arith.truncf %2 : vector<80x128xf32> to vector<80x128xbf16>
    %cst = arith.constant dense<0.000000e+00> : vector<80x128xf32>
    %4 = tpu.matmul %3, %0, %cst {dimension_numbers = #tpu.dot_dimension_numbers<[1], [0], [0], [1], [0, 0, 1, 1], [], []>} : vector<80x128xbf16>, vector<128x128xbf16>, vector<80x128xf32> -> vector<80x128xf32>
    %5 = vector.broadcast %1 : vector<1x128xf32> to vector<80x128xf32>
    %6 = arith.addf %4, %5 : vector<80x128xf32>
    %cst_5 = arith.constant 0.000000e+00 : f32
    %7 = vector.broadcast %cst_5 : f32 to vector<80x128xf32>
    %8 = arith.maximumf %6, %7 : vector<80x128xf32>
    %c80 = arith.constant 80 : index
    %c0_6 = arith.constant 0 : index
    %9 = vector.load %arg1[%c80, %c0_6] : memref<160x128xf32, #tpu.memory_space<vmem>>, vector<80x128xf32>
    %10 = arith.truncf %9 : vector<80x128xf32> to vector<80x128xbf16>
    %cst_7 = arith.constant dense<0.000000e+00> : vector<80x128xf32>
    %11 = tpu.matmul %10, %0, %cst_7 {dimension_numbers = #tpu.dot_dimension_numbers<[1], [0], [0], [1], [0, 0, 1, 1], [], []>} : vector<80x128xbf16>, vector<128x128xbf16>, vector<80x128xf32> -> vector<80x128xf32>
    %12 = vector.broadcast %1 : vector<1x128xf32> to vector<80x128xf32>
    %13 = arith.addf %11, %12 : vector<80x128xf32>
    %cst_8 = arith.constant 0.000000e+00 : f32
    %14 = vector.broadcast %cst_8 : f32 to vector<80x128xf32>
    %15 = arith.maximumf %13, %14 : vector<80x128xf32>
    %c0_9 = arith.constant 0 : index
    %c0_10 = arith.constant 0 : index
    %c0_11 = arith.constant 0 : index
    %16 = vector.load %arg4[%c0_9, %c0_10, %c0_11] : memref<9x128x128xbf16, #tpu.memory_space<vmem>>, vector<1x128x128xbf16>
    %17 = vector.shape_cast %16 : vector<1x128x128xbf16> to vector<128x128xbf16>
    %c0_12 = arith.constant 0 : index
    %c0_13 = arith.constant 0 : index
    %18 = vector.load %arg5[%c0_12, %c0_13] : memref<9x128xf32, #tpu.memory_space<vmem>>, vector<1x128xf32>
    %19 = vector.shape_cast %18 : vector<1x128xf32> to vector<128xf32>
    %20 = vector.shape_cast %19 : vector<128xf32> to vector<1x128xf32>
    %21 = arith.truncf %8 : vector<80x128xf32> to vector<80x128xbf16>
    %cst_14 = arith.constant dense<0.000000e+00> : vector<80x128xf32>
    %22 = tpu.matmul %21, %17, %cst_14 {dimension_numbers = #tpu.dot_dimension_numbers<[1], [0], [0], [1], [0, 0, 1, 1], [], []>} : vector<80x128xbf16>, vector<128x128xbf16>, vector<80x128xf32> -> vector<80x128xf32>
    %23 = arith.truncf %15 : vector<80x128xf32> to vector<80x128xbf16>
    %cst_15 = arith.constant dense<0.000000e+00> : vector<80x128xf32>
    %24 = tpu.matmul %23, %17, %cst_15 {dimension_numbers = #tpu.dot_dimension_numbers<[1], [0], [0], [1], [0, 0, 1, 1], [], []>} : vector<80x128xbf16>, vector<128x128xbf16>, vector<80x128xf32> -> vector<80x128xf32>
    %25 = vector.broadcast %20 : vector<1x128xf32> to vector<80x128xf32>
    %26 = arith.addf %22, %25 : vector<80x128xf32>
    %cst_16 = arith.constant 0.000000e+00 : f32
    %27 = vector.broadcast %cst_16 : f32 to vector<80x128xf32>
    %28 = arith.maximumf %26, %27 : vector<80x128xf32>
    %29 = arith.addf %28, %8 : vector<80x128xf32>
    %30 = vector.broadcast %20 : vector<1x128xf32> to vector<80x128xf32>
    %31 = arith.addf %24, %30 : vector<80x128xf32>
    %cst_17 = arith.constant 0.000000e+00 : f32
    %32 = vector.broadcast %cst_17 : f32 to vector<80x128xf32>
    %33 = arith.maximumf %31, %32 : vector<80x128xf32>
    %34 = arith.addf %33, %15 : vector<80x128xf32>
    %c1 = arith.constant 1 : index
    %c0_18 = arith.constant 0 : index
    %c0_19 = arith.constant 0 : index
    %35 = vector.load %arg4[%c1, %c0_18, %c0_19] : memref<9x128x128xbf16, #tpu.memory_space<vmem>>, vector<1x128x128xbf16>
    %36 = vector.shape_cast %35 : vector<1x128x128xbf16> to vector<128x128xbf16>
    %c1_20 = arith.constant 1 : index
    %c0_21 = arith.constant 0 : index
    %37 = vector.load %arg5[%c1_20, %c0_21] : memref<9x128xf32, #tpu.memory_space<vmem>>, vector<1x128xf32>
    %38 = vector.shape_cast %37 : vector<1x128xf32> to vector<128xf32>
    %39 = vector.shape_cast %38 : vector<128xf32> to vector<1x128xf32>
    %40 = arith.truncf %29 : vector<80x128xf32> to vector<80x128xbf16>
    %cst_22 = arith.constant dense<0.000000e+00> : vector<80x128xf32>
    %41 = tpu.matmul %40, %36, %cst_22 {dimension_numbers = #tpu.dot_dimension_numbers<[1], [0], [0], [1], [0, 0, 1, 1], [], []>} : vector<80x128xbf16>, vector<128x128xbf16>, vector<80x128xf32> -> vector<80x128xf32>
    %42 = arith.truncf %34 : vector<80x128xf32> to vector<80x128xbf16>
    %cst_23 = arith.constant dense<0.000000e+00> : vector<80x128xf32>
    %43 = tpu.matmul %42, %36, %cst_23 {dimension_numbers = #tpu.dot_dimension_numbers<[1], [0], [0], [1], [0, 0, 1, 1], [], []>} : vector<80x128xbf16>, vector<128x128xbf16>, vector<80x128xf32> -> vector<80x128xf32>
    %44 = vector.broadcast %39 : vector<1x128xf32> to vector<80x128xf32>
    %45 = arith.addf %41, %44 : vector<80x128xf32>
    %cst_24 = arith.constant 0.000000e+00 : f32
    %46 = vector.broadcast %cst_24 : f32 to vector<80x128xf32>
    %47 = arith.maximumf %45, %46 : vector<80x128xf32>
    %48 = arith.addf %47, %29 : vector<80x128xf32>
    %49 = vector.broadcast %39 : vector<1x128xf32> to vector<80x128xf32>
    %50 = arith.addf %43, %49 : vector<80x128xf32>
    %cst_25 = arith.constant 0.000000e+00 : f32
    %51 = vector.broadcast %cst_25 : f32 to vector<80x128xf32>
    %52 = arith.maximumf %50, %51 : vector<80x128xf32>
    %53 = arith.addf %52, %34 : vector<80x128xf32>
    %c2 = arith.constant 2 : index
    %c0_26 = arith.constant 0 : index
    %c0_27 = arith.constant 0 : index
    %54 = vector.load %arg4[%c2, %c0_26, %c0_27] : memref<9x128x128xbf16, #tpu.memory_space<vmem>>, vector<1x128x128xbf16>
    %55 = vector.shape_cast %54 : vector<1x128x128xbf16> to vector<128x128xbf16>
    %c2_28 = arith.constant 2 : index
    %c0_29 = arith.constant 0 : index
    %56 = vector.load %arg5[%c2_28, %c0_29] : memref<9x128xf32, #tpu.memory_space<vmem>>, vector<1x128xf32>
    %57 = vector.shape_cast %56 : vector<1x128xf32> to vector<128xf32>
    %58 = vector.shape_cast %57 : vector<128xf32> to vector<1x128xf32>
    %59 = arith.truncf %48 : vector<80x128xf32> to vector<80x128xbf16>
    %cst_30 = arith.constant dense<0.000000e+00> : vector<80x128xf32>
    %60 = tpu.matmul %59, %55, %cst_30 {dimension_numbers = #tpu.dot_dimension_numbers<[1], [0], [0], [1], [0, 0, 1, 1], [], []>} : vector<80x128xbf16>, vector<128x128xbf16>, vector<80x128xf32> -> vector<80x128xf32>
    %61 = arith.truncf %53 : vector<80x128xf32> to vector<80x128xbf16>
    %cst_31 = arith.constant dense<0.000000e+00> : vector<80x128xf32>
    %62 = tpu.matmul %61, %55, %cst_31 {dimension_numbers = #tpu.dot_dimension_numbers<[1], [0], [0], [1], [0, 0, 1, 1], [], []>} : vector<80x128xbf16>, vector<128x128xbf16>, vector<80x128xf32> -> vector<80x128xf32>
    %63 = vector.broadcast %58 : vector<1x128xf32> to vector<80x128xf32>
    %64 = arith.addf %60, %63 : vector<80x128xf32>
    %cst_32 = arith.constant 0.000000e+00 : f32
    %65 = vector.broadcast %cst_32 : f32 to vector<80x128xf32>
    %66 = arith.maximumf %64, %65 : vector<80x128xf32>
    %67 = arith.addf %66, %48 : vector<80x128xf32>
    %68 = vector.broadcast %58 : vector<1x128xf32> to vector<80x128xf32>
    %69 = arith.addf %62, %68 : vector<80x128xf32>
    %cst_33 = arith.constant 0.000000e+00 : f32
    %70 = vector.broadcast %cst_33 : f32 to vector<80x128xf32>
    %71 = arith.maximumf %69, %70 : vector<80x128xf32>
    %72 = arith.addf %71, %53 : vector<80x128xf32>
    %c3 = arith.constant 3 : index
    %c0_34 = arith.constant 0 : index
    %c0_35 = arith.constant 0 : index
    %73 = vector.load %arg4[%c3, %c0_34, %c0_35] : memref<9x128x128xbf16, #tpu.memory_space<vmem>>, vector<1x128x128xbf16>
    %74 = vector.shape_cast %73 : vector<1x128x128xbf16> to vector<128x128xbf16>
    %c3_36 = arith.constant 3 : index
    %c0_37 = arith.constant 0 : index
    %75 = vector.load %arg5[%c3_36, %c0_37] : memref<9x128xf32, #tpu.memory_space<vmem>>, vector<1x128xf32>
    %76 = vector.shape_cast %75 : vector<1x128xf32> to vector<128xf32>
    %77 = vector.shape_cast %76 : vector<128xf32> to vector<1x128xf32>
    %78 = arith.truncf %67 : vector<80x128xf32> to vector<80x128xbf16>
    %cst_38 = arith.constant dense<0.000000e+00> : vector<80x128xf32>
    %79 = tpu.matmul %78, %74, %cst_38 {dimension_numbers = #tpu.dot_dimension_numbers<[1], [0], [0], [1], [0, 0, 1, 1], [], []>} : vector<80x128xbf16>, vector<128x128xbf16>, vector<80x128xf32> -> vector<80x128xf32>
    %80 = arith.truncf %72 : vector<80x128xf32> to vector<80x128xbf16>
    %cst_39 = arith.constant dense<0.000000e+00> : vector<80x128xf32>
    %81 = tpu.matmul %80, %74, %cst_39 {dimension_numbers = #tpu.dot_dimension_numbers<[1], [0], [0], [1], [0, 0, 1, 1], [], []>} : vector<80x128xbf16>, vector<128x128xbf16>, vector<80x128xf32> -> vector<80x128xf32>
    %82 = vector.broadcast %77 : vector<1x128xf32> to vector<80x128xf32>
    %83 = arith.addf %79, %82 : vector<80x128xf32>
    %cst_40 = arith.constant 0.000000e+00 : f32
    %84 = vector.broadcast %cst_40 : f32 to vector<80x128xf32>
    %85 = arith.maximumf %83, %84 : vector<80x128xf32>
    %86 = arith.addf %85, %67 : vector<80x128xf32>
    %87 = vector.broadcast %77 : vector<1x128xf32> to vector<80x128xf32>
    %88 = arith.addf %81, %87 : vector<80x128xf32>
    %cst_41 = arith.constant 0.000000e+00 : f32
    %89 = vector.broadcast %cst_41 : f32 to vector<80x128xf32>
    %90 = arith.maximumf %88, %89 : vector<80x128xf32>
    %91 = arith.addf %90, %72 : vector<80x128xf32>
    %c4 = arith.constant 4 : index
    %c0_42 = arith.constant 0 : index
    %c0_43 = arith.constant 0 : index
    %92 = vector.load %arg4[%c4, %c0_42, %c0_43] : memref<9x128x128xbf16, #tpu.memory_space<vmem>>, vector<1x128x128xbf16>
    %93 = vector.shape_cast %92 : vector<1x128x128xbf16> to vector<128x128xbf16>
    %c4_44 = arith.constant 4 : index
    %c0_45 = arith.constant 0 : index
    %94 = vector.load %arg5[%c4_44, %c0_45] : memref<9x128xf32, #tpu.memory_space<vmem>>, vector<1x128xf32>
    %95 = vector.shape_cast %94 : vector<1x128xf32> to vector<128xf32>
    %96 = vector.shape_cast %95 : vector<128xf32> to vector<1x128xf32>
    %97 = arith.truncf %86 : vector<80x128xf32> to vector<80x128xbf16>
    %cst_46 = arith.constant dense<0.000000e+00> : vector<80x128xf32>
    %98 = tpu.matmul %97, %93, %cst_46 {dimension_numbers = #tpu.dot_dimension_numbers<[1], [0], [0], [1], [0, 0, 1, 1], [], []>} : vector<80x128xbf16>, vector<128x128xbf16>, vector<80x128xf32> -> vector<80x128xf32>
    %99 = arith.truncf %91 : vector<80x128xf32> to vector<80x128xbf16>
    %cst_47 = arith.constant dense<0.000000e+00> : vector<80x128xf32>
    %100 = tpu.matmul %99, %93, %cst_47 {dimension_numbers = #tpu.dot_dimension_numbers<[1], [0], [0], [1], [0, 0, 1, 1], [], []>} : vector<80x128xbf16>, vector<128x128xbf16>, vector<80x128xf32> -> vector<80x128xf32>
    %101 = vector.broadcast %96 : vector<1x128xf32> to vector<80x128xf32>
    %102 = arith.addf %98, %101 : vector<80x128xf32>
    %cst_48 = arith.constant 0.000000e+00 : f32
    %103 = vector.broadcast %cst_48 : f32 to vector<80x128xf32>
    %104 = arith.maximumf %102, %103 : vector<80x128xf32>
    %105 = arith.addf %104, %86 : vector<80x128xf32>
    %106 = vector.broadcast %96 : vector<1x128xf32> to vector<80x128xf32>
    %107 = arith.addf %100, %106 : vector<80x128xf32>
    %cst_49 = arith.constant 0.000000e+00 : f32
    %108 = vector.broadcast %cst_49 : f32 to vector<80x128xf32>
    %109 = arith.maximumf %107, %108 : vector<80x128xf32>
    %110 = arith.addf %109, %91 : vector<80x128xf32>
    %c5 = arith.constant 5 : index
    %c0_50 = arith.constant 0 : index
    %c0_51 = arith.constant 0 : index
    %111 = vector.load %arg4[%c5, %c0_50, %c0_51] : memref<9x128x128xbf16, #tpu.memory_space<vmem>>, vector<1x128x128xbf16>
    %112 = vector.shape_cast %111 : vector<1x128x128xbf16> to vector<128x128xbf16>
    %c5_52 = arith.constant 5 : index
    %c0_53 = arith.constant 0 : index
    %113 = vector.load %arg5[%c5_52, %c0_53] : memref<9x128xf32, #tpu.memory_space<vmem>>, vector<1x128xf32>
    %114 = vector.shape_cast %113 : vector<1x128xf32> to vector<128xf32>
    %115 = vector.shape_cast %114 : vector<128xf32> to vector<1x128xf32>
    %116 = arith.truncf %105 : vector<80x128xf32> to vector<80x128xbf16>
    %cst_54 = arith.constant dense<0.000000e+00> : vector<80x128xf32>
    %117 = tpu.matmul %116, %112, %cst_54 {dimension_numbers = #tpu.dot_dimension_numbers<[1], [0], [0], [1], [0, 0, 1, 1], [], []>} : vector<80x128xbf16>, vector<128x128xbf16>, vector<80x128xf32> -> vector<80x128xf32>
    %118 = arith.truncf %110 : vector<80x128xf32> to vector<80x128xbf16>
    %cst_55 = arith.constant dense<0.000000e+00> : vector<80x128xf32>
    %119 = tpu.matmul %118, %112, %cst_55 {dimension_numbers = #tpu.dot_dimension_numbers<[1], [0], [0], [1], [0, 0, 1, 1], [], []>} : vector<80x128xbf16>, vector<128x128xbf16>, vector<80x128xf32> -> vector<80x128xf32>
    %120 = vector.broadcast %115 : vector<1x128xf32> to vector<80x128xf32>
    %121 = arith.addf %117, %120 : vector<80x128xf32>
    %cst_56 = arith.constant 0.000000e+00 : f32
    %122 = vector.broadcast %cst_56 : f32 to vector<80x128xf32>
    %123 = arith.maximumf %121, %122 : vector<80x128xf32>
    %124 = arith.addf %123, %105 : vector<80x128xf32>
    %125 = vector.broadcast %115 : vector<1x128xf32> to vector<80x128xf32>
    %126 = arith.addf %119, %125 : vector<80x128xf32>
    %cst_57 = arith.constant 0.000000e+00 : f32
    %127 = vector.broadcast %cst_57 : f32 to vector<80x128xf32>
    %128 = arith.maximumf %126, %127 : vector<80x128xf32>
    %129 = arith.addf %128, %110 : vector<80x128xf32>
    %c6 = arith.constant 6 : index
    %c0_58 = arith.constant 0 : index
    %c0_59 = arith.constant 0 : index
    %130 = vector.load %arg4[%c6, %c0_58, %c0_59] : memref<9x128x128xbf16, #tpu.memory_space<vmem>>, vector<1x128x128xbf16>
    %131 = vector.shape_cast %130 : vector<1x128x128xbf16> to vector<128x128xbf16>
    %c6_60 = arith.constant 6 : index
    %c0_61 = arith.constant 0 : index
    %132 = vector.load %arg5[%c6_60, %c0_61] : memref<9x128xf32, #tpu.memory_space<vmem>>, vector<1x128xf32>
    %133 = vector.shape_cast %132 : vector<1x128xf32> to vector<128xf32>
    %134 = vector.shape_cast %133 : vector<128xf32> to vector<1x128xf32>
    %135 = arith.truncf %124 : vector<80x128xf32> to vector<80x128xbf16>
    %cst_62 = arith.constant dense<0.000000e+00> : vector<80x128xf32>
    %136 = tpu.matmul %135, %131, %cst_62 {dimension_numbers = #tpu.dot_dimension_numbers<[1], [0], [0], [1], [0, 0, 1, 1], [], []>} : vector<80x128xbf16>, vector<128x128xbf16>, vector<80x128xf32> -> vector<80x128xf32>
    %137 = arith.truncf %129 : vector<80x128xf32> to vector<80x128xbf16>
    %cst_63 = arith.constant dense<0.000000e+00> : vector<80x128xf32>
    %138 = tpu.matmul %137, %131, %cst_63 {dimension_numbers = #tpu.dot_dimension_numbers<[1], [0], [0], [1], [0, 0, 1, 1], [], []>} : vector<80x128xbf16>, vector<128x128xbf16>, vector<80x128xf32> -> vector<80x128xf32>
    %139 = vector.broadcast %134 : vector<1x128xf32> to vector<80x128xf32>
    %140 = arith.addf %136, %139 : vector<80x128xf32>
    %cst_64 = arith.constant 0.000000e+00 : f32
    %141 = vector.broadcast %cst_64 : f32 to vector<80x128xf32>
    %142 = arith.maximumf %140, %141 : vector<80x128xf32>
    %143 = arith.addf %142, %124 : vector<80x128xf32>
    %144 = vector.broadcast %134 : vector<1x128xf32> to vector<80x128xf32>
    %145 = arith.addf %138, %144 : vector<80x128xf32>
    %cst_65 = arith.constant 0.000000e+00 : f32
    %146 = vector.broadcast %cst_65 : f32 to vector<80x128xf32>
    %147 = arith.maximumf %145, %146 : vector<80x128xf32>
    %148 = arith.addf %147, %129 : vector<80x128xf32>
    %c7 = arith.constant 7 : index
    %c0_66 = arith.constant 0 : index
    %c0_67 = arith.constant 0 : index
    %149 = vector.load %arg4[%c7, %c0_66, %c0_67] : memref<9x128x128xbf16, #tpu.memory_space<vmem>>, vector<1x128x128xbf16>
    %150 = vector.shape_cast %149 : vector<1x128x128xbf16> to vector<128x128xbf16>
    %c7_68 = arith.constant 7 : index
    %c0_69 = arith.constant 0 : index
    %151 = vector.load %arg5[%c7_68, %c0_69] : memref<9x128xf32, #tpu.memory_space<vmem>>, vector<1x128xf32>
    %152 = vector.shape_cast %151 : vector<1x128xf32> to vector<128xf32>
    %153 = vector.shape_cast %152 : vector<128xf32> to vector<1x128xf32>
    %154 = arith.truncf %143 : vector<80x128xf32> to vector<80x128xbf16>
    %cst_70 = arith.constant dense<0.000000e+00> : vector<80x128xf32>
    %155 = tpu.matmul %154, %150, %cst_70 {dimension_numbers = #tpu.dot_dimension_numbers<[1], [0], [0], [1], [0, 0, 1, 1], [], []>} : vector<80x128xbf16>, vector<128x128xbf16>, vector<80x128xf32> -> vector<80x128xf32>
    %156 = arith.truncf %148 : vector<80x128xf32> to vector<80x128xbf16>
    %cst_71 = arith.constant dense<0.000000e+00> : vector<80x128xf32>
    %157 = tpu.matmul %156, %150, %cst_71 {dimension_numbers = #tpu.dot_dimension_numbers<[1], [0], [0], [1], [0, 0, 1, 1], [], []>} : vector<80x128xbf16>, vector<128x128xbf16>, vector<80x128xf32> -> vector<80x128xf32>
    %158 = vector.broadcast %153 : vector<1x128xf32> to vector<80x128xf32>
    %159 = arith.addf %155, %158 : vector<80x128xf32>
    %cst_72 = arith.constant 0.000000e+00 : f32
    %160 = vector.broadcast %cst_72 : f32 to vector<80x128xf32>
    %161 = arith.maximumf %159, %160 : vector<80x128xf32>
    %162 = arith.addf %161, %143 : vector<80x128xf32>
    %163 = vector.broadcast %153 : vector<1x128xf32> to vector<80x128xf32>
    %164 = arith.addf %157, %163 : vector<80x128xf32>
    %cst_73 = arith.constant 0.000000e+00 : f32
    %165 = vector.broadcast %cst_73 : f32 to vector<80x128xf32>
    %166 = arith.maximumf %164, %165 : vector<80x128xf32>
    %167 = arith.addf %166, %148 : vector<80x128xf32>
    %c8 = arith.constant 8 : index
    %c0_74 = arith.constant 0 : index
    %c0_75 = arith.constant 0 : index
    %168 = vector.load %arg4[%c8, %c0_74, %c0_75] : memref<9x128x128xbf16, #tpu.memory_space<vmem>>, vector<1x128x128xbf16>
    %169 = vector.shape_cast %168 : vector<1x128x128xbf16> to vector<128x128xbf16>
    %c8_76 = arith.constant 8 : index
    %c0_77 = arith.constant 0 : index
    %170 = vector.load %arg5[%c8_76, %c0_77] : memref<9x128xf32, #tpu.memory_space<vmem>>, vector<1x128xf32>
    %171 = vector.shape_cast %170 : vector<1x128xf32> to vector<128xf32>
    %172 = vector.shape_cast %171 : vector<128xf32> to vector<1x128xf32>
    %173 = arith.truncf %162 : vector<80x128xf32> to vector<80x128xbf16>
    %cst_78 = arith.constant dense<0.000000e+00> : vector<80x128xf32>
    %174 = tpu.matmul %173, %169, %cst_78 {dimension_numbers = #tpu.dot_dimension_numbers<[1], [0], [0], [1], [0, 0, 1, 1], [], []>} : vector<80x128xbf16>, vector<128x128xbf16>, vector<80x128xf32> -> vector<80x128xf32>
    %175 = arith.truncf %167 : vector<80x128xf32> to vector<80x128xbf16>
    %cst_79 = arith.constant dense<0.000000e+00> : vector<80x128xf32>
    %176 = tpu.matmul %175, %169, %cst_79 {dimension_numbers = #tpu.dot_dimension_numbers<[1], [0], [0], [1], [0, 0, 1, 1], [], []>} : vector<80x128xbf16>, vector<128x128xbf16>, vector<80x128xf32> -> vector<80x128xf32>
    %177 = vector.broadcast %172 : vector<1x128xf32> to vector<80x128xf32>
    %178 = arith.addf %174, %177 : vector<80x128xf32>
    %cst_80 = arith.constant 0.000000e+00 : f32
    %179 = vector.broadcast %cst_80 : f32 to vector<80x128xf32>
    %180 = arith.maximumf %178, %179 : vector<80x128xf32>
    %181 = arith.addf %180, %162 : vector<80x128xf32>
    %182 = vector.broadcast %172 : vector<1x128xf32> to vector<80x128xf32>
    %183 = arith.addf %176, %182 : vector<80x128xf32>
    %cst_81 = arith.constant 0.000000e+00 : f32
    %184 = vector.broadcast %cst_81 : f32 to vector<80x128xf32>
    %185 = arith.maximumf %183, %184 : vector<80x128xf32>
    %186 = arith.addf %185, %167 : vector<80x128xf32>
    %c0_82 = arith.constant 0 : index
    %c0_83 = arith.constant 0 : index
    %187 = vector.load %arg6[%c0_82, %c0_83] : memref<128x128xbf16, #tpu.memory_space<vmem>>, vector<128x128xbf16>
    %c0_84 = arith.constant 0 : index
    %c0_85 = arith.constant 0 : index
    %188 = vector.load %arg7[%c0_84, %c0_85] : memref<1x128xf32, #tpu.memory_space<vmem>>, vector<1x128xf32>
    %189 = arith.truncf %181 : vector<80x128xf32> to vector<80x128xbf16>
    %cst_86 = arith.constant dense<0.000000e+00> : vector<80x128xf32>
    %190 = tpu.matmul %189, %187, %cst_86 {dimension_numbers = #tpu.dot_dimension_numbers<[1], [0], [0], [1], [0, 0, 1, 1], [], []>} : vector<80x128xbf16>, vector<128x128xbf16>, vector<80x128xf32> -> vector<80x128xf32>
    %191 = vector.broadcast %188 : vector<1x128xf32> to vector<80x128xf32>
    %192 = arith.addf %190, %191 : vector<80x128xf32>
    %193 = arith.truncf %186 : vector<80x128xf32> to vector<80x128xbf16>
    %cst_87 = arith.constant dense<0.000000e+00> : vector<80x128xf32>
    %194 = tpu.matmul %193, %187, %cst_87 {dimension_numbers = #tpu.dot_dimension_numbers<[1], [0], [0], [1], [0, 0, 1, 1], [], []>} : vector<80x128xbf16>, vector<128x128xbf16>, vector<80x128xf32> -> vector<80x128xf32>
    %195 = vector.broadcast %188 : vector<1x128xf32> to vector<80x128xf32>
    %196 = arith.addf %194, %195 : vector<80x128xf32>
    %c0_88 = arith.constant 0 : index
    %c0_89 = arith.constant 0 : index
    %197 = vector.load %arg8[%c0_88, %c0_89] : memref<160x128xf32, #tpu.memory_space<vmem>>, vector<80x128xf32>
    tpu.vector_store %arg8[%c0_88, %c0_89], %192 {strides = array<i32>} : memref<160x128xf32, #tpu.memory_space<vmem>>, vector<80x128xf32>,
    %c80_90 = arith.constant 80 : index
    %c0_91 = arith.constant 0 : index
    %198 = vector.load %arg8[%c80_90, %c0_91] : memref<160x128xf32, #tpu.memory_space<vmem>>, vector<80x128xf32>
    tpu.vector_store %arg8[%c80_90, %c0_91], %196 {strides = array<i32>} : memref<160x128xf32, #tpu.memory_space<vmem>>, vector<80x128xf32>,
    return
  }
  func.func @transform_0(%arg0: i32) -> (i32, i32) {
    %c0_i32 = arith.constant 0 : i32
    %c0_i32_0 = arith.constant 0 : i32
    return %arg0, %c0_i32 : i32, i32
  }
  func.func @transform_1(%arg0: i32) -> (i32, i32) {
    %c0_i32 = arith.constant 0 : i32
    %c0_i32_0 = arith.constant 0 : i32
    %c0_i32_1 = arith.constant 0 : i32
    return %c0_i32, %c0_i32_0 : i32, i32
  }
  func.func @transform_2(%arg0: i32) -> (i32, i32) {
    %c0_i32 = arith.constant 0 : i32
    %c0_i32_0 = arith.constant 0 : i32
    %c0_i32_1 = arith.constant 0 : i32
    return %c0_i32, %c0_i32_0 : i32, i32
  }
  func.func @transform_3(%arg0: i32) -> (i32, i32, i32) {
    %c0_i32 = arith.constant 0 : i32
    %c0_i32_0 = arith.constant 0 : i32
    %c0_i32_1 = arith.constant 0 : i32
    %c0_i32_2 = arith.constant 0 : i32
    return %c0_i32, %c0_i32_0, %c0_i32_1 : i32, i32, i32
  }
  func.func @transform_4(%arg0: i32) -> (i32, i32) {
    %c0_i32 = arith.constant 0 : i32
    %c0_i32_0 = arith.constant 0 : i32
    %c0_i32_1 = arith.constant 0 : i32
    return %c0_i32, %c0_i32_0 : i32, i32
  }
  func.func @transform_5(%arg0: i32) -> (i32, i32) {
    %c0_i32 = arith.constant 0 : i32
    %c0_i32_0 = arith.constant 0 : i32
    %c0_i32_1 = arith.constant 0 : i32
    return %c0_i32, %c0_i32_0 : i32, i32
  }
  func.func @transform_6(%arg0: i32) -> (i32, i32) {
    %c0_i32 = arith.constant 0 : i32
    %c0_i32_0 = arith.constant 0 : i32
    %c0_i32_1 = arith.constant 0 : i32
    return %c0_i32, %c0_i32_0 : i32, i32
  }
  func.func @transform_7(%arg0: i32) -> (i32, i32) {
    %c0_i32 = arith.constant 0 : i32
    %c0_i32_0 = arith.constant 0 : i32
    return %arg0, %c0_i32 : i32, i32
  }
}

</mosaic_0001>

<llo_original>
// kernel: tpu_custom_call.1
$region0: #{tpu_custom_call.1}
  #allocation0 [shape = 'u32[]', space=smem, size = 0x4, offset = 0x4, fixed_abs, tag = 'smem constant byte address 0x4 - core index']
  #allocation1 [shape = 'u32[144,128]{1,0:T(1,128)}', space=vmem, size = 0x12000, scoped, tag = 'internal scratch']
  %s0 = inlined_call_operand.hbm [shape: f32[320,128], index: 0, kind: input, shape index: {}]
  %s1 = inlined_call_operand.hbm [shape: bf16[128,128], index: 1, kind: input, shape index: {}]
  %s2 = inlined_call_operand.vmem [shape: f32[1,128], index: 2, kind: input, shape index: {}]
  %s3 = inlined_call_operand.hbm [shape: bf16[9,128,128], index: 3, kind: input, shape index: {}]
  %s4 = inlined_call_operand.hbm [shape: f32[9,128], index: 4, kind: input, shape index: {}]
  %s5 = inlined_call_operand.hbm [shape: bf16[128,128], index: 5, kind: input, shape index: {}]
  %s6 = inlined_call_operand.vmem [shape: f32[1,128], index: 6, kind: input, shape index: {}]
  %s7 = inlined_call_operand.hbm [shape: f32[320,128], index: 7, kind: output, shape index: {}]
  %s8 = sld [smem:[#allocation0]]
  $region81: #{tpu_custom_call.1} parent=0
    _
  %s10 = ssub.s32 1, %s8
  %s11 = scalar_select 0, %s10, %s8
  $region1: #{tpu_custom_call.1} parent=0
    #allocation2 [shape = 'u8[163840]{0}', space=vmem, size = 0x28000, scoped, tag = 'input window, operand 0']
    #allocation3 [shape = 's32[2]{0}', space=sflag, size = 0x8, scoped, tag = 'scoped memory for tpu_custom_call.1']
    #allocation4 [shape = 's32[2]{0}', space=sflag, size = 0x8, scoped, tag = 'scoped memory for tpu_custom_call.1']
    #allocation5 [shape = 'u8[32768]{0}', space=vmem, size = 0x8000, scoped, tag = 'input window, operand 1, single buffered']
    #allocation6 [shape = 's32[1]{0}', space=sflag, size = 0x4, scoped, tag = 'scoped memory for tpu_custom_call.1']
    #allocation7 [shape = 'u8[294912]{0}', space=vmem, size = 0x48000, scoped, tag = 'input window, operand 3, single buffered']
    #allocation8 [shape = 'u8[8192]{0}', space=vmem, size = 0x2000, scoped, tag = 'input window, operand 4, single buffered']
    #allocation9 [shape = 's32[1]{0}', space=sflag, size = 0x4, scoped, tag = 'scoped memory for tpu_custom_call.1']
    #allocation10 [shape = 'u8[32768]{0}', space=vmem, size = 0x8000, scoped, tag = 'input window, operand 5, single buffered']
    #allocation11 [shape = 'u8[163840]{0}', space=vmem, size = 0x28000, scoped, tag = 'output window, operand 0']
    %12 = vsyncpa [#allocation3], 0
    %s13 = scalar_lea.sflag [#allocation3], 1
    %14 = vsyncpa %s13, 0
    %15 = vsyncpa [#allocation6], 0
    %16 = vsyncpa [#allocation9], 0
    %17 = vsyncpa [#allocation4], 0
    %s18 = scalar_lea.sflag [#allocation4], 1
    %19 = vsyncpa %s18, 0
    loop: start=0, step=1, limit=4
    $region2: #{tpu_custom_call.1} parent=1 // loop_pre_header
      _
    $region3: #{tpu_custom_call.1} parent=1 // loop_header
      %s21 = sphi 0, %s25
      %p22 = scmp.ge.s32.totalorder %s21, 4
      %s31 = sphi 0, %s33
      %s34 = sphi 0, %s31
      %s35 = sphi 0, %s34
      %s51 = sphi 0, %s35
      %s55 = sphi 0, %s55
      %s57 = sphi 0, %s55
      %s58 = sphi 0, %s57
      %s72 = sphi 0, %s58
      %s76 = sphi 0, %s76
      %s78 = sphi 0, %s76
      %s79 = sphi 0, %s78
      %s93 = sphi 0, %s79
      %s97 = sphi 0, %s97
      %s99 = sphi 0, %s97
      %s100 = sphi 0, %s99
      %s114 = sphi 0, %s100
      %s118 = sphi 0, %s118
      %s120 = sphi 0, %s118
      %s121 = sphi 0, %s120
      %s135 = sphi 0, %s121
      %s139 = sphi 0, %s139
      %s141 = sphi 0, %s139
      %s142 = sphi 0, %s141
      %s156 = sphi 0, %s142
      %s160 = sphi 0, %s160
      %s162 = sphi 0, %s160
      %s163 = sphi 0, %s162
      %s177 = sphi 0, %s163
      %s183 = sphi 0, %s185
      %s186 = sphi 0, %s183
      %s187 = sphi 0, %s186
      %s203 = sphi 0, %s187
    $region4: #{tpu_custom_call.1} parent=1 // loop_header_branch
      %24 = sbr.rel (%p22) target = $region8
    $region5: #{tpu_custom_call.1} parent=1 // loop_body
      %s26 = ssub.s32 %s21, 1
      %s27 = ssub.s32 %s21, 2
      %s28 = sadd.s32 %s21, 1
      %s29 = ssub.s32 %s21, %s28
      %p30 = scmp.eq.s32.totalorder %s29, 0
      %s32 = sadd.s32 %s31, 1
      %s33 = scalar_select %p30, %s31, %s32
      %p36 = pneg %p30
      %p37 = scmp.eq.s32.totalorder %s21, 1
      %p38 = por %p36, %p37
      %p39 = scmp.ne.s32.totalorder %s31, %s34
      %p40 = scmp.eq.s32.totalorder %s21, 0
      %p41 = por %p39, %p40
      %p42 = scmp.ne.s32.totalorder %s31, %s34
      %p43 = scmp.eq.s32.totalorder %s26, 1
      %p44 = por %p42, %p43
      %p45 = scmp.ne.s32.totalorder %s34, %s35
      %p46 = scmp.eq.s32.totalorder %s26, 0
      %p47 = por %p45, %p46
      %p48 = scmp.ne.s32.totalorder %s34, %s35
      %p49 = scmp.eq.s32.totalorder %s27, 1
      %p50 = por %p48, %p49
      %p52 = scmp.ne.s32.totalorder %s35, %s51
      %p53 = scmp.eq.s32.totalorder %s27, 0
      %p54 = por %p52, %p53
      %s56 = sadd.s32 %s55, 1
      %p59 = scmp.eq.s32.totalorder %s21, 1
      %p60 = scmp.ne.s32.totalorder %s55, %s57
      %p61 = scmp.eq.s32.totalorder %s21, 0
      %p62 = por %p60, %p61
      %p63 = scmp.ne.s32.totalorder %s55, %s57
      %p64 = scmp.eq.s32.totalorder %s26, 1
      %p65 = por %p63, %p64
      %p66 = scmp.ne.s32.totalorder %s57, %s58
      %p67 = scmp.eq.s32.totalorder %s26, 0
      %p68 = por %p66, %p67
      %p69 = scmp.ne.s32.totalorder %s57, %s58
      %p70 = scmp.eq.s32.totalorder %s27, 1
      %p71 = por %p69, %p70
      %p73 = scmp.ne.s32.totalorder %s58, %s72
      %p74 = scmp.eq.s32.totalorder %s27, 0
      %p75 = por %p73, %p74
      %s77 = sadd.s32 %s76, 1
      %p80 = scmp.eq.s32.totalorder %s21, 1
      %p81 = scmp.ne.s32.totalorder %s76, %s78
      %p82 = scmp.eq.s32.totalorder %s21, 0
      %p83 = por %p81, %p82
      %p84 = scmp.ne.s32.totalorder %s76, %s78
      %p85 = scmp.eq.s32.totalorder %s26, 1
      %p86 = por %p84, %p85
      %p87 = scmp.ne.s32.totalorder %s78, %s79
      %p88 = scmp.eq.s32.totalorder %s26, 0
      %p89 = por %p87, %p88
      %p90 = scmp.ne.s32.totalorder %s78, %s79
      %p91 = scmp.eq.s32.totalorder %s27, 1
      %p92 = por %p90, %p91
      %p94 = scmp.ne.s32.totalorder %s79, %s93
      %p95 = scmp.eq.s32.totalorder %s27, 0
      %p96 = por %p94, %p95
      %s98 = sadd.s32 %s97, 1
      %p101 = scmp.eq.s32.totalorder %s21, 1
      %p102 = scmp.ne.s32.totalorder %s97, %s99
      %p103 = scmp.eq.s32.totalorder %s21, 0
      %p104 = por %p102, %p103
      %p105 = scmp.ne.s32.totalorder %s97, %s99
      %p106 = scmp.eq.s32.totalorder %s26, 1
      %p107 = por %p105, %p106
      %p108 = scmp.ne.s32.totalorder %s99, %s100
      %p109 = scmp.eq.s32.totalorder %s26, 0
      %p110 = por %p108, %p109
      %p111 = scmp.ne.s32.totalorder %s99, %s100
      %p112 = scmp.eq.s32.totalorder %s27, 1
      %p113 = por %p111, %p112
      %p115 = scmp.ne.s32.totalorder %s100, %s114
      %p116 = scmp.eq.s32.totalorder %s27, 0
      %p117 = por %p115, %p116
      %s119 = sadd.s32 %s118, 1
      %p122 = scmp.eq.s32.totalorder %s21, 1
      %p123 = scmp.ne.s32.totalorder %s118, %s120
      %p124 = scmp.eq.s32.totalorder %s21, 0
      %p125 = por %p123, %p124
      %p126 = scmp.ne.s32.totalorder %s118, %s120
      %p127 = scmp.eq.s32.totalorder %s26, 1
      %p128 = por %p126, %p127
      %p129 = scmp.ne.s32.totalorder %s120, %s121
      %p130 = scmp.eq.s32.totalorder %s26, 0
      %p131 = por %p129, %p130
      %p132 = scmp.ne.s32.totalorder %s120, %s121
      %p133 = scmp.eq.s32.totalorder %s27, 1
      %p134 = por %p132, %p133
      %p136 = scmp.ne.s32.totalorder %s121, %s135
      %p137 = scmp.eq.s32.totalorder %s27, 0
      %p138 = por %p136, %p137
      %s140 = sadd.s32 %s139, 1
      %p143 = scmp.eq.s32.totalorder %s21, 1
      %p144 = scmp.ne.s32.totalorder %s139, %s141
      %p145 = scmp.eq.s32.totalorder %s21, 0
      %p146 = por %p144, %p145
      %p147 = scmp.ne.s32.totalorder %s139, %s141
      %p148 = scmp.eq.s32.totalorder %s26, 1
      %p149 = por %p147, %p148
      %p150 = scmp.ne.s32.totalorder %s141, %s142
      %p151 = scmp.eq.s32.totalorder %s26, 0
      %p152 = por %p150, %p151
      %p153 = scmp.ne.s32.totalorder %s141, %s142
      %p154 = scmp.eq.s32.totalorder %s27, 1
      %p155 = por %p153, %p154
      %p157 = scmp.ne.s32.totalorder %s142, %s156
      %p158 = scmp.eq.s32.totalorder %s27, 0
      %p159 = por %p157, %p158
      %s161 = sadd.s32 %s160, 1
      %p164 = scmp.eq.s32.totalorder %s21, 1
      %p165 = scmp.ne.s32.totalorder %s160, %s162
      %p166 = scmp.eq.s32.totalorder %s21, 0
      %p167 = por %p165, %p166
      %p168 = scmp.ne.s32.totalorder %s160, %s162
      %p169 = scmp.eq.s32.totalorder %s26, 1
      %p170 = por %p168, %p169
      %p171 = scmp.ne.s32.totalorder %s162, %s163
      %p172 = scmp.eq.s32.totalorder %s26, 0
      %p173 = por %p171, %p172
      %p174 = scmp.ne.s32.totalorder %s162, %s163
      %p175 = scmp.eq.s32.totalorder %s27, 1
      %p176 = por %p174, %p175
      %p178 = scmp.ne.s32.totalorder %s163, %s177
      %p179 = scmp.eq.s32.totalorder %s27, 0
      %p180 = por %p178, %p179
      %s181 = ssub.s32 %s21, %s28
      %p182 = scmp.eq.s32.totalorder %s181, 0
      %s184 = sadd.s32 %s183, 1
      %s185 = scalar_select %p182, %s183, %s184
      %p188 = pneg %p182
      %p189 = scmp.eq.s32.totalorder %s21, 1
      %p190 = por %p188, %p189
      %p191 = scmp.ne.s32.totalorder %s183, %s186
      %p192 = scmp.eq.s32.totalorder %s21, 0
      %p193 = por %p191, %p192
      %p194 = scmp.ne.s32.totalorder %s183, %s186
      %p195 = scmp.eq.s32.totalorder %s26, 1
      %p196 = por %p194, %p195
      %p197 = scmp.ne.s32.totalorder %s186, %s187
      %p198 = scmp.eq.s32.totalorder %s26, 0
      %p199 = por %p197, %p198
      %p200 = scmp.ne.s32.totalorder %s186, %s187
      %p201 = scmp.eq.s32.totalorder %s27, 1
      %p202 = por %p200, %p201
      %p204 = scmp.ne.s32.totalorder %s187, %s203
      %p205 = scmp.eq.s32.totalorder %s27, 0
      %p206 = por %p204, %p205
      %p207 = scmp.le.s32.totalorder 1, %s21
      %p208 = scmp.lt.s32.totalorder %s21, 3
      %p209 = pnand %p207, %p208
      %p210 = pneg %p209
      // Predicated region
      $region9: #{tpu_custom_call.1} parent=5 // pred_check
        _
      $region10: #{tpu_custom_call.1} parent=5 // pred_check_branch
        %212 = sbr.rel (%p209) target = $region12
      $region11: #{tpu_custom_call.1} parent=5 // pred_region
        %s213 = ssub.s32 %s21, 1
        // Predicated region
        $region13: #{tpu_custom_call.1} parent=11 // pred_check
          %p214 = pneg %p68
        $region14: #{tpu_custom_call.1} parent=11 // pred_check_branch
          %216 = sbr.rel (%p214) target = $region16
        $region15: #{tpu_custom_call.1} parent=11 // pred_region
          %s218 = ssub.s32 1024, 1024
          %219 = vsyncadd [#allocation6], %s218
          %s220 = sshll.u32 [#allocation5], 4
          %s221 = int_to_ptr.vmem [resolvable:$true] %s220
          %226 = dma.hbm_to_vmem [thread:$0]  %s1, 1024, %s221, [#allocation6], 64, 64, 4
        $region16: #{tpu_custom_call.1} parent=11 // pred_fallthru
          _
        // Predicated region
        $region17: #{tpu_custom_call.1} parent=11 // pred_check
          %p227 = pneg %p89
        $region18: #{tpu_custom_call.1} parent=11 // pred_check_branch
          %229 = sbr.rel (%p227) target = $region20
        $region19: #{tpu_custom_call.1} parent=11 // pred_region
          _
        $region20: #{tpu_custom_call.1} parent=11 // pred_fallthru
          _
        // Predicated region
        $region21: #{tpu_custom_call.1} parent=11 // pred_check
          %p230 = pneg %p110
        $region22: #{tpu_custom_call.1} parent=11 // pred_check_branch
          %232 = sbr.rel (%p230) target = $region24
        $region23: #{tpu_custom_call.1} parent=11 // pred_region
          %s234 = ssub.s32 9216, 9216
          %235 = vsyncadd [#allocation6], %s234
          %s236 = sshll.u32 [#allocation7], 4
          %s237 = int_to_ptr.vmem [resolvable:$true] %s236
          %242 = dma.hbm_to_vmem [thread:$0]  %s3, 9216, %s237, [#allocation6], 64, 64, 4
        $region24: #{tpu_custom_call.1} parent=11 // pred_fallthru
          _
        // Predicated region
        $region25: #{tpu_custom_call.1} parent=11 // pred_check
          %p243 = pneg %p131
        $region26: #{tpu_custom_call.1} parent=11 // pred_check_branch
          %245 = sbr.rel (%p243) target = $region28
        $region27: #{tpu_custom_call.1} parent=11 // pred_region
          %s247 = ssub.s32 256, 256
          %248 = vsyncadd [#allocation9], %s247
          %s249 = sshll.u32 [#allocation8], 4
          %s250 = int_to_ptr.vmem [resolvable:$true] %s249
          %255 = dma.hbm_to_vmem [thread:$0]  %s4, 256, %s250, [#allocation9], 128, 128, 8
        $region28: #{tpu_custom_call.1} parent=11 // pred_fallthru
          _
        // Predicated region
        $region29: #{tpu_custom_call.1} parent=11 // pred_check
          %p256 = pneg %p152
        $region30: #{tpu_custom_call.1} parent=11 // pred_check_branch
          %258 = sbr.rel (%p256) target = $region32
        $region31: #{tpu_custom_call.1} parent=11 // pred_region
          %s260 = ssub.s32 1024, 1024
          %261 = vsyncadd [#allocation9], %s260
          %s262 = sshll.u32 [#allocation10], 4
          %s263 = int_to_ptr.vmem [resolvable:$true] %s262
          %268 = dma.hbm_to_vmem [thread:$0]  %s5, 1024, %s263, [#allocation9], 64, 64, 4
        $region32: #{tpu_custom_call.1} parent=11 // pred_fallthru
          _
        // Predicated region
        $region33: #{tpu_custom_call.1} parent=11 // pred_check
          %p269 = pneg %p173
        $region34: #{tpu_custom_call.1} parent=11 // pred_check_branch
          %271 = sbr.rel (%p269) target = $region36
        $region35: #{tpu_custom_call.1} parent=11 // pred_region
          _
        $region36: #{tpu_custom_call.1} parent=11 // pred_fallthru
          _
      $region12: #{tpu_custom_call.1} parent=5 // pred_fallthru
        _
      %p272 = scmp.lt.s32.totalorder %s21, 2
      // Predicated region
      $region37: #{tpu_custom_call.1} parent=5 // pred_check
        %p273 = pneg %p272
      $region38: #{tpu_custom_call.1} parent=5 // pred_check_branch
        %275 = sbr.rel (%p273) target = $region40
      $region39: #{tpu_custom_call.1} parent=5 // pred_region
        // Predicated region
        $region41: #{tpu_custom_call.1} parent=39 // pred_check
          %p276 = pneg %p41
        $region42: #{tpu_custom_call.1} parent=39 // pred_check_branch
          %278 = sbr.rel (%p276) target = $region44
        $region43: #{tpu_custom_call.1} parent=39 // pred_region
          %s279 = sand.u32 %s31, 1
          %s280 = scalar_lea.sflag [#allocation3], %s279
          %s281 = sand.u32 %s31, 1
          %s282 = smul.addr %s281, 160
          %s283 = scalar_lea.vmem [#allocation2], %s282
          %s284 = smul.u32 20, %s21
          %s286 = ssub.s32 2560, 2560
          %287 = vsyncadd %s280, %s286
          %s288 = smul.addr %s284, 128
          %s289 = scalar_lea.hbm %s0, %s288
          %s290 = sshll.u32 %s283, 4
          %s291 = int_to_ptr.vmem [resolvable:$true] %s290
          %296 = dma.hbm_to_vmem [thread:$0]  %s289, 2560, %s291, %s280, 128, 128, 8
        $region44: #{tpu_custom_call.1} parent=39 // pred_fallthru
          _
      $region40: #{tpu_custom_call.1} parent=5 // pred_fallthru
        _
      %p297 = scmp.le.s32.totalorder 1, %s21
      %p298 = scmp.lt.s32.totalorder %s21, 3
      %p299 = pnand %p297, %p298
      %p300 = pneg %p299
      // Predicated region
      $region45: #{tpu_custom_call.1} parent=5 // pred_check
        _
      $region46: #{tpu_custom_call.1} parent=5 // pred_check_branch
        %302 = sbr.rel (%p299) target = $region48
      $region47: #{tpu_custom_call.1} parent=5 // pred_region
        %s303 = ssub.s32 %s21, 1
        %s304 = sand.u32 %s34, 1
        %s305 = scalar_lea.sflag [#allocation3], %s304
        %s306 = sand.u32 %s34, 1
        %s307 = smul.addr %s306, 160
        %s308 = scalar_lea.vmem [#allocation2], %s307
        // Predicated region
        $region49: #{tpu_custom_call.1} parent=47 // pred_check
          %p309 = pneg %p47
        $region50: #{tpu_custom_call.1} parent=47 // pred_check_branch
          %311 = sbr.rel (%p309) target = $region52
        $region51: #{tpu_custom_call.1} parent=47 // pred_region
          %312 = dma.done %s305, 2560
        $region52: #{tpu_custom_call.1} parent=47 // pred_fallthru
          _
        // Predicated region
        $region53: #{tpu_custom_call.1} parent=47 // pred_check
          %p313 = pneg %p68
        $region54: #{tpu_custom_call.1} parent=47 // pred_check_branch
          %315 = sbr.rel (%p313) target = $region56
        $region55: #{tpu_custom_call.1} parent=47 // pred_region
          %316 = dma.done [#allocation6], 1024
        $region56: #{tpu_custom_call.1} parent=47 // pred_fallthru
          _
        // Predicated region
        $region57: #{tpu_custom_call.1} parent=47 // pred_check
          %p317 = pneg %p110
        $region58: #{tpu_custom_call.1} parent=47 // pred_check_branch
          %319 = sbr.rel (%p317) target = $region60
        $region59: #{tpu_custom_call.1} parent=47 // pred_region
          %320 = dma.done [#allocation6], 9216
        $region60: #{tpu_custom_call.1} parent=47 // pred_fallthru
          _
        // Predicated region
        $region61: #{tpu_custom_call.1} parent=47 // pred_check
          %p321 = pneg %p131
        $region62: #{tpu_custom_call.1} parent=47 // pred_check_branch
          %323 = sbr.rel (%p321) target = $region64
        $region63: #{tpu_custom_call.1} parent=47 // pred_region
          %324 = dma.done [#allocation9], 256
        $region64: #{tpu_custom_call.1} parent=47 // pred_fallthru
          _
        // Predicated region
        $region65: #{tpu_custom_call.1} parent=47 // pred_check
          %p325 = pneg %p152
        $region66: #{tpu_custom_call.1} parent=47 // pred_check_branch
          %327 = sbr.rel (%p325) target = $region68
        $region67: #{tpu_custom_call.1} parent=47 // pred_region
          %328 = dma.done [#allocation9], 1024
        $region68: #{tpu_custom_call.1} parent=47 // pred_fallthru
          _
        %s329 = sand.u32 %s34, 1
        %s330 = scalar_lea.sflag [#allocation3], %s329
        %s331 = sand.u32 %s34, 1
        %s332 = smul.addr %s331, 160
        %s333 = scalar_lea.vmem [#allocation2], %s332
        %p334 = pneg %p47
        %p335 = pneg %p44
        %p336 = pneg %p68
        %p337 = pneg %p65
        %p338 = pneg %p89
        %p339 = pneg %p86
        %p340 = pneg %p110
        %p341 = pneg %p107
        %p342 = pneg %p131
        %p343 = pneg %p128
        %p344 = pneg %p152
        %p345 = pneg %p149
        %p346 = pneg %p173
        %p347 = pneg %p170
        %p348 = pneg %p199
        %p349 = pneg %p196
        %s350 = sand.u32 %s186, 1
        %s351 = scalar_lea.sflag [#allocation4], %s350
        %s352 = sand.u32 %s186, 1
        %s353 = smul.addr %s352, 160
        %s354 = scalar_lea.vmem [#allocation11], %s353
        %s355 = smul.u32 20, %s26
        %s356 = smul.u32 20, %s26
        %v358 = vld [vmem:[#allocation5] sm:$0xf]
        %v359 = vld [vmem:[#allocation5 + $0x4] sm:$0xf]
        %v360 = vld [vmem:[#allocation5 + $0x8] sm:$0xf]
        %v361 = vld [vmem:[#allocation5 + $0xc] sm:$0xf]
        %v362 = vld [vmem:[#allocation5 + $0x10] sm:$0xf]
        %v363 = vld [vmem:[#allocation5 + $0x14] sm:$0xf]
        %v364 = vld [vmem:[#allocation5 + $0x18] sm:$0xf]
        %v365 = vld [vmem:[#allocation5 + $0x1c] sm:$0xf]
        %v366 = vld [vmem:[#allocation5 + $0x20] sm:$0xf]
        %v367 = vld [vmem:[#allocation5 + $0x24] sm:$0xf]
        %v368 = vld [vmem:[#allocation5 + $0x28] sm:$0xf]
        %v369 = vld [vmem:[#allocation5 + $0x2c] sm:$0xf]
        %v370 = vld [vmem:[#allocation5 + $0x30] sm:$0xf]
        %v371 = vld [vmem:[#allocation5 + $0x34] sm:$0xf]
        %v372 = vld [vmem:[#allocation5 + $0x38] sm:$0xf]
        %v373 = vld [vmem:[#allocation5 + $0x3c] sm:$0xf]
        %v374 = vld [vmem:[%s2] sm:$0x1]
        %v375 = vld [vmem:[%s308] sm:$0xff]
        %v376 = vld [vmem:[%s308 + $0x8] sm:$0xff]
        %v377 = vld [vmem:[%s308 + $0x10] sm:$0xff]
        %v378 = vld [vmem:[%s308 + $0x18] sm:$0xff]
        %v379 = vld [vmem:[%s308 + $0x20] sm:$0xff]
        %v380 = vld [vmem:[%s308 + $0x28] sm:$0xff]
        %v381 = vld [vmem:[%s308 + $0x30] sm:$0xff]
        %v382 = vld [vmem:[%s308 + $0x38] sm:$0xff]
        %v383 = vld [vmem:[%s308 + $0x40] sm:$0xff]
        %v384 = vld [vmem:[%s308 + $0x48] sm:$0xff]
        %v385 = vpack.c.bf16 %v376, %v375
        %v386 = vpack.c.bf16 %v378, %v377
        %v387 = vpack.c.bf16 %v380, %v379
        %v388 = vpack.c.bf16 %v382, %v381
        %v389 = vpack.c.bf16 %v384, %v383
        %v391 = vlaneseq
        %v392 = vshrl.u32 %v391, 7
        %v393 = vsub.s32 0, %v392
        %v394 = vrot.slane %v374, %v393
        %v412 = vunpack.c.l.b16 %v358
        %v413 = vunpack.c.l.b16 %v359
        %v414 = vunpack.c.l.b16 %v360
        %v415 = vunpack.c.l.b16 %v361
        %v416 = vunpack.c.l.b16 %v362
        %v417 = vunpack.c.l.b16 %v363
        %v418 = vunpack.c.l.b16 %v364
        %v419 = vunpack.c.l.b16 %v365
        %v420 = vunpack.c.l.b16 %v366
        %v421 = vunpack.c.l.b16 %v367
        %v422 = vunpack.c.l.b16 %v368
        %v423 = vunpack.c.l.b16 %v369
        %v424 = vunpack.c.l.b16 %v370
        %v425 = vunpack.c.l.b16 %v371
        %v426 = vunpack.c.l.b16 %v372
        %v427 = vunpack.c.l.b16 %v373
        %v428 = vpack.c.b16 %v413, %v412
        %v429 = vpack.c.b16 %v415, %v414
        %v430 = vpack.c.b16 %v417, %v416
        %v431 = vpack.c.b16 %v419, %v418
        %v432 = vpack.c.b16 %v421, %v420
        %v433 = vpack.c.b16 %v423, %v422
        %v434 = vpack.c.b16 %v425, %v424
        %v435 = vpack.c.b16 %v427, %v426
        %444 = vmatprep.subr.bf16.mxu0 0
        %445 = vmatpush1.bf16.msra.mxu0 %v435
        %446 = vmatprep.subr.bf16.mxu0 0
        %447 = vmatpush1.bf16.msra.mxu0 %v434
        %448 = vmatprep.subr.bf16.mxu0 0
        %449 = vmatpush1.bf16.msra.mxu0 %v433
        %450 = vmatprep.subr.bf16.mxu0 0
        %451 = vmatpush1.bf16.msra.mxu0 %v432
        %452 = vmatprep.subr.bf16.mxu0 0
        %453 = vmatpush1.bf16.msra.mxu0 %v431
        %454 = vmatprep.subr.bf16.mxu0 0
        %455 = vmatpush1.bf16.msra.mxu0 %v430
        %456 = vmatprep.subr.bf16.mxu0 0
        %457 = vmatpush1.bf16.msra.mxu0 %v429
        %458 = vmatprep.subr.bf16.mxu0 0
        %459 = vmatpush1.bf16.msra.mxu0 %v428
        %460 = vmatprep.subr.bf16.mxu0 0
        %461 = vmatpush2.bf16.msra.mxu0 0
        %462 = vmatprep.subr.bf16.mxu0 0
        %463 = vmatpush2.bf16.msra.mxu0 0
        %464 = vmatprep.subr.bf16.mxu0 0
        %465 = vmatpush2.bf16.msra.mxu0 0
        %466 = vmatprep.subr.bf16.mxu0 0
        %467 = vmatpush2.bf16.msra.mxu0 0
        %468 = vmatprep.subr.bf16.mxu0 0
        %469 = vmatpush2.bf16.msra.mxu0 0
        %470 = vmatprep.subr.bf16.mxu0 0
        %471 = vmatpush2.bf16.msra.mxu0 0
        %472 = vmatprep.subr.bf16.mxu0 0
        %473 = vmatpush2.bf16.msra.mxu0 0
        %474 = vmatprep.subr.bf16.mxu0 0
        %475 = vmatpush2.bf16.msra.mxu0 0
        %476 = vmatprep.mubr.bf16.mxu0 0
        %477 = vmatmul.mubr.bf16.gmra.mxu0 %v385
        %v478 = vpop.f32.mrf.mxu0
        %v479 = vadd.f32 %v394, %v478
        %v480 = vpop.f32.mrf.mxu0
        %v481 = vpop.f32.mrf.mxu0
        %v482 = vadd.f32 %v394, %v481
        %v483 = vpop.f32.mrf.mxu0
        %484 = vmatprep.mubr.bf16.mxu0 0
        %485 = vmatmul.mubr.bf16.gmra.mxu0 %v386
        %v486 = vpop.f32.mrf.mxu0
        %v487 = vadd.f32 %v394, %v486
        %v488 = vpop.f32.mrf.mxu0
        %v489 = vpop.f32.mrf.mxu0
        %v490 = vadd.f32 %v394, %v489
        %v491 = vpop.f32.mrf.mxu0
        %492 = vmatprep.mubr.bf16.mxu0 0
        %493 = vmatmul.mubr.bf16.gmra.mxu0 %v387
        %v494 = vpop.f32.mrf.mxu0
        %v495 = vadd.f32 %v394, %v494
        %v496 = vpop.f32.mrf.mxu0
        %v497 = vpop.f32.mrf.mxu0
        %v498 = vadd.f32 %v394, %v497
        %v499 = vpop.f32.mrf.mxu0
        %500 = vmatprep.mubr.bf16.mxu0 0
        %501 = vmatmul.mubr.bf16.gmra.mxu0 %v388
        %v502 = vpop.f32.mrf.mxu0
        %v503 = vadd.f32 %v394, %v502
        %v504 = vpop.f32.mrf.mxu0
        %v505 = vpop.f32.mrf.mxu0
        %v506 = vadd.f32 %v394, %v505
        %v507 = vpop.f32.mrf.mxu0
        %508 = vmatprep.mubr.bf16.mxu0 0
        %509 = vmatmul.mubr.bf16.gmra.mxu0 %v389
        %v510 = vpop.f32.mrf.mxu0
        %v511 = vadd.f32 %v394, %v510
        %v512 = vpop.f32.mrf.mxu0
        %v513 = vpop.f32.mrf.mxu0
        %v514 = vadd.f32 %v394, %v513
        %v515 = vpop.f32.mrf.mxu0
        %516 = vdwg.mxu0
        %v517 = vmax.f32 %v479, 0.0
        %v518 = vmax.f32 %v482, 0.0
        %v519 = vmax.f32 %v487, 0.0
        %v520 = vmax.f32 %v490, 0.0
        %v521 = vmax.f32 %v495, 0.0
        %v522 = vmax.f32 %v498, 0.0
        %v523 = vmax.f32 %v503, 0.0
        %v524 = vmax.f32 %v506, 0.0
        %v525 = vmax.f32 %v511, 0.0
        %v526 = vmax.f32 %v514, 0.0
        %v527 = vld [vmem:[%s308 + $0x50] sm:$0xff]
        %v528 = vld [vmem:[%s308 + $0x58] sm:$0xff]
        %v529 = vld [vmem:[%s308 + $0x60] sm:$0xff]
        %v530 = vld [vmem:[%s308 + $0x68] sm:$0xff]
        %v531 = vld [vmem:[%s308 + $0x70] sm:$0xff]
        %v532 = vld [vmem:[%s308 + $0x78] sm:$0xff]
        %v533 = vld [vmem:[%s308 + $0x80] sm:$0xff]
        %v534 = vld [vmem:[%s308 + $0x88] sm:$0xff]
        %v535 = vld [vmem:[%s308 + $0x90] sm:$0xff]
        %v536 = vld [vmem:[%s308 + $0x98] sm:$0xff]
        %v537 = vpack.c.bf16 %v528, %v527
        %v538 = vpack.c.bf16 %v530, %v529
        %v539 = vpack.c.bf16 %v532, %v531
        %v540 = vpack.c.bf16 %v534, %v533
        %v541 = vpack.c.bf16 %v536, %v535
        %542 = vmatprep.subr.bf16.mxu0 0
        %543 = vmatpush1.bf16.msra.mxu0 %v435
        %544 = vmatprep.subr.bf16.mxu0 0
        %545 = vmatpush1.bf16.msra.mxu0 %v434
        %546 = vmatprep.subr.bf16.mxu0 0
        %547 = vmatpush1.bf16.msra.mxu0 %v433
        %548 = vmatprep.subr.bf16.mxu0 0
        %549 = vmatpush1.bf16.msra.mxu0 %v432
        %550 = vmatprep.subr.bf16.mxu0 0
        %551 = vmatpush1.bf16.msra.mxu0 %v431
        %552 = vmatprep.subr.bf16.mxu0 0
        %553 = vmatpush1.bf16.msra.mxu0 %v430
        %554 = vmatprep.subr.bf16.mxu0 0
        %555 = vmatpush1.bf16.msra.mxu0 %v429
        %556 = vmatprep.subr.bf16.mxu0 0
        %557 = vmatpush1.bf16.msra.mxu0 %v428
        %558 = vmatprep.subr.bf16.mxu0 0
        %559 = vmatpush2.bf16.msra.mxu0 0
        %560 = vmatprep.subr.bf16.mxu0 0
        %561 = vmatpush2.bf16.msra.mxu0 0
        %562 = vmatprep.subr.bf16.mxu0 0
        %563 = vmatpush2.bf16.msra.mxu0 0
        %564 = vmatprep.subr.bf16.mxu0 0
        %565 = vmatpush2.bf16.msra.mxu0 0
        %566 = vmatprep.subr.bf16.mxu0 0
        %567 = vmatpush2.bf16.msra.mxu0 0
        %568 = vmatprep.subr.bf16.mxu0 0
        %569 = vmatpush2.bf16.msra.mxu0 0
        %570 = vmatprep.subr.bf16.mxu0 0
        %571 = vmatpush2.bf16.msra.mxu0 0
        %572 = vmatprep.subr.bf16.mxu0 0
        %573 = vmatpush2.bf16.msra.mxu0 0
        %574 = vmatprep.mubr.bf16.mxu0 0
        %575 = vmatmul.mubr.bf16.gmra.mxu0 %v537
        %v576 = vpop.f32.mrf.mxu0
        %v577 = vadd.f32 %v394, %v576
        %v578 = vpop.f32.mrf.mxu0
        %v579 = vpop.f32.mrf.mxu0
        %v580 = vadd.f32 %v394, %v579
        %v581 = vpop.f32.mrf.mxu0
        %582 = vmatprep.mubr.bf16.mxu0 0
        %583 = vmatmul.mubr.bf16.gmra.mxu0 %v538
        %v584 = vpop.f32.mrf.mxu0
        %v585 = vadd.f32 %v394, %v584
        %v586 = vpop.f32.mrf.mxu0
        %v587 = vpop.f32.mrf.mxu0
        %v588 = vadd.f32 %v394, %v587
        %v589 = vpop.f32.mrf.mxu0
        %590 = vmatprep.mubr.bf16.mxu0 0
        %591 = vmatmul.mubr.bf16.gmra.mxu0 %v539
        %v592 = vpop.f32.mrf.mxu0
        %v593 = vadd.f32 %v394, %v592
        %v594 = vpop.f32.mrf.mxu0
        %v595 = vpop.f32.mrf.mxu0
        %v596 = vadd.f32 %v394, %v595
        %v597 = vpop.f32.mrf.mxu0
        %598 = vmatprep.mubr.bf16.mxu0 0
        %599 = vmatmul.mubr.bf16.gmra.mxu0 %v540
        %v600 = vpop.f32.mrf.mxu0
        %v601 = vadd.f32 %v394, %v600
        %v602 = vpop.f32.mrf.mxu0
        %v603 = vpop.f32.mrf.mxu0
        %v604 = vadd.f32 %v394, %v603
        %v605 = vpop.f32.mrf.mxu0
        %606 = vmatprep.mubr.bf16.mxu0 0
        %607 = vmatmul.mubr.bf16.gmra.mxu0 %v541
        %v608 = vpop.f32.mrf.mxu0
        %v609 = vadd.f32 %v394, %v608
        %v610 = vpop.f32.mrf.mxu0
        %v611 = vpop.f32.mrf.mxu0
        %v612 = vadd.f32 %v394, %v611
        %v613 = vpop.f32.mrf.mxu0
        %614 = vdwg.mxu0
        %v615 = vmax.f32 %v577, 0.0
        %v616 = vmax.f32 %v580, 0.0
        %v617 = vmax.f32 %v585, 0.0
        %v618 = vmax.f32 %v588, 0.0
        %v619 = vmax.f32 %v593, 0.0
        %v620 = vmax.f32 %v596, 0.0
        %v621 = vmax.f32 %v601, 0.0
        %v622 = vmax.f32 %v604, 0.0
        %v623 = vmax.f32 %v609, 0.0
        %v624 = vmax.f32 %v612, 0.0
        %v625 = vld [vmem:[#allocation7] sm:$0xf]
        %v626 = vld [vmem:[#allocation7 + $0x4] sm:$0xf]
        %v627 = vld [vmem:[#allocation7 + $0x8] sm:$0xf]
        %v628 = vld [vmem:[#allocation7 + $0xc] sm:$0xf]
        %v629 = vld [vmem:[#allocation7 + $0x10] sm:$0xf]
        %v630 = vld [vmem:[#allocation7 + $0x14] sm:$0xf]
        %v631 = vld [vmem:[#allocation7 + $0x18] sm:$0xf]
        %v632 = vld [vmem:[#allocation7 + $0x1c] sm:$0xf]
        %v633 = vld [vmem:[#allocation7 + $0x20] sm:$0xf]
        %v634 = vld [vmem:[#allocation7 + $0x24] sm:$0xf]
        %v635 = vld [vmem:[#allocation7 + $0x28] sm:$0xf]
        %v636 = vld [vmem:[#allocation7 + $0x2c] sm:$0xf]
        %v637 = vld [vmem:[#allocation7 + $0x30] sm:$0xf]
        %v638 = vld [vmem:[#allocation7 + $0x34] sm:$0xf]
        %v639 = vld [vmem:[#allocation7 + $0x38] sm:$0xf]
        %v640 = vld [vmem:[#allocation7 + $0x3c] sm:$0xf]
        %v641 = vld [vmem:[#allocation8] sm:$0x1]
        %v642 = vpack.c.bf16 %v518, %v517
        %v643 = vpack.c.bf16 %v520, %v519
        %v644 = vpack.c.bf16 %v522, %v521
        %v645 = vpack.c.bf16 %v524, %v523
        %v646 = vpack.c.bf16 %v526, %v525
        %v647 = vpack.c.bf16 %v616, %v615
        %v648 = vpack.c.bf16 %v618, %v617
        %v649 = vpack.c.bf16 %v620, %v619
        %v650 = vpack.c.bf16 %v622, %v621
        %v651 = vpack.c.bf16 %v624, %v623
        %v652 = vlaneseq
        %v653 = vshrl.u32 %v652, 7
        %v654 = vsub.s32 0, %v653
        %v655 = vrot.slane %v641, %v654
        %v672 = vunpack.c.l.b16 %v625
        %v673 = vunpack.c.l.b16 %v626
        %v674 = vunpack.c.l.b16 %v627
        %v675 = vunpack.c.l.b16 %v628
        %v676 = vunpack.c.l.b16 %v629
        %v677 = vunpack.c.l.b16 %v630
        %v678 = vunpack.c.l.b16 %v631
        %v679 = vunpack.c.l.b16 %v632
        %v680 = vunpack.c.l.b16 %v633
        %v681 = vunpack.c.l.b16 %v634
        %v682 = vunpack.c.l.b16 %v635
        %v683 = vunpack.c.l.b16 %v636
        %v684 = vunpack.c.l.b16 %v637
        %v685 = vunpack.c.l.b16 %v638
        %v686 = vunpack.c.l.b16 %v639
        %v687 = vunpack.c.l.b16 %v640
        %v688 = vpack.c.b16 %v673, %v672
        %v689 = vpack.c.b16 %v675, %v674
        %v690 = vpack.c.b16 %v677, %v676
        %v691 = vpack.c.b16 %v679, %v678
        %v692 = vpack.c.b16 %v681, %v680
        %v693 = vpack.c.b16 %v683, %v682
        %v694 = vpack.c.b16 %v685, %v684
        %v695 = vpack.c.b16 %v687, %v686
        %704 = vmatprep.subr.bf16.mxu0 0
        %705 = vmatpush1.bf16.msra.mxu0 %v695
        %706 = vmatprep.subr.bf16.mxu0 0
        %707 = vmatpush1.bf16.msra.mxu0 %v694
        %708 = vmatprep.subr.bf16.mxu0 0
        %709 = vmatpush1.bf16.msra.mxu0 %v693
        %710 = vmatprep.subr.bf16.mxu0 0
        %711 = vmatpush1.bf16.msra.mxu0 %v692
        %712 = vmatprep.subr.bf16.mxu0 0
        %713 = vmatpush1.bf16.msra.mxu0 %v691
        %714 = vmatprep.subr.bf16.mxu0 0
        %715 = vmatpush1.bf16.msra.mxu0 %v690
        %716 = vmatprep.subr.bf16.mxu0 0
        %717 = vmatpush1.bf16.msra.mxu0 %v689
        %718 = vmatprep.subr.bf16.mxu0 0
        %719 = vmatpush1.bf16.msra.mxu0 %v688
        %720 = vmatprep.subr.bf16.mxu0 0
        %721 = vmatpush2.bf16.msra.mxu0 0
        %722 = vmatprep.subr.bf16.mxu0 0
        %723 = vmatpush2.bf16.msra.mxu0 0
        %724 = vmatprep.subr.bf16.mxu0 0
        %725 = vmatpush2.bf16.msra.mxu0 0
        %726 = vmatprep.subr.bf16.mxu0 0
        %727 = vmatpush2.bf16.msra.mxu0 0
        %728 = vmatprep.subr.bf16.mxu0 0
        %729 = vmatpush2.bf16.msra.mxu0 0
        %730 = vmatprep.subr.bf16.mxu0 0
        %731 = vmatpush2.bf16.msra.mxu0 0
        %732 = vmatprep.subr.bf16.mxu0 0
        %733 = vmatpush2.bf16.msra.mxu0 0
        %734 = vmatprep.subr.bf16.mxu0 0
        %735 = vmatpush2.bf16.msra.mxu0 0
        %736 = vmatprep.mubr.bf16.mxu0 0
        %737 = vmatmul.mubr.bf16.gmra.mxu0 %v642
        %v738 = vpop.f32.mrf.mxu0
        %v739 = vadd.f32 %v655, %v738
        %v740 = vpop.f32.mrf.mxu0
        %v741 = vpop.f32.mrf.mxu0
        %v742 = vadd.f32 %v655, %v741
        %v743 = vpop.f32.mrf.mxu0
        %744 = vmatprep.mubr.bf16.mxu0 0
        %745 = vmatmul.mubr.bf16.gmra.mxu0 %v643
        %v746 = vpop.f32.mrf.mxu0
        %v747 = vadd.f32 %v655, %v746
        %v748 = vpop.f32.mrf.mxu0
        %v749 = vpop.f32.mrf.mxu0
        %v750 = vadd.f32 %v655, %v749
        %v751 = vpop.f32.mrf.mxu0
        %752 = vmatprep.mubr.bf16.mxu0 0
        %753 = vmatmul.mubr.bf16.gmra.mxu0 %v644
        %v754 = vpop.f32.mrf.mxu0
        %v755 = vadd.f32 %v655, %v754
        %v756 = vpop.f32.mrf.mxu0
        %v757 = vpop.f32.mrf.mxu0
        %v758 = vadd.f32 %v655, %v757
        %v759 = vpop.f32.mrf.mxu0
        %760 = vmatprep.mubr.bf16.mxu0 0
        %761 = vmatmul.mubr.bf16.gmra.mxu0 %v645
        %v762 = vpop.f32.mrf.mxu0
        %v763 = vadd.f32 %v655, %v762
        %v764 = vpop.f32.mrf.mxu0
        %v765 = vpop.f32.mrf.mxu0
        %v766 = vadd.f32 %v655, %v765
        %v767 = vpop.f32.mrf.mxu0
        %768 = vmatprep.mubr.bf16.mxu0 0
        %769 = vmatmul.mubr.bf16.gmra.mxu0 %v646
        %v770 = vpop.f32.mrf.mxu0
        %v771 = vadd.f32 %v655, %v770
        %v772 = vpop.f32.mrf.mxu0
        %v773 = vpop.f32.mrf.mxu0
        %v774 = vadd.f32 %v655, %v773
        %v775 = vpop.f32.mrf.mxu0
        %776 = vdwg.mxu0
        %v777 = vmax.f32 %v739, 0.0
        %v778 = vmax.f32 %v742, 0.0
        %v779 = vmax.f32 %v747, 0.0
        %v780 = vmax.f32 %v750, 0.0
        %v781 = vmax.f32 %v755, 0.0
        %v782 = vmax.f32 %v758, 0.0
        %v783 = vmax.f32 %v763, 0.0
        %v784 = vmax.f32 %v766, 0.0
        %v785 = vmax.f32 %v771, 0.0
        %v786 = vmax.f32 %v774, 0.0
        %v787 = vadd.f32 %v777, %v517
        %v788 = vadd.f32 %v778, %v518
        %v789 = vadd.f32 %v779, %v519
        %v790 = vadd.f32 %v780, %v520
        %v791 = vadd.f32 %v781, %v521
        %v792 = vadd.f32 %v782, %v522
        %v793 = vadd.f32 %v783, %v523
        %v794 = vadd.f32 %v784, %v524
        %v795 = vadd.f32 %v785, %v525
        %v796 = vadd.f32 %v786, %v526
        %797 = vmatprep.subr.bf16.mxu0 0
        %798 = vmatpush1.bf16.msra.mxu0 %v695
        %799 = vmatprep.subr.bf16.mxu0 0
        %800 = vmatpush1.bf16.msra.mxu0 %v694
        %801 = vmatprep.subr.bf16.mxu0 0
        %802 = vmatpush1.bf16.msra.mxu0 %v693
        %803 = vmatprep.subr.bf16.mxu0 0
        %804 = vmatpush1.bf16.msra.mxu0 %v692
        %805 = vmatprep.subr.bf16.mxu0 0
        %806 = vmatpush1.bf16.msra.mxu0 %v691
        %807 = vmatprep.subr.bf16.mxu0 0
        %808 = vmatpush1.bf16.msra.mxu0 %v690
        %809 = vmatprep.subr.bf16.mxu0 0
        %810 = vmatpush1.bf16.msra.mxu0 %v689
        %811 = vmatprep.subr.bf16.mxu0 0
        %812 = vmatpush1.bf16.msra.mxu0 %v688
        %813 = vmatprep.subr.bf16.mxu0 0
        %814 = vmatpush2.bf16.msra.mxu0 0
        %815 = vmatprep.subr.bf16.mxu0 0
        %816 = vmatpush2.bf16.msra.mxu0 0
        %817 = vmatprep.subr.bf16.mxu0 0
        %818 = vmatpush2.bf16.msra.mxu0 0
        %819 = vmatprep.subr.bf16.mxu0 0
        %820 = vmatpush2.bf16.msra.mxu0 0
        %821 = vmatprep.subr.bf16.mxu0 0
        %822 = vmatpush2.bf16.msra.mxu0 0
        %823 = vmatprep.subr.bf16.mxu0 0
        %824 = vmatpush2.bf16.msra.mxu0 0
        %825 = vmatprep.subr.bf16.mxu0 0
        %826 = vmatpush2.bf16.msra.mxu0 0
        %827 = vmatprep.subr.bf16.mxu0 0
        %828 = vmatpush2.bf16.msra.mxu0 0
        %829 = vmatprep.mubr.bf16.mxu0 0
        %830 = vmatmul.mubr.bf16.gmra.mxu0 %v647
        %v831 = vpop.f32.mrf.mxu0
        %v832 = vadd.f32 %v655, %v831
        %v833 = vpop.f32.mrf.mxu0
        %v834 = vpop.f32.mrf.mxu0
        %v835 = vadd.f32 %v655, %v834
        %v836 = vpop.f32.mrf.mxu0
        %837 = vmatprep.mubr.bf16.mxu0 0
        %838 = vmatmul.mubr.bf16.gmra.mxu0 %v648
        %v839 = vpop.f32.mrf.mxu0
        %v840 = vadd.f32 %v655, %v839
        %v841 = vpop.f32.mrf.mxu0
        %v842 = vpop.f32.mrf.mxu0
        %v843 = vadd.f32 %v655, %v842
        %v844 = vpop.f32.mrf.mxu0
        %845 = vmatprep.mubr.bf16.mxu0 0
        %846 = vmatmul.mubr.bf16.gmra.mxu0 %v649
        %v847 = vpop.f32.mrf.mxu0
        %v848 = vadd.f32 %v655, %v847
        %v849 = vpop.f32.mrf.mxu0
        %v850 = vpop.f32.mrf.mxu0
        %v851 = vadd.f32 %v655, %v850
        %v852 = vpop.f32.mrf.mxu0
        %853 = vmatprep.mubr.bf16.mxu0 0
        %854 = vmatmul.mubr.bf16.gmra.mxu0 %v650
        %v855 = vpop.f32.mrf.mxu0
        %v856 = vadd.f32 %v655, %v855
        %v857 = vpop.f32.mrf.mxu0
        %v858 = vpop.f32.mrf.mxu0
        %v859 = vadd.f32 %v655, %v858
        %v860 = vpop.f32.mrf.mxu0
        %861 = vmatprep.mubr.bf16.mxu0 0
        %862 = vmatmul.mubr.bf16.gmra.mxu0 %v651
        %v863 = vpop.f32.mrf.mxu0
        %v864 = vadd.f32 %v655, %v863
        %v865 = vpop.f32.mrf.mxu0
        %v866 = vpop.f32.mrf.mxu0
        %v867 = vadd.f32 %v655, %v866
        %v868 = vpop.f32.mrf.mxu0
        %869 = vdwg.mxu0
        %v870 = vmax.f32 %v832, 0.0
        %v871 = vmax.f32 %v835, 0.0
        %v872 = vmax.f32 %v840, 0.0
        %v873 = vmax.f32 %v843, 0.0
        %v874 = vmax.f32 %v848, 0.0
        %v875 = vmax.f32 %v851, 0.0
        %v876 = vmax.f32 %v856, 0.0
        %v877 = vmax.f32 %v859, 0.0
        %v878 = vmax.f32 %v864, 0.0
        %v879 = vmax.f32 %v867, 0.0
        %v880 = vadd.f32 %v870, %v615
        %v881 = vadd.f32 %v871, %v616
        %v882 = vadd.f32 %v872, %v617
        %v883 = vadd.f32 %v873, %v618
        %v884 = vadd.f32 %v874, %v619
        %v885 = vadd.f32 %v875, %v620
        %v886 = vadd.f32 %v876, %v621
        %v887 = vadd.f32 %v877, %v622
        %v888 = vadd.f32 %v878, %v623
        %v889 = vadd.f32 %v879, %v624
        %s890 = scalar_lea.vmem [#allocation7], 64
        %v891 = vld [vmem:[%s890] sm:$0xf]
        %v892 = vld [vmem:[%s890 + $0x4] sm:$0xf]
        %v893 = vld [vmem:[%s890 + $0x8] sm:$0xf]
        %v894 = vld [vmem:[%s890 + $0xc] sm:$0xf]
        %v895 = vld [vmem:[%s890 + $0x10] sm:$0xf]
        %v896 = vld [vmem:[%s890 + $0x14] sm:$0xf]
        %v897 = vld [vmem:[%s890 + $0x18] sm:$0xf]
        %v898 = vld [vmem:[%s890 + $0x1c] sm:$0xf]
        %v899 = vld [vmem:[%s890 + $0x20] sm:$0xf]
        %v900 = vld [vmem:[%s890 + $0x24] sm:$0xf]
        %v901 = vld [vmem:[%s890 + $0x28] sm:$0xf]
        %v902 = vld [vmem:[%s890 + $0x2c] sm:$0xf]
        %v903 = vld [vmem:[%s890 + $0x30] sm:$0xf]
        %v904 = vld [vmem:[%s890 + $0x34] sm:$0xf]
        %v905 = vld [vmem:[%s890 + $0x38] sm:$0xf]
        %v906 = vld [vmem:[%s890 + $0x3c] sm:$0xf]
        %v907 = vld [vmem:[#allocation8 + $0x1] sm:$0x1]
        %v908 = vpack.c.bf16 %v788, %v787
        %v909 = vpack.c.bf16 %v790, %v789
        %v910 = vpack.c.bf16 %v792, %v791
        %v911 = vpack.c.bf16 %v794, %v793
        %v912 = vpack.c.bf16 %v796, %v795
        %v913 = vpack.c.bf16 %v881, %v880
        %v914 = vpack.c.bf16 %v883, %v882
        %v915 = vpack.c.bf16 %v885, %v884
        %v916 = vpack.c.bf16 %v887, %v886
        %v917 = vpack.c.bf16 %v889, %v888
        %v918 = vlaneseq
        %v919 = vshrl.u32 %v918, 7
        %v920 = vsub.s32 0, %v919
        %v921 = vrot.slane %v907, %v920
        %v938 = vunpack.c.l.b16 %v891
        %v939 = vunpack.c.l.b16 %v892
        %v940 = vunpack.c.l.b16 %v893
        %v941 = vunpack.c.l.b16 %v894
        %v942 = vunpack.c.l.b16 %v895
        %v943 = vunpack.c.l.b16 %v896
        %v944 = vunpack.c.l.b16 %v897
        %v945 = vunpack.c.l.b16 %v898
        %v946 = vunpack.c.l.b16 %v899
        %v947 = vunpack.c.l.b16 %v900
        %v948 = vunpack.c.l.b16 %v901
        %v949 = vunpack.c.l.b16 %v902
        %v950 = vunpack.c.l.b16 %v903
        %v951 = vunpack.c.l.b16 %v904
        %v952 = vunpack.c.l.b16 %v905
        %v953 = vunpack.c.l.b16 %v906
        %v954 = vpack.c.b16 %v939, %v938
        %v955 = vpack.c.b16 %v941, %v940
        %v956 = vpack.c.b16 %v943, %v942
        %v957 = vpack.c.b16 %v945, %v944
        %v958 = vpack.c.b16 %v947, %v946
        %v959 = vpack.c.b16 %v949, %v948
        %v960 = vpack.c.b16 %v951, %v950
        %v961 = vpack.c.b16 %v953, %v952
        %970 = vmatprep.subr.bf16.mxu0 0
        %971 = vmatpush1.bf16.msra.mxu0 %v961
        %972 = vmatprep.subr.bf16.mxu0 0
        %973 = vmatpush1.bf16.msra.mxu0 %v960
        %974 = vmatprep.subr.bf16.mxu0 0
        %975 = vmatpush1.bf16.msra.mxu0 %v959
        %976 = vmatprep.subr.bf16.mxu0 0
        %977 = vmatpush1.bf16.msra.mxu0 %v958
        %978 = vmatprep.subr.bf16.mxu0 0
        %979 = vmatpush1.bf16.msra.mxu0 %v957
        %980 = vmatprep.subr.bf16.mxu0 0
        %981 = vmatpush1.bf16.msra.mxu0 %v956
        %982 = vmatprep.subr.bf16.mxu0 0
        %983 = vmatpush1.bf16.msra.mxu0 %v955
        %984 = vmatprep.subr.bf16.mxu0 0
        %985 = vmatpush1.bf16.msra.mxu0 %v954
        %986 = vmatprep.subr.bf16.mxu0 0
        %987 = vmatpush2.bf16.msra.mxu0 0
        %988 = vmatprep.subr.bf16.mxu0 0
        %989 = vmatpush2.bf16.msra.mxu0 0
        %990 = vmatprep.subr.bf16.mxu0 0
        %991 = vmatpush2.bf16.msra.mxu0 0
        %992 = vmatprep.subr.bf16.mxu0 0
        %993 = vmatpush2.bf16.msra.mxu0 0
        %994 = vmatprep.subr.bf16.mxu0 0
        %995 = vmatpush2.bf16.msra.mxu0 0
        %996 = vmatprep.subr.bf16.mxu0 0
        %997 = vmatpush2.bf16.msra.mxu0 0
        %998 = vmatprep.subr.bf16.mxu0 0
        %999 = vmatpush2.bf16.msra.mxu0 0
        %1000 = vmatprep.subr.bf16.mxu0 0
        %1001 = vmatpush2.bf16.msra.mxu0 0
        %1002 = vmatprep.mubr.bf16.mxu0 0
        %1003 = vmatmul.mubr.bf16.gmra.mxu0 %v908
        %v1004 = vpop.f32.mrf.mxu0
        %v1005 = vadd.f32 %v921, %v1004
        %v1006 = vpop.f32.mrf.mxu0
        %v1007 = vpop.f32.mrf.mxu0
        %v1008 = vadd.f32 %v921, %v1007
        %v1009 = vpop.f32.mrf.mxu0
        %1010 = vmatprep.mubr.bf16.mxu0 0
        %1011 = vmatmul.mubr.bf16.gmra.mxu0 %v909
        %v1012 = vpop.f32.mrf.mxu0
        %v1013 = vadd.f32 %v921, %v1012
        %v1014 = vpop.f32.mrf.mxu0
        %v1015 = vpop.f32.mrf.mxu0
        %v1016 = vadd.f32 %v921, %v1015
        %v1017 = vpop.f32.mrf.mxu0
        %1018 = vmatprep.mubr.bf16.mxu0 0
        %1019 = vmatmul.mubr.bf16.gmra.mxu0 %v910
        %v1020 = vpop.f32.mrf.mxu0
        %v1021 = vadd.f32 %v921, %v1020
        %v1022 = vpop.f32.mrf.mxu0
        %v1023 = vpop.f32.mrf.mxu0
        %v1024 = vadd.f32 %v921, %v1023
        %v1025 = vpop.f32.mrf.mxu0
        %1026 = vmatprep.mubr.bf16.mxu0 0
        %1027 = vmatmul.mubr.bf16.gmra.mxu0 %v911
        %v1028 = vpop.f32.mrf.mxu0
        %v1029 = vadd.f32 %v921, %v1028
        %v1030 = vpop.f32.mrf.mxu0
        %v1031 = vpop.f32.mrf.mxu0
        %v1032 = vadd.f32 %v921, %v1031
        %v1033 = vpop.f32.mrf.mxu0
        %1034 = vmatprep.mubr.bf16.mxu0 0
        %1035 = vmatmul.mubr.bf16.gmra.mxu0 %v912
        %v1036 = vpop.f32.mrf.mxu0
        %v1037 = vadd.f32 %v921, %v1036
        %v1038 = vpop.f32.mrf.mxu0
        %v1039 = vpop.f32.mrf.mxu0
        %v1040 = vadd.f32 %v921, %v1039
        %v1041 = vpop.f32.mrf.mxu0
        %1042 = vdwg.mxu0
        %v1043 = vmax.f32 %v1005, 0.0
        %v1044 = vmax.f32 %v1008, 0.0
        %v1045 = vmax.f32 %v1013, 0.0
        %v1046 = vmax.f32 %v1016, 0.0
        %v1047 = vmax.f32 %v1021, 0.0
        %v1048 = vmax.f32 %v1024, 0.0
        %v1049 = vmax.f32 %v1029, 0.0
        %v1050 = vmax.f32 %v1032, 0.0
        %v1051 = vmax.f32 %v1037, 0.0
        %v1052 = vmax.f32 %v1040, 0.0
        %v1053 = vadd.f32 %v1043, %v787
        %v1054 = vadd.f32 %v1044, %v788
        %v1055 = vadd.f32 %v1045, %v789
        %v1056 = vadd.f32 %v1046, %v790
        %v1057 = vadd.f32 %v1047, %v791
        %v1058 = vadd.f32 %v1048, %v792
        %v1059 = vadd.f32 %v1049, %v793
        %v1060 = vadd.f32 %v1050, %v794
        %v1061 = vadd.f32 %v1051, %v795
        %v1062 = vadd.f32 %v1052, %v796
        %1063 = vmatprep.subr.bf16.mxu0 0
        %1064 = vmatpush1.bf16.msra.mxu0 %v961
        %1065 = vmatprep.subr.bf16.mxu0 0
        %1066 = vmatpush1.bf16.msra.mxu0 %v960
        %1067 = vmatprep.subr.bf16.mxu0 0
        %1068 = vmatpush1.bf16.msra.mxu0 %v959
        %1069 = vmatprep.subr.bf16.mxu0 0
        %1070 = vmatpush1.bf16.msra.mxu0 %v958
        %1071 = vmatprep.subr.bf16.mxu0 0
        %1072 = vmatpush1.bf16.msra.mxu0 %v957
        %1073 = vmatprep.subr.bf16.mxu0 0
        %1074 = vmatpush1.bf16.msra.mxu0 %v956
        %1075 = vmatprep.subr.bf16.mxu0 0
        %1076 = vmatpush1.bf16.msra.mxu0 %v955
        %1077 = vmatprep.subr.bf16.mxu0 0
        %1078 = vmatpush1.bf16.msra.mxu0 %v954
        %1079 = vmatprep.subr.bf16.mxu0 0
        %1080 = vmatpush2.bf16.msra.mxu0 0
        %1081 = vmatprep.subr.bf16.mxu0 0
        %1082 = vmatpush2.bf16.msra.mxu0 0
        %1083 = vmatprep.subr.bf16.mxu0 0
        %1084 = vmatpush2.bf16.msra.mxu0 0
        %1085 = vmatprep.subr.bf16.mxu0 0
        %1086 = vmatpush2.bf16.msra.mxu0 0
        %1087 = vmatprep.subr.bf16.mxu0 0
        %1088 = vmatpush2.bf16.msra.mxu0 0
        %1089 = vmatprep.subr.bf16.mxu0 0
        %1090 = vmatpush2.bf16.msra.mxu0 0
        %1091 = vmatprep.subr.bf16.mxu0 0
        %1092 = vmatpush2.bf16.msra.mxu0 0
        %1093 = vmatprep.subr.bf16.mxu0 0
        %1094 = vmatpush2.bf16.msra.mxu0 0
        %1095 = vmatprep.mubr.bf16.mxu0 0
        %1096 = vmatmul.mubr.bf16.gmra.mxu0 %v913
        %v1097 = vpop.f32.mrf.mxu0
        %v1098 = vadd.f32 %v921, %v1097
        %v1099 = vpop.f32.mrf.mxu0
        %v1100 = vpop.f32.mrf.mxu0
        %v1101 = vadd.f32 %v921, %v1100
        %v1102 = vpop.f32.mrf.mxu0
        %1103 = vmatprep.mubr.bf16.mxu0 0
        %1104 = vmatmul.mubr.bf16.gmra.mxu0 %v914
        %v1105 = vpop.f32.mrf.mxu0
        %v1106 = vadd.f32 %v921, %v1105
        %v1107 = vpop.f32.mrf.mxu0
        %v1108 = vpop.f32.mrf.mxu0
        %v1109 = vadd.f32 %v921, %v1108
        %v1110 = vpop.f32.mrf.mxu0
        %1111 = vmatprep.mubr.bf16.mxu0 0
        %1112 = vmatmul.mubr.bf16.gmra.mxu0 %v915
        %v1113 = vpop.f32.mrf.mxu0
        %v1114 = vadd.f32 %v921, %v1113
        %v1115 = vpop.f32.mrf.mxu0
        %v1116 = vpop.f32.mrf.mxu0
        %v1117 = vadd.f32 %v921, %v1116
        %v1118 = vpop.f32.mrf.mxu0
        %1119 = vmatprep.mubr.bf16.mxu0 0
        %1120 = vmatmul.mubr.bf16.gmra.mxu0 %v916
        %v1121 = vpop.f32.mrf.mxu0
        %v1122 = vadd.f32 %v921, %v1121
        %v1123 = vpop.f32.mrf.mxu0
        %v1124 = vpop.f32.mrf.mxu0
        %v1125 = vadd.f32 %v921, %v1124
        %v1126 = vpop.f32.mrf.mxu0
        %1127 = vmatprep.mubr.bf16.mxu0 0
        %1128 = vmatmul.mubr.bf16.gmra.mxu0 %v917
        %v1129 = vpop.f32.mrf.mxu0
        %v1130 = vadd.f32 %v921, %v1129
        %v1131 = vpop.f32.mrf.mxu0
        %v1132 = vpop.f32.mrf.mxu0
        %v1133 = vadd.f32 %v921, %v1132
        %v1134 = vpop.f32.mrf.mxu0
        %1135 = vdwg.mxu0
        %v1136 = vmax.f32 %v1098, 0.0
        %v1137 = vmax.f32 %v1101, 0.0
        %v1138 = vmax.f32 %v1106, 0.0
        %v1139 = vmax.f32 %v1109, 0.0
        %v1140 = vmax.f32 %v1114, 0.0
        %v1141 = vmax.f32 %v1117, 0.0
        %v1142 = vmax.f32 %v1122, 0.0
        %v1143 = vmax.f32 %v1125, 0.0
        %v1144 = vmax.f32 %v1130, 0.0
        %v1145 = vmax.f32 %v1133, 0.0
        %v1146 = vadd.f32 %v1136, %v880
        %v1147 = vadd.f32 %v1137, %v881
        %v1148 = vadd.f32 %v1138, %v882
        %v1149 = vadd.f32 %v1139, %v883
        %v1150 = vadd.f32 %v1140, %v884
        %v1151 = vadd.f32 %v1141, %v885
        %v1152 = vadd.f32 %v1142, %v886
        %v1153 = vadd.f32 %v1143, %v887
        %v1154 = vadd.f32 %v1144, %v888
        %v1155 = vadd.f32 %v1145, %v889
        %s1156 = scalar_lea.vmem [#allocation7], 128
        %v1157 = vld [vmem:[%s1156] sm:$0xf]
        %v1158 = vld [vmem:[%s1156 + $0x4] sm:$0xf]
        %v1159 = vld [vmem:[%s1156 + $0x8] sm:$0xf]
        %v1160 = vld [vmem:[%s1156 + $0xc] sm:$0xf]
        %v1161 = vld [vmem:[%s1156 + $0x10] sm:$0xf]
        %v1162 = vld [vmem:[%s1156 + $0x14] sm:$0xf]
        %v1163 = vld [vmem:[%s1156 + $0x18] sm:$0xf]
        %v1164 = vld [vmem:[%s1156 + $0x1c] sm:$0xf]
        %v1165 = vld [vmem:[%s1156 + $0x20] sm:$0xf]
        %v1166 = vld [vmem:[%s1156 + $0x24] sm:$0xf]
        %v1167 = vld [vmem:[%s1156 + $0x28] sm:$0xf]
        %v1168 = vld [vmem:[%s1156 + $0x2c] sm:$0xf]
        %v1169 = vld [vmem:[%s1156 + $0x30] sm:$0xf]
        %v1170 = vld [vmem:[%s1156 + $0x34] sm:$0xf]
        %v1171 = vld [vmem:[%s1156 + $0x38] sm:$0xf]
        %v1172 = vld [vmem:[%s1156 + $0x3c] sm:$0xf]
        %v1173 = vld [vmem:[#allocation8 + $0x2] sm:$0x1]
        %v1174 = vpack.c.bf16 %v1054, %v1053
        %v1175 = vpack.c.bf16 %v1056, %v1055
        %v1176 = vpack.c.bf16 %v1058, %v1057
        %v1177 = vpack.c.bf16 %v1060, %v1059
        %v1178 = vpack.c.bf16 %v1062, %v1061
        %v1179 = vpack.c.bf16 %v1147, %v1146
        %v1180 = vpack.c.bf16 %v1149, %v1148
        %v1181 = vpack.c.bf16 %v1151, %v1150
        %v1182 = vpack.c.bf16 %v1153, %v1152
        %v1183 = vpack.c.bf16 %v1155, %v1154
        %v1184 = vlaneseq
        %v1185 = vshrl.u32 %v1184, 7
        %v1186 = vsub.s32 0, %v1185
        %v1187 = vrot.slane %v1173, %v1186
        %v1204 = vunpack.c.l.b16 %v1157
        %v1205 = vunpack.c.l.b16 %v1158
        %v1206 = vunpack.c.l.b16 %v1159
        %v1207 = vunpack.c.l.b16 %v1160
        %v1208 = vunpack.c.l.b16 %v1161
        %v1209 = vunpack.c.l.b16 %v1162
        %v1210 = vunpack.c.l.b16 %v1163
        %v1211 = vunpack.c.l.b16 %v1164
        %v1212 = vunpack.c.l.b16 %v1165
        %v1213 = vunpack.c.l.b16 %v1166
        %v1214 = vunpack.c.l.b16 %v1167
        %v1215 = vunpack.c.l.b16 %v1168
        %v1216 = vunpack.c.l.b16 %v1169
        %v1217 = vunpack.c.l.b16 %v1170
        %v1218 = vunpack.c.l.b16 %v1171
        %v1219 = vunpack.c.l.b16 %v1172
        %v1220 = vpack.c.b16 %v1205, %v1204
        %v1221 = vpack.c.b16 %v1207, %v1206
        %v1222 = vpack.c.b16 %v1209, %v1208
        %v1223 = vpack.c.b16 %v1211, %v1210
        %v1224 = vpack.c.b16 %v1213, %v1212
        %v1225 = vpack.c.b16 %v1215, %v1214
        %v1226 = vpack.c.b16 %v1217, %v1216
        %v1227 = vpack.c.b16 %v1219, %v1218
        %1236 = vmatprep.subr.bf16.mxu0 0
        %1237 = vmatpush1.bf16.msra.mxu0 %v1227
        %1238 = vmatprep.subr.bf16.mxu0 0
        %1239 = vmatpush1.bf16.msra.mxu0 %v1226
        %1240 = vmatprep.subr.bf16.mxu0 0
        %1241 = vmatpush1.bf16.msra.mxu0 %v1225
        %1242 = vmatprep.subr.bf16.mxu0 0
        %1243 = vmatpush1.bf16.msra.mxu0 %v1224
        %1244 = vmatprep.subr.bf16.mxu0 0
        %1245 = vmatpush1.bf16.msra.mxu0 %v1223
        %1246 = vmatprep.subr.bf16.mxu0 0
        %1247 = vmatpush1.bf16.msra.mxu0 %v1222
        %1248 = vmatprep.subr.bf16.mxu0 0
        %1249 = vmatpush1.bf16.msra.mxu0 %v1221
        %1250 = vmatprep.subr.bf16.mxu0 0
        %1251 = vmatpush1.bf16.msra.mxu0 %v1220
        %1252 = vmatprep.subr.bf16.mxu0 0
        %1253 = vmatpush2.bf16.msra.mxu0 0
        %1254 = vmatprep.subr.bf16.mxu0 0
        %1255 = vmatpush2.bf16.msra.mxu0 0
        %1256 = vmatprep.subr.bf16.mxu0 0
        %1257 = vmatpush2.bf16.msra.mxu0 0
        %1258 = vmatprep.subr.bf16.mxu0 0
        %1259 = vmatpush2.bf16.msra.mxu0 0
        %1260 = vmatprep.subr.bf16.mxu0 0
        %1261 = vmatpush2.bf16.msra.mxu0 0
        %1262 = vmatprep.subr.bf16.mxu0 0
        %1263 = vmatpush2.bf16.msra.mxu0 0
        %1264 = vmatprep.subr.bf16.mxu0 0
        %1265 = vmatpush2.bf16.msra.mxu0 0
        %1266 = vmatprep.subr.bf16.mxu0 0
        %1267 = vmatpush2.bf16.msra.mxu0 0
        %1268 = vmatprep.mubr.bf16.mxu0 0
        %1269 = vmatmul.mubr.bf16.gmra.mxu0 %v1174
        %v1270 = vpop.f32.mrf.mxu0
        %v1271 = vadd.f32 %v1187, %v1270
        %v1272 = vpop.f32.mrf.mxu0
        %v1273 = vpop.f32.mrf.mxu0
        %v1274 = vadd.f32 %v1187, %v1273
        %v1275 = vpop.f32.mrf.mxu0
        %1276 = vmatprep.mubr.bf16.mxu0 0
        %1277 = vmatmul.mubr.bf16.gmra.mxu0 %v1175
        %v1278 = vpop.f32.mrf.mxu0
        %v1279 = vadd.f32 %v1187, %v1278
        %v1280 = vpop.f32.mrf.mxu0
        %v1281 = vpop.f32.mrf.mxu0
        %v1282 = vadd.f32 %v1187, %v1281
        %v1283 = vpop.f32.mrf.mxu0
        %1284 = vmatprep.mubr.bf16.mxu0 0
        %1285 = vmatmul.mubr.bf16.gmra.mxu0 %v1176
        %v1286 = vpop.f32.mrf.mxu0
        %v1287 = vadd.f32 %v1187, %v1286
        %v1288 = vpop.f32.mrf.mxu0
        %v1289 = vpop.f32.mrf.mxu0
        %v1290 = vadd.f32 %v1187, %v1289
        %v1291 = vpop.f32.mrf.mxu0
        %1292 = vmatprep.mubr.bf16.mxu0 0
        %1293 = vmatmul.mubr.bf16.gmra.mxu0 %v1177
        %v1294 = vpop.f32.mrf.mxu0
        %v1295 = vadd.f32 %v1187, %v1294
        %v1296 = vpop.f32.mrf.mxu0
        %v1297 = vpop.f32.mrf.mxu0
        %v1298 = vadd.f32 %v1187, %v1297
        %v1299 = vpop.f32.mrf.mxu0
        %1300 = vmatprep.mubr.bf16.mxu0 0
        %1301 = vmatmul.mubr.bf16.gmra.mxu0 %v1178
        %v1302 = vpop.f32.mrf.mxu0
        %v1303 = vadd.f32 %v1187, %v1302
        %v1304 = vpop.f32.mrf.mxu0
        %v1305 = vpop.f32.mrf.mxu0
        %v1306 = vadd.f32 %v1187, %v1305
        %v1307 = vpop.f32.mrf.mxu0
        %1308 = vdwg.mxu0
        %v1309 = vmax.f32 %v1271, 0.0
        %v1310 = vmax.f32 %v1274, 0.0
        %v1311 = vmax.f32 %v1279, 0.0
        %v1312 = vmax.f32 %v1282, 0.0
        %v1313 = vmax.f32 %v1287, 0.0
        %v1314 = vmax.f32 %v1290, 0.0
        %v1315 = vmax.f32 %v1295, 0.0
        %v1316 = vmax.f32 %v1298, 0.0
        %v1317 = vmax.f32 %v1303, 0.0
        %v1318 = vmax.f32 %v1306, 0.0
        %v1319 = vadd.f32 %v1309, %v1053
        %v1320 = vadd.f32 %v1310, %v1054
        %v1321 = vadd.f32 %v1311, %v1055
        %v1322 = vadd.f32 %v1312, %v1056
        %v1323 = vadd.f32 %v1313, %v1057
        %v1324 = vadd.f32 %v1314, %v1058
        %v1325 = vadd.f32 %v1315, %v1059
        %v1326 = vadd.f32 %v1316, %v1060
        %v1327 = vadd.f32 %v1317, %v1061
        %v1328 = vadd.f32 %v1318, %v1062
        %1329 = vmatprep.subr.bf16.mxu0 0
        %1330 = vmatpush1.bf16.msra.mxu0 %v1227
        %1331 = vmatprep.subr.bf16.mxu0 0
        %1332 = vmatpush1.bf16.msra.mxu0 %v1226
        %1333 = vmatprep.subr.bf16.mxu0 0
        %1334 = vmatpush1.bf16.msra.mxu0 %v1225
        %1335 = vmatprep.subr.bf16.mxu0 0
        %1336 = vmatpush1.bf16.msra.mxu0 %v1224
        %1337 = vmatprep.subr.bf16.mxu0 0
        %1338 = vmatpush1.bf16.msra.mxu0 %v1223
        %1339 = vmatprep.subr.bf16.mxu0 0
        %1340 = vmatpush1.bf16.msra.mxu0 %v1222
        %1341 = vmatprep.subr.bf16.mxu0 0
        %1342 = vmatpush1.bf16.msra.mxu0 %v1221
        %1343 = vmatprep.subr.bf16.mxu0 0
        %1344 = vmatpush1.bf16.msra.mxu0 %v1220
        %1345 = vmatprep.subr.bf16.mxu0 0
        %1346 = vmatpush2.bf16.msra.mxu0 0
        %1347 = vmatprep.subr.bf16.mxu0 0
        %1348 = vmatpush2.bf16.msra.mxu0 0
        %1349 = vmatprep.subr.bf16.mxu0 0
        %1350 = vmatpush2.bf16.msra.mxu0 0
        %1351 = vmatprep.subr.bf16.mxu0 0
        %1352 = vmatpush2.bf16.msra.mxu0 0
        %1353 = vmatprep.subr.bf16.mxu0 0
        %1354 = vmatpush2.bf16.msra.mxu0 0
        %1355 = vmatprep.subr.bf16.mxu0 0
        %1356 = vmatpush2.bf16.msra.mxu0 0
        %1357 = vmatprep.subr.bf16.mxu0 0
        %1358 = vmatpush2.bf16.msra.mxu0 0
        %1359 = vmatprep.subr.bf16.mxu0 0
        %1360 = vmatpush2.bf16.msra.mxu0 0
        %1361 = vmatprep.mubr.bf16.mxu0 0
        %1362 = vmatmul.mubr.bf16.gmra.mxu0 %v1179
        %v1363 = vpop.f32.mrf.mxu0
        %v1364 = vadd.f32 %v1187, %v1363
        %v1365 = vpop.f32.mrf.mxu0
        %v1366 = vpop.f32.mrf.mxu0
        %v1367 = vadd.f32 %v1187, %v1366
        %v1368 = vpop.f32.mrf.mxu0
        %1369 = vmatprep.mubr.bf16.mxu0 0
        %1370 = vmatmul.mubr.bf16.gmra.mxu0 %v1180
        %v1371 = vpop.f32.mrf.mxu0
        %v1372 = vadd.f32 %v1187, %v1371
        %v1373 = vpop.f32.mrf.mxu0
        %v1374 = vpop.f32.mrf.mxu0
        %v1375 = vadd.f32 %v1187, %v1374
        %v1376 = vpop.f32.mrf.mxu0
        %1377 = vmatprep.mubr.bf16.mxu0 0
        %1378 = vmatmul.mubr.bf16.gmra.mxu0 %v1181
        %v1379 = vpop.f32.mrf.mxu0
        %v1380 = vadd.f32 %v1187, %v1379
        %v1381 = vpop.f32.mrf.mxu0
        %v1382 = vpop.f32.mrf.mxu0
        %v1383 = vadd.f32 %v1187, %v1382
        %v1384 = vpop.f32.mrf.mxu0
        %1385 = vmatprep.mubr.bf16.mxu0 0
        %1386 = vmatmul.mubr.bf16.gmra.mxu0 %v1182
        %v1387 = vpop.f32.mrf.mxu0
        %v1388 = vadd.f32 %v1187, %v1387
        %v1389 = vpop.f32.mrf.mxu0
        %v1390 = vpop.f32.mrf.mxu0
        %v1391 = vadd.f32 %v1187, %v1390
        %v1392 = vpop.f32.mrf.mxu0
        %1393 = vmatprep.mubr.bf16.mxu0 0
        %1394 = vmatmul.mubr.bf16.gmra.mxu0 %v1183
        %v1395 = vpop.f32.mrf.mxu0
        %v1396 = vadd.f32 %v1187, %v1395
        %v1397 = vpop.f32.mrf.mxu0
        %v1398 = vpop.f32.mrf.mxu0
        %v1399 = vadd.f32 %v1187, %v1398
        %v1400 = vpop.f32.mrf.mxu0
        %1401 = vdwg.mxu0
        %v1402 = vmax.f32 %v1364, 0.0
        %v1403 = vmax.f32 %v1367, 0.0
        %v1404 = vmax.f32 %v1372, 0.0
        %v1405 = vmax.f32 %v1375, 0.0
        %v1406 = vmax.f32 %v1380, 0.0
        %v1407 = vmax.f32 %v1383, 0.0
        %v1408 = vmax.f32 %v1388, 0.0
        %v1409 = vmax.f32 %v1391, 0.0
        %v1410 = vmax.f32 %v1396, 0.0
        %v1411 = vmax.f32 %v1399, 0.0
        %v1412 = vadd.f32 %v1402, %v1146
        %v1413 = vadd.f32 %v1403, %v1147
        %v1414 = vadd.f32 %v1404, %v1148
        %v1415 = vadd.f32 %v1405, %v1149
        %v1416 = vadd.f32 %v1406, %v1150
        %v1417 = vadd.f32 %v1407, %v1151
        %v1418 = vadd.f32 %v1408, %v1152
        %v1419 = vadd.f32 %v1409, %v1153
        %v1420 = vadd.f32 %v1410, %v1154
        %v1421 = vadd.f32 %v1411, %v1155
        %s1422 = scalar_lea.vmem [#allocation7], 192
        %v1423 = vld [vmem:[%s1422] sm:$0xf]
        %v1424 = vld [vmem:[%s1422 + $0x4] sm:$0xf]
        %v1425 = vld [vmem:[%s1422 + $0x8] sm:$0xf]
        %v1426 = vld [vmem:[%s1422 + $0xc] sm:$0xf]
        %v1427 = vld [vmem:[%s1422 + $0x10] sm:$0xf]
        %v1428 = vld [vmem:[%s1422 + $0x14] sm:$0xf]
        %v1429 = vld [vmem:[%s1422 + $0x18] sm:$0xf]
        %v1430 = vld [vmem:[%s1422 + $0x1c] sm:$0xf]
        %v1431 = vld [vmem:[%s1422 + $0x20] sm:$0xf]
        %v1432 = vld [vmem:[%s1422 + $0x24] sm:$0xf]
        %v1433 = vld [vmem:[%s1422 + $0x28] sm:$0xf]
        %v1434 = vld [vmem:[%s1422 + $0x2c] sm:$0xf]
        %v1435 = vld [vmem:[%s1422 + $0x30] sm:$0xf]
        %v1436 = vld [vmem:[%s1422 + $0x34] sm:$0xf]
        %v1437 = vld [vmem:[%s1422 + $0x38] sm:$0xf]
        %v1438 = vld [vmem:[%s1422 + $0x3c] sm:$0xf]
        %v1439 = vld [vmem:[#allocation8 + $0x3] sm:$0x1]
        %v1440 = vpack.c.bf16 %v1320, %v1319
        %v1441 = vpack.c.bf16 %v1322, %v1321
        %v1442 = vpack.c.bf16 %v1324, %v1323
        %v1443 = vpack.c.bf16 %v1326, %v1325
        %v1444 = vpack.c.bf16 %v1328, %v1327
        %v1445 = vpack.c.bf16 %v1413, %v1412
        %v1446 = vpack.c.bf16 %v1415, %v1414
        %v1447 = vpack.c.bf16 %v1417, %v1416
        %v1448 = vpack.c.bf16 %v1419, %v1418
        %v1449 = vpack.c.bf16 %v1421, %v1420
        %v1450 = vlaneseq
        %v1451 = vshrl.u32 %v1450, 7
        %v1452 = vsub.s32 0, %v1451
        %v1453 = vrot.slane %v1439, %v1452
        %v1470 = vunpack.c.l.b16 %v1423
        %v1471 = vunpack.c.l.b16 %v1424
        %v1472 = vunpack.c.l.b16 %v1425
        %v1473 = vunpack.c.l.b16 %v1426
        %v1474 = vunpack.c.l.b16 %v1427
        %v1475 = vunpack.c.l.b16 %v1428
        %v1476 = vunpack.c.l.b16 %v1429
        %v1477 = vunpack.c.l.b16 %v1430
        %v1478 = vunpack.c.l.b16 %v1431
        %v1479 = vunpack.c.l.b16 %v1432
        %v1480 = vunpack.c.l.b16 %v1433
        %v1481 = vunpack.c.l.b16 %v1434
        %v1482 = vunpack.c.l.b16 %v1435
        %v1483 = vunpack.c.l.b16 %v1436
        %v1484 = vunpack.c.l.b16 %v1437
        %v1485 = vunpack.c.l.b16 %v1438
        %v1486 = vpack.c.b16 %v1471, %v1470
        %v1487 = vpack.c.b16 %v1473, %v1472
        %v1488 = vpack.c.b16 %v1475, %v1474
        %v1489 = vpack.c.b16 %v1477, %v1476
        %v1490 = vpack.c.b16 %v1479, %v1478
        %v1491 = vpack.c.b16 %v1481, %v1480
        %v1492 = vpack.c.b16 %v1483, %v1482
        %v1493 = vpack.c.b16 %v1485, %v1484
        %1502 = vmatprep.subr.bf16.mxu0 0
        %1503 = vmatpush1.bf16.msra.mxu0 %v1493
        %1504 = vmatprep.subr.bf16.mxu0 0
        %1505 = vmatpush1.bf16.msra.mxu0 %v1492
        %1506 = vmatprep.subr.bf16.mxu0 0
        %1507 = vmatpush1.bf16.msra.mxu0 %v1491
        %1508 = vmatprep.subr.bf16.mxu0 0
        %1509 = vmatpush1.bf16.msra.mxu0 %v1490
        %1510 = vmatprep.subr.bf16.mxu0 0
        %1511 = vmatpush1.bf16.msra.mxu0 %v1489
        %1512 = vmatprep.subr.bf16.mxu0 0
        %1513 = vmatpush1.bf16.msra.mxu0 %v1488
        %1514 = vmatprep.subr.bf16.mxu0 0
        %1515 = vmatpush1.bf16.msra.mxu0 %v1487
        %1516 = vmatprep.subr.bf16.mxu0 0
        %1517 = vmatpush1.bf16.msra.mxu0 %v1486
        %1518 = vmatprep.subr.bf16.mxu0 0
        %1519 = vmatpush2.bf16.msra.mxu0 0
        %1520 = vmatprep.subr.bf16.mxu0 0
        %1521 = vmatpush2.bf16.msra.mxu0 0
        %1522 = vmatprep.subr.bf16.mxu0 0
        %1523 = vmatpush2.bf16.msra.mxu0 0
        %1524 = vmatprep.subr.bf16.mxu0 0
        %1525 = vmatpush2.bf16.msra.mxu0 0
        %1526 = vmatprep.subr.bf16.mxu0 0
        %1527 = vmatpush2.bf16.msra.mxu0 0
        %1528 = vmatprep.subr.bf16.mxu0 0
        %1529 = vmatpush2.bf16.msra.mxu0 0
        %1530 = vmatprep.subr.bf16.mxu0 0
        %1531 = vmatpush2.bf16.msra.mxu0 0
        %1532 = vmatprep.subr.bf16.mxu0 0
        %1533 = vmatpush2.bf16.msra.mxu0 0
        %1534 = vmatprep.mubr.bf16.mxu0 0
        %1535 = vmatmul.mubr.bf16.gmra.mxu0 %v1440
        %v1536 = vpop.f32.mrf.mxu0
        %v1537 = vadd.f32 %v1453, %v1536
        %v1538 = vpop.f32.mrf.mxu0
        %v1539 = vpop.f32.mrf.mxu0
        %v1540 = vadd.f32 %v1453, %v1539
        %v1541 = vpop.f32.mrf.mxu0
        %1542 = vmatprep.mubr.bf16.mxu0 0
        %1543 = vmatmul.mubr.bf16.gmra.mxu0 %v1441
        %v1544 = vpop.f32.mrf.mxu0
        %v1545 = vadd.f32 %v1453, %v1544
        %v1546 = vpop.f32.mrf.mxu0
        %v1547 = vpop.f32.mrf.mxu0
        %v1548 = vadd.f32 %v1453, %v1547
        %v1549 = vpop.f32.mrf.mxu0
        %1550 = vmatprep.mubr.bf16.mxu0 0
        %1551 = vmatmul.mubr.bf16.gmra.mxu0 %v1442
        %v1552 = vpop.f32.mrf.mxu0
        %v1553 = vadd.f32 %v1453, %v1552
        %v1554 = vpop.f32.mrf.mxu0
        %v1555 = vpop.f32.mrf.mxu0
        %v1556 = vadd.f32 %v1453, %v1555
        %v1557 = vpop.f32.mrf.mxu0
        %1558 = vmatprep.mubr.bf16.mxu0 0
        %1559 = vmatmul.mubr.bf16.gmra.mxu0 %v1443
        %v1560 = vpop.f32.mrf.mxu0
        %v1561 = vadd.f32 %v1453, %v1560
        %v1562 = vpop.f32.mrf.mxu0
        %v1563 = vpop.f32.mrf.mxu0
        %v1564 = vadd.f32 %v1453, %v1563
        %v1565 = vpop.f32.mrf.mxu0
        %1566 = vmatprep.mubr.bf16.mxu0 0
        %1567 = vmatmul.mubr.bf16.gmra.mxu0 %v1444
        %v1568 = vpop.f32.mrf.mxu0
        %v1569 = vadd.f32 %v1453, %v1568
        %v1570 = vpop.f32.mrf.mxu0
        %v1571 = vpop.f32.mrf.mxu0
        %v1572 = vadd.f32 %v1453, %v1571
        %v1573 = vpop.f32.mrf.mxu0
        %1574 = vdwg.mxu0
        %v1575 = vmax.f32 %v1537, 0.0
        %v1576 = vmax.f32 %v1540, 0.0
        %v1577 = vmax.f32 %v1545, 0.0
        %v1578 = vmax.f32 %v1548, 0.0
        %v1579 = vmax.f32 %v1553, 0.0
        %v1580 = vmax.f32 %v1556, 0.0
        %v1581 = vmax.f32 %v1561, 0.0
        %v1582 = vmax.f32 %v1564, 0.0
        %v1583 = vmax.f32 %v1569, 0.0
        %v1584 = vmax.f32 %v1572, 0.0
        %v1585 = vadd.f32 %v1575, %v1319
        %v1586 = vadd.f32 %v1576, %v1320
        %v1587 = vadd.f32 %v1577, %v1321
        %v1588 = vadd.f32 %v1578, %v1322
        %v1589 = vadd.f32 %v1579, %v1323
        %v1590 = vadd.f32 %v1580, %v1324
        %v1591 = vadd.f32 %v1581, %v1325
        %v1592 = vadd.f32 %v1582, %v1326
        %v1593 = vadd.f32 %v1583, %v1327
        %v1594 = vadd.f32 %v1584, %v1328
        %1595 = vmatprep.subr.bf16.mxu0 0
        %1596 = vmatpush1.bf16.msra.mxu0 %v1493
        %1597 = vmatprep.subr.bf16.mxu0 0
        %1598 = vmatpush1.bf16.msra.mxu0 %v1492
        %1599 = vmatprep.subr.bf16.mxu0 0
        %1600 = vmatpush1.bf16.msra.mxu0 %v1491
        %1601 = vmatprep.subr.bf16.mxu0 0
        %1602 = vmatpush1.bf16.msra.mxu0 %v1490
        %1603 = vmatprep.subr.bf16.mxu0 0
        %1604 = vmatpush1.bf16.msra.mxu0 %v1489
        %1605 = vmatprep.subr.bf16.mxu0 0
        %1606 = vmatpush1.bf16.msra.mxu0 %v1488
        %1607 = vmatprep.subr.bf16.mxu0 0
        %1608 = vmatpush1.bf16.msra.mxu0 %v1487
        %1609 = vmatprep.subr.bf16.mxu0 0
        %1610 = vmatpush1.bf16.msra.mxu0 %v1486
        %1611 = vmatprep.subr.bf16.mxu0 0
        %1612 = vmatpush2.bf16.msra.mxu0 0
        %1613 = vmatprep.subr.bf16.mxu0 0
        %1614 = vmatpush2.bf16.msra.mxu0 0
        %1615 = vmatprep.subr.bf16.mxu0 0
        %1616 = vmatpush2.bf16.msra.mxu0 0
        %1617 = vmatprep.subr.bf16.mxu0 0
        %1618 = vmatpush2.bf16.msra.mxu0 0
        %1619 = vmatprep.subr.bf16.mxu0 0
        %1620 = vmatpush2.bf16.msra.mxu0 0
        %1621 = vmatprep.subr.bf16.mxu0 0
        %1622 = vmatpush2.bf16.msra.mxu0 0
        %1623 = vmatprep.subr.bf16.mxu0 0
        %1624 = vmatpush2.bf16.msra.mxu0 0
        %1625 = vmatprep.subr.bf16.mxu0 0
        %1626 = vmatpush2.bf16.msra.mxu0 0
        %1627 = vmatprep.mubr.bf16.mxu0 0
        %1628 = vmatmul.mubr.bf16.gmra.mxu0 %v1445
        %v1629 = vpop.f32.mrf.mxu0
        %v1630 = vadd.f32 %v1453, %v1629
        %v1631 = vpop.f32.mrf.mxu0
        %v1632 = vpop.f32.mrf.mxu0
        %v1633 = vadd.f32 %v1453, %v1632
        %v1634 = vpop.f32.mrf.mxu0
        %1635 = vmatprep.mubr.bf16.mxu0 0
        %1636 = vmatmul.mubr.bf16.gmra.mxu0 %v1446
        %v1637 = vpop.f32.mrf.mxu0
        %v1638 = vadd.f32 %v1453, %v1637
        %v1639 = vpop.f32.mrf.mxu0
        %v1640 = vpop.f32.mrf.mxu0
        %v1641 = vadd.f32 %v1453, %v1640
        %v1642 = vpop.f32.mrf.mxu0
        %1643 = vmatprep.mubr.bf16.mxu0 0
        %1644 = vmatmul.mubr.bf16.gmra.mxu0 %v1447
        %v1645 = vpop.f32.mrf.mxu0
        %v1646 = vadd.f32 %v1453, %v1645
        %v1647 = vpop.f32.mrf.mxu0
        %v1648 = vpop.f32.mrf.mxu0
        %v1649 = vadd.f32 %v1453, %v1648
        %v1650 = vpop.f32.mrf.mxu0
        %1651 = vmatprep.mubr.bf16.mxu0 0
        %1652 = vmatmul.mubr.bf16.gmra.mxu0 %v1448
        %v1653 = vpop.f32.mrf.mxu0
        %v1654 = vadd.f32 %v1453, %v1653
        %v1655 = vpop.f32.mrf.mxu0
        %v1656 = vpop.f32.mrf.mxu0
        %v1657 = vadd.f32 %v1453, %v1656
        %v1658 = vpop.f32.mrf.mxu0
        %1659 = vmatprep.mubr.bf16.mxu0 0
        %1660 = vmatmul.mubr.bf16.gmra.mxu0 %v1449
        %v1661 = vpop.f32.mrf.mxu0
        %v1662 = vadd.f32 %v1453, %v1661
        %v1663 = vpop.f32.mrf.mxu0
        %v1664 = vpop.f32.mrf.mxu0
        %v1665 = vadd.f32 %v1453, %v1664
        %v1666 = vpop.f32.mrf.mxu0
        %1667 = vdwg.mxu0
        %v1668 = vmax.f32 %v1630, 0.0
        %v1669 = vmax.f32 %v1633, 0.0
        %v1670 = vmax.f32 %v1638, 0.0
        %v1671 = vmax.f32 %v1641, 0.0
        %v1672 = vmax.f32 %v1646, 0.0
        %v1673 = vmax.f32 %v1649, 0.0
        %v1674 = vmax.f32 %v1654, 0.0
        %v1675 = vmax.f32 %v1657, 0.0
        %v1676 = vmax.f32 %v1662, 0.0
        %v1677 = vmax.f32 %v1665, 0.0
        %v1678 = vadd.f32 %v1668, %v1412
        %v1679 = vadd.f32 %v1669, %v1413
        %v1680 = vadd.f32 %v1670, %v1414
        %v1681 = vadd.f32 %v1671, %v1415
        %v1682 = vadd.f32 %v1672, %v1416
        %v1683 = vadd.f32 %v1673, %v1417
        %v1684 = vadd.f32 %v1674, %v1418
        %v1685 = vadd.f32 %v1675, %v1419
        %v1686 = vadd.f32 %v1676, %v1420
        %v1687 = vadd.f32 %v1677, %v1421
        %s1688 = scalar_lea.vmem [#allocation7], 256
        %v1689 = vld [vmem:[%s1688] sm:$0xf]
        %v1690 = vld [vmem:[%s1688 + $0x4] sm:$0xf]
        %v1691 = vld [vmem:[%s1688 + $0x8] sm:$0xf]
        %v1692 = vld [vmem:[%s1688 + $0xc] sm:$0xf]
        %v1693 = vld [vmem:[%s1688 + $0x10] sm:$0xf]
        %v1694 = vld [vmem:[%s1688 + $0x14] sm:$0xf]
        %v1695 = vld [vmem:[%s1688 + $0x18] sm:$0xf]
        %v1696 = vld [vmem:[%s1688 + $0x1c] sm:$0xf]
        %v1697 = vld [vmem:[%s1688 + $0x20] sm:$0xf]
        %v1698 = vld [vmem:[%s1688 + $0x24] sm:$0xf]
        %v1699 = vld [vmem:[%s1688 + $0x28] sm:$0xf]
        %v1700 = vld [vmem:[%s1688 + $0x2c] sm:$0xf]
        %v1701 = vld [vmem:[%s1688 + $0x30] sm:$0xf]
        %v1702 = vld [vmem:[%s1688 + $0x34] sm:$0xf]
        %v1703 = vld [vmem:[%s1688 + $0x38] sm:$0xf]
        %v1704 = vld [vmem:[%s1688 + $0x3c] sm:$0xf]
        %v1705 = vld [vmem:[#allocation8 + $0x4] sm:$0x1]
        %v1706 = vpack.c.bf16 %v1586, %v1585
        %v1707 = vpack.c.bf16 %v1588, %v1587
        %v1708 = vpack.c.bf16 %v1590, %v1589
        %v1709 = vpack.c.bf16 %v1592, %v1591
        %v1710 = vpack.c.bf16 %v1594, %v1593
        %v1711 = vpack.c.bf16 %v1679, %v1678
        %v1712 = vpack.c.bf16 %v1681, %v1680
        %v1713 = vpack.c.bf16 %v1683, %v1682
        %v1714 = vpack.c.bf16 %v1685, %v1684
        %v1715 = vpack.c.bf16 %v1687, %v1686
        %v1716 = vlaneseq
        %v1717 = vshrl.u32 %v1716, 7
        %v1718 = vsub.s32 0, %v1717
        %v1719 = vrot.slane %v1705, %v1718
        %v1736 = vunpack.c.l.b16 %v1689
        %v1737 = vunpack.c.l.b16 %v1690
        %v1738 = vunpack.c.l.b16 %v1691
        %v1739 = vunpack.c.l.b16 %v1692
        %v1740 = vunpack.c.l.b16 %v1693
        %v1741 = vunpack.c.l.b16 %v1694
        %v1742 = vunpack.c.l.b16 %v1695
        %v1743 = vunpack.c.l.b16 %v1696
        %v1744 = vunpack.c.l.b16 %v1697
        %v1745 = vunpack.c.l.b16 %v1698
        %v1746 = vunpack.c.l.b16 %v1699
        %v1747 = vunpack.c.l.b16 %v1700
        %v1748 = vunpack.c.l.b16 %v1701
        %v1749 = vunpack.c.l.b16 %v1702
        %v1750 = vunpack.c.l.b16 %v1703
        %v1751 = vunpack.c.l.b16 %v1704
        %v1752 = vpack.c.b16 %v1737, %v1736
        %v1753 = vpack.c.b16 %v1739, %v1738
        %v1754 = vpack.c.b16 %v1741, %v1740
        %v1755 = vpack.c.b16 %v1743, %v1742
        %v1756 = vpack.c.b16 %v1745, %v1744
        %v1757 = vpack.c.b16 %v1747, %v1746
        %v1758 = vpack.c.b16 %v1749, %v1748
        %v1759 = vpack.c.b16 %v1751, %v1750
        %1768 = vmatprep.subr.bf16.mxu0 0
        %1769 = vmatpush1.bf16.msra.mxu0 %v1759
        %1770 = vmatprep.subr.bf16.mxu0 0
        %1771 = vmatpush1.bf16.msra.mxu0 %v1758
        %1772 = vmatprep.subr.bf16.mxu0 0
        %1773 = vmatpush1.bf16.msra.mxu0 %v1757
        %1774 = vmatprep.subr.bf16.mxu0 0
        %1775 = vmatpush1.bf16.msra.mxu0 %v1756
        %1776 = vmatprep.subr.bf16.mxu0 0
        %1777 = vmatpush1.bf16.msra.mxu0 %v1755
        %1778 = vmatprep.subr.bf16.mxu0 0
        %1779 = vmatpush1.bf16.msra.mxu0 %v1754
        %1780 = vmatprep.subr.bf16.mxu0 0
        %1781 = vmatpush1.bf16.msra.mxu0 %v1753
        %1782 = vmatprep.subr.bf16.mxu0 0
        %1783 = vmatpush1.bf16.msra.mxu0 %v1752
        %1784 = vmatprep.subr.bf16.mxu0 0
        %1785 = vmatpush2.bf16.msra.mxu0 0
        %1786 = vmatprep.subr.bf16.mxu0 0
        %1787 = vmatpush2.bf16.msra.mxu0 0
        %1788 = vmatprep.subr.bf16.mxu0 0
        %1789 = vmatpush2.bf16.msra.mxu0 0
        %1790 = vmatprep.subr.bf16.mxu0 0
        %1791 = vmatpush2.bf16.msra.mxu0 0
        %1792 = vmatprep.subr.bf16.mxu0 0
        %1793 = vmatpush2.bf16.msra.mxu0 0
        %1794 = vmatprep.subr.bf16.mxu0 0
        %1795 = vmatpush2.bf16.msra.mxu0 0
        %1796 = vmatprep.subr.bf16.mxu0 0
        %1797 = vmatpush2.bf16.msra.mxu0 0
        %1798 = vmatprep.subr.bf16.mxu0 0
        %1799 = vmatpush2.bf16.msra.mxu0 0
        %1800 = vmatprep.mubr.bf16.mxu0 0
        %1801 = vmatmul.mubr.bf16.gmra.mxu0 %v1706
        %v1802 = vpop.f32.mrf.mxu0
        %v1803 = vadd.f32 %v1719, %v1802
        %v1804 = vpop.f32.mrf.mxu0
        %v1805 = vpop.f32.mrf.mxu0
        %v1806 = vadd.f32 %v1719, %v1805
        %v1807 = vpop.f32.mrf.mxu0
        %1808 = vmatprep.mubr.bf16.mxu0 0
        %1809 = vmatmul.mubr.bf16.gmra.mxu0 %v1707
        %v1810 = vpop.f32.mrf.mxu0
        %v1811 = vadd.f32 %v1719, %v1810
        %v1812 = vpop.f32.mrf.mxu0
        %v1813 = vpop.f32.mrf.mxu0
        %v1814 = vadd.f32 %v1719, %v1813
        %v1815 = vpop.f32.mrf.mxu0
        %1816 = vmatprep.mubr.bf16.mxu0 0
        %1817 = vmatmul.mubr.bf16.gmra.mxu0 %v1708
        %v1818 = vpop.f32.mrf.mxu0
        %v1819 = vadd.f32 %v1719, %v1818
        %v1820 = vpop.f32.mrf.mxu0
        %v1821 = vpop.f32.mrf.mxu0
        %v1822 = vadd.f32 %v1719, %v1821
        %v1823 = vpop.f32.mrf.mxu0
        %1824 = vmatprep.mubr.bf16.mxu0 0
        %1825 = vmatmul.mubr.bf16.gmra.mxu0 %v1709
        %v1826 = vpop.f32.mrf.mxu0
        %v1827 = vadd.f32 %v1719, %v1826
        %v1828 = vpop.f32.mrf.mxu0
        %v1829 = vpop.f32.mrf.mxu0
        %v1830 = vadd.f32 %v1719, %v1829
        %v1831 = vpop.f32.mrf.mxu0
        %1832 = vmatprep.mubr.bf16.mxu0 0
        %1833 = vmatmul.mubr.bf16.gmra.mxu0 %v1710
        %v1834 = vpop.f32.mrf.mxu0
        %v1835 = vadd.f32 %v1719, %v1834
        %v1836 = vpop.f32.mrf.mxu0
        %v1837 = vpop.f32.mrf.mxu0
        %v1838 = vadd.f32 %v1719, %v1837
        %v1839 = vpop.f32.mrf.mxu0
        %1840 = vdwg.mxu0
        %v1841 = vmax.f32 %v1803, 0.0
        %v1842 = vmax.f32 %v1806, 0.0
        %v1843 = vmax.f32 %v1811, 0.0
        %v1844 = vmax.f32 %v1814, 0.0
        %v1845 = vmax.f32 %v1819, 0.0
        %v1846 = vmax.f32 %v1822, 0.0
        %v1847 = vmax.f32 %v1827, 0.0
        %v1848 = vmax.f32 %v1830, 0.0
        %v1849 = vmax.f32 %v1835, 0.0
        %v1850 = vmax.f32 %v1838, 0.0
        %v1851 = vadd.f32 %v1841, %v1585
        %v1852 = vadd.f32 %v1842, %v1586
        %v1853 = vadd.f32 %v1843, %v1587
        %v1854 = vadd.f32 %v1844, %v1588
        %v1855 = vadd.f32 %v1845, %v1589
        %v1856 = vadd.f32 %v1846, %v1590
        %v1857 = vadd.f32 %v1847, %v1591
        %v1858 = vadd.f32 %v1848, %v1592
        %v1859 = vadd.f32 %v1849, %v1593
        %v1860 = vadd.f32 %v1850, %v1594
        %1861 = vmatprep.subr.bf16.mxu0 0
        %1862 = vmatpush1.bf16.msra.mxu0 %v1759
        %1863 = vmatprep.subr.bf16.mxu0 0
        %1864 = vmatpush1.bf16.msra.mxu0 %v1758
        %1865 = vmatprep.subr.bf16.mxu0 0
        %1866 = vmatpush1.bf16.msra.mxu0 %v1757
        %1867 = vmatprep.subr.bf16.mxu0 0
        %1868 = vmatpush1.bf16.msra.mxu0 %v1756
        %1869 = vmatprep.subr.bf16.mxu0 0
        %1870 = vmatpush1.bf16.msra.mxu0 %v1755
        %1871 = vmatprep.subr.bf16.mxu0 0
        %1872 = vmatpush1.bf16.msra.mxu0 %v1754
        %1873 = vmatprep.subr.bf16.mxu0 0
        %1874 = vmatpush1.bf16.msra.mxu0 %v1753
        %1875 = vmatprep.subr.bf16.mxu0 0
        %1876 = vmatpush1.bf16.msra.mxu0 %v1752
        %1877 = vmatprep.subr.bf16.mxu0 0
        %1878 = vmatpush2.bf16.msra.mxu0 0
        %1879 = vmatprep.subr.bf16.mxu0 0
        %1880 = vmatpush2.bf16.msra.mxu0 0
        %1881 = vmatprep.subr.bf16.mxu0 0
        %1882 = vmatpush2.bf16.msra.mxu0 0
        %1883 = vmatprep.subr.bf16.mxu0 0
        %1884 = vmatpush2.bf16.msra.mxu0 0
        %1885 = vmatprep.subr.bf16.mxu0 0
        %1886 = vmatpush2.bf16.msra.mxu0 0
        %1887 = vmatprep.subr.bf16.mxu0 0
        %1888 = vmatpush2.bf16.msra.mxu0 0
        %1889 = vmatprep.subr.bf16.mxu0 0
        %1890 = vmatpush2.bf16.msra.mxu0 0
        %1891 = vmatprep.subr.bf16.mxu0 0
        %1892 = vmatpush2.bf16.msra.mxu0 0
        %1893 = vmatprep.mubr.bf16.mxu0 0
        %1894 = vmatmul.mubr.bf16.gmra.mxu0 %v1711
        %v1895 = vpop.f32.mrf.mxu0
        %v1896 = vadd.f32 %v1719, %v1895
        %v1897 = vpop.f32.mrf.mxu0
        %v1898 = vpop.f32.mrf.mxu0
        %v1899 = vadd.f32 %v1719, %v1898
        %v1900 = vpop.f32.mrf.mxu0
        %1901 = vmatprep.mubr.bf16.mxu0 0
        %1902 = vmatmul.mubr.bf16.gmra.mxu0 %v1712
        %v1903 = vpop.f32.mrf.mxu0
        %v1904 = vadd.f32 %v1719, %v1903
        %v1905 = vpop.f32.mrf.mxu0
        %v1906 = vpop.f32.mrf.mxu0
        %v1907 = vadd.f32 %v1719, %v1906
        %v1908 = vpop.f32.mrf.mxu0
        %1909 = vmatprep.mubr.bf16.mxu0 0
        %1910 = vmatmul.mubr.bf16.gmra.mxu0 %v1713
        %v1911 = vpop.f32.mrf.mxu0
        %v1912 = vadd.f32 %v1719, %v1911
        %v1913 = vpop.f32.mrf.mxu0
        %v1914 = vpop.f32.mrf.mxu0
        %v1915 = vadd.f32 %v1719, %v1914
        %v1916 = vpop.f32.mrf.mxu0
        %1917 = vmatprep.mubr.bf16.mxu0 0
        %1918 = vmatmul.mubr.bf16.gmra.mxu0 %v1714
        %v1919 = vpop.f32.mrf.mxu0
        %v1920 = vadd.f32 %v1719, %v1919
        %v1921 = vpop.f32.mrf.mxu0
        %v1922 = vpop.f32.mrf.mxu0
        %v1923 = vadd.f32 %v1719, %v1922
        %v1924 = vpop.f32.mrf.mxu0
        %1925 = vmatprep.mubr.bf16.mxu0 0
        %1926 = vmatmul.mubr.bf16.gmra.mxu0 %v1715
        %v1927 = vpop.f32.mrf.mxu0
        %v1928 = vadd.f32 %v1719, %v1927
        %v1929 = vpop.f32.mrf.mxu0
        %v1930 = vpop.f32.mrf.mxu0
        %v1931 = vadd.f32 %v1719, %v1930
        %v1932 = vpop.f32.mrf.mxu0
        %1933 = vdwg.mxu0
        %v1934 = vmax.f32 %v1896, 0.0
        %v1935 = vmax.f32 %v1899, 0.0
        %v1936 = vmax.f32 %v1904, 0.0
        %v1937 = vmax.f32 %v1907, 0.0
        %v1938 = vmax.f32 %v1912, 0.0
        %v1939 = vmax.f32 %v1915, 0.0
        %v1940 = vmax.f32 %v1920, 0.0
        %v1941 = vmax.f32 %v1923, 0.0
        %v1942 = vmax.f32 %v1928, 0.0
        %v1943 = vmax.f32 %v1931, 0.0
        %v1944 = vadd.f32 %v1934, %v1678
        %v1945 = vadd.f32 %v1935, %v1679
        %v1946 = vadd.f32 %v1936, %v1680
        %v1947 = vadd.f32 %v1937, %v1681
        %v1948 = vadd.f32 %v1938, %v1682
        %v1949 = vadd.f32 %v1939, %v1683
        %v1950 = vadd.f32 %v1940, %v1684
        %v1951 = vadd.f32 %v1941, %v1685
        %v1952 = vadd.f32 %v1942, %v1686
        %v1953 = vadd.f32 %v1943, %v1687
        %s1954 = scalar_lea.vmem [#allocation7], 320
        %v1955 = vld [vmem:[%s1954] sm:$0xf]
        %v1956 = vld [vmem:[%s1954 + $0x4] sm:$0xf]
        %v1957 = vld [vmem:[%s1954 + $0x8] sm:$0xf]
        %v1958 = vld [vmem:[%s1954 + $0xc] sm:$0xf]
        %v1959 = vld [vmem:[%s1954 + $0x10] sm:$0xf]
        %v1960 = vld [vmem:[%s1954 + $0x14] sm:$0xf]
        %v1961 = vld [vmem:[%s1954 + $0x18] sm:$0xf]
        %v1962 = vld [vmem:[%s1954 + $0x1c] sm:$0xf]
        %v1963 = vld [vmem:[%s1954 + $0x20] sm:$0xf]
        %v1964 = vld [vmem:[%s1954 + $0x24] sm:$0xf]
        %v1965 = vld [vmem:[%s1954 + $0x28] sm:$0xf]
        %v1966 = vld [vmem:[%s1954 + $0x2c] sm:$0xf]
        %v1967 = vld [vmem:[%s1954 + $0x30] sm:$0xf]
        %v1968 = vld [vmem:[%s1954 + $0x34] sm:$0xf]
        %v1969 = vld [vmem:[%s1954 + $0x38] sm:$0xf]
        %v1970 = vld [vmem:[%s1954 + $0x3c] sm:$0xf]
        %v1971 = vld [vmem:[#allocation8 + $0x5] sm:$0x1]
        %v1972 = vpack.c.bf16 %v1852, %v1851
        %v1973 = vpack.c.bf16 %v1854, %v1853
        %v1974 = vpack.c.bf16 %v1856, %v1855
        %v1975 = vpack.c.bf16 %v1858, %v1857
        %v1976 = vpack.c.bf16 %v1860, %v1859
        %v1977 = vpack.c.bf16 %v1945, %v1944
        %v1978 = vpack.c.bf16 %v1947, %v1946
        %v1979 = vpack.c.bf16 %v1949, %v1948
        %v1980 = vpack.c.bf16 %v1951, %v1950
        %v1981 = vpack.c.bf16 %v1953, %v1952
        %v1982 = vlaneseq
        %v1983 = vshrl.u32 %v1982, 7
        %v1984 = vsub.s32 0, %v1983
        %v1985 = vrot.slane %v1971, %v1984
        %v2002 = vunpack.c.l.b16 %v1955
        %v2003 = vunpack.c.l.b16 %v1956
        %v2004 = vunpack.c.l.b16 %v1957
        %v2005 = vunpack.c.l.b16 %v1958
        %v2006 = vunpack.c.l.b16 %v1959
        %v2007 = vunpack.c.l.b16 %v1960
        %v2008 = vunpack.c.l.b16 %v1961
        %v2009 = vunpack.c.l.b16 %v1962
        %v2010 = vunpack.c.l.b16 %v1963
        %v2011 = vunpack.c.l.b16 %v1964
        %v2012 = vunpack.c.l.b16 %v1965
        %v2013 = vunpack.c.l.b16 %v1966
        %v2014 = vunpack.c.l.b16 %v1967
        %v2015 = vunpack.c.l.b16 %v1968
        %v2016 = vunpack.c.l.b16 %v1969
        %v2017 = vunpack.c.l.b16 %v1970
        %v2018 = vpack.c.b16 %v2003, %v2002
        %v2019 = vpack.c.b16 %v2005, %v2004
        %v2020 = vpack.c.b16 %v2007, %v2006
        %v2021 = vpack.c.b16 %v2009, %v2008
        %v2022 = vpack.c.b16 %v2011, %v2010
        %v2023 = vpack.c.b16 %v2013, %v2012
        %v2024 = vpack.c.b16 %v2015, %v2014
        %v2025 = vpack.c.b16 %v2017, %v2016
        %2034 = vmatprep.subr.bf16.mxu0 0
        %2035 = vmatpush1.bf16.msra.mxu0 %v2025
        %2036 = vmatprep.subr.bf16.mxu0 0
        %2037 = vmatpush1.bf16.msra.mxu0 %v2024
        %2038 = vmatprep.subr.bf16.mxu0 0
        %2039 = vmatpush1.bf16.msra.mxu0 %v2023
        %2040 = vmatprep.subr.bf16.mxu0 0
        %2041 = vmatpush1.bf16.msra.mxu0 %v2022
        %2042 = vmatprep.subr.bf16.mxu0 0
        %2043 = vmatpush1.bf16.msra.mxu0 %v2021
        %2044 = vmatprep.subr.bf16.mxu0 0
        %2045 = vmatpush1.bf16.msra.mxu0 %v2020
        %2046 = vmatprep.subr.bf16.mxu0 0
        %2047 = vmatpush1.bf16.msra.mxu0 %v2019
        %2048 = vmatprep.subr.bf16.mxu0 0
        %2049 = vmatpush1.bf16.msra.mxu0 %v2018
        %2050 = vmatprep.subr.bf16.mxu0 0
        %2051 = vmatpush2.bf16.msra.mxu0 0
        %2052 = vmatprep.subr.bf16.mxu0 0
        %2053 = vmatpush2.bf16.msra.mxu0 0
        %2054 = vmatprep.subr.bf16.mxu0 0
        %2055 = vmatpush2.bf16.msra.mxu0 0
        %2056 = vmatprep.subr.bf16.mxu0 0
        %2057 = vmatpush2.bf16.msra.mxu0 0
        %2058 = vmatprep.subr.bf16.mxu0 0
        %2059 = vmatpush2.bf16.msra.mxu0 0
        %2060 = vmatprep.subr.bf16.mxu0 0
        %2061 = vmatpush2.bf16.msra.mxu0 0
        %2062 = vmatprep.subr.bf16.mxu0 0
        %2063 = vmatpush2.bf16.msra.mxu0 0
        %2064 = vmatprep.subr.bf16.mxu0 0
        %2065 = vmatpush2.bf16.msra.mxu0 0
        %2066 = vmatprep.mubr.bf16.mxu0 0
        %2067 = vmatmul.mubr.bf16.gmra.mxu0 %v1972
        %v2068 = vpop.f32.mrf.mxu0
        %v2069 = vadd.f32 %v1985, %v2068
        %v2070 = vpop.f32.mrf.mxu0
        %v2071 = vpop.f32.mrf.mxu0
        %v2072 = vadd.f32 %v1985, %v2071
        %v2073 = vpop.f32.mrf.mxu0
        %2074 = vmatprep.mubr.bf16.mxu0 0
        %2075 = vmatmul.mubr.bf16.gmra.mxu0 %v1973
        %v2076 = vpop.f32.mrf.mxu0
        %v2077 = vadd.f32 %v1985, %v2076
        %v2078 = vpop.f32.mrf.mxu0
        %v2079 = vpop.f32.mrf.mxu0
        %v2080 = vadd.f32 %v1985, %v2079
        %v2081 = vpop.f32.mrf.mxu0
        %2082 = vmatprep.mubr.bf16.mxu0 0
        %2083 = vmatmul.mubr.bf16.gmra.mxu0 %v1974
        %v2084 = vpop.f32.mrf.mxu0
        %v2085 = vadd.f32 %v1985, %v2084
        %v2086 = vpop.f32.mrf.mxu0
        %v2087 = vpop.f32.mrf.mxu0
        %v2088 = vadd.f32 %v1985, %v2087
        %v2089 = vpop.f32.mrf.mxu0
        %2090 = vmatprep.mubr.bf16.mxu0 0
        %2091 = vmatmul.mubr.bf16.gmra.mxu0 %v1975
        %v2092 = vpop.f32.mrf.mxu0
        %v2093 = vadd.f32 %v1985, %v2092
        %v2094 = vpop.f32.mrf.mxu0
        %v2095 = vpop.f32.mrf.mxu0
        %v2096 = vadd.f32 %v1985, %v2095
        %v2097 = vpop.f32.mrf.mxu0
        %2098 = vmatprep.mubr.bf16.mxu0 0
        %2099 = vmatmul.mubr.bf16.gmra.mxu0 %v1976
        %v2100 = vpop.f32.mrf.mxu0
        %v2101 = vadd.f32 %v1985, %v2100
        %v2102 = vpop.f32.mrf.mxu0
        %v2103 = vpop.f32.mrf.mxu0
        %v2104 = vadd.f32 %v1985, %v2103
        %v2105 = vpop.f32.mrf.mxu0
        %2106 = vdwg.mxu0
        %v2107 = vmax.f32 %v2069, 0.0
        %v2108 = vmax.f32 %v2072, 0.0
        %v2109 = vmax.f32 %v2077, 0.0
        %v2110 = vmax.f32 %v2080, 0.0
        %v2111 = vmax.f32 %v2085, 0.0
        %v2112 = vmax.f32 %v2088, 0.0
        %v2113 = vmax.f32 %v2093, 0.0
        %v2114 = vmax.f32 %v2096, 0.0
        %v2115 = vmax.f32 %v2101, 0.0
        %v2116 = vmax.f32 %v2104, 0.0
        %v2117 = vadd.f32 %v2107, %v1851
        %v2118 = vadd.f32 %v2108, %v1852
        %v2119 = vadd.f32 %v2109, %v1853
        %v2120 = vadd.f32 %v2110, %v1854
        %v2121 = vadd.f32 %v2111, %v1855
        %v2122 = vadd.f32 %v2112, %v1856
        %v2123 = vadd.f32 %v2113, %v1857
        %v2124 = vadd.f32 %v2114, %v1858
        %v2125 = vadd.f32 %v2115, %v1859
        %v2126 = vadd.f32 %v2116, %v1860
        %2127 = vmatprep.subr.bf16.mxu0 0
        %2128 = vmatpush1.bf16.msra.mxu0 %v2025
        %2129 = vmatprep.subr.bf16.mxu0 0
        %2130 = vmatpush1.bf16.msra.mxu0 %v2024
        %2131 = vmatprep.subr.bf16.mxu0 0
        %2132 = vmatpush1.bf16.msra.mxu0 %v2023
        %2133 = vmatprep.subr.bf16.mxu0 0
        %2134 = vmatpush1.bf16.msra.mxu0 %v2022
        %2135 = vmatprep.subr.bf16.mxu0 0
        %2136 = vmatpush1.bf16.msra.mxu0 %v2021
        %2137 = vmatprep.subr.bf16.mxu0 0
        %2138 = vmatpush1.bf16.msra.mxu0 %v2020
        %2139 = vmatprep.subr.bf16.mxu0 0
        %2140 = vmatpush1.bf16.msra.mxu0 %v2019
        %2141 = vmatprep.subr.bf16.mxu0 0
        %2142 = vmatpush1.bf16.msra.mxu0 %v2018
        %2143 = vmatprep.subr.bf16.mxu0 0
        %2144 = vmatpush2.bf16.msra.mxu0 0
        %2145 = vmatprep.subr.bf16.mxu0 0
        %2146 = vmatpush2.bf16.msra.mxu0 0
        %2147 = vmatprep.subr.bf16.mxu0 0
        %2148 = vmatpush2.bf16.msra.mxu0 0
        %2149 = vmatprep.subr.bf16.mxu0 0
        %2150 = vmatpush2.bf16.msra.mxu0 0
        %2151 = vmatprep.subr.bf16.mxu0 0
        %2152 = vmatpush2.bf16.msra.mxu0 0
        %2153 = vmatprep.subr.bf16.mxu0 0
        %2154 = vmatpush2.bf16.msra.mxu0 0
        %2155 = vmatprep.subr.bf16.mxu0 0
        %2156 = vmatpush2.bf16.msra.mxu0 0
        %2157 = vmatprep.subr.bf16.mxu0 0
        %2158 = vmatpush2.bf16.msra.mxu0 0
        %2159 = vmatprep.mubr.bf16.mxu0 0
        %2160 = vmatmul.mubr.bf16.gmra.mxu0 %v1977
        %v2161 = vpop.f32.mrf.mxu0
        %v2162 = vadd.f32 %v1985, %v2161
        %v2163 = vpop.f32.mrf.mxu0
        %v2164 = vpop.f32.mrf.mxu0
        %v2165 = vadd.f32 %v1985, %v2164
        %v2166 = vpop.f32.mrf.mxu0
        %2167 = vmatprep.mubr.bf16.mxu0 0
        %2168 = vmatmul.mubr.bf16.gmra.mxu0 %v1978
        %v2169 = vpop.f32.mrf.mxu0
        %v2170 = vadd.f32 %v1985, %v2169
        %v2171 = vpop.f32.mrf.mxu0
        %v2172 = vpop.f32.mrf.mxu0
        %v2173 = vadd.f32 %v1985, %v2172
        %v2174 = vpop.f32.mrf.mxu0
        %2175 = vmatprep.mubr.bf16.mxu0 0
        %2176 = vmatmul.mubr.bf16.gmra.mxu0 %v1979
        %v2177 = vpop.f32.mrf.mxu0
        %v2178 = vadd.f32 %v1985, %v2177
        %v2179 = vpop.f32.mrf.mxu0
        %v2180 = vpop.f32.mrf.mxu0
        %v2181 = vadd.f32 %v1985, %v2180
        %v2182 = vpop.f32.mrf.mxu0
        %2183 = vmatprep.mubr.bf16.mxu0 0
        %2184 = vmatmul.mubr.bf16.gmra.mxu0 %v1980
        %v2185 = vpop.f32.mrf.mxu0
        %v2186 = vadd.f32 %v1985, %v2185
        %v2187 = vpop.f32.mrf.mxu0
        %v2188 = vpop.f32.mrf.mxu0
        %v2189 = vadd.f32 %v1985, %v2188
        %v2190 = vpop.f32.mrf.mxu0
        %2191 = vmatprep.mubr.bf16.mxu0 0
        %2192 = vmatmul.mubr.bf16.gmra.mxu0 %v1981
        %v2193 = vpop.f32.mrf.mxu0
        %v2194 = vadd.f32 %v1985, %v2193
        %v2195 = vpop.f32.mrf.mxu0
        %v2196 = vpop.f32.mrf.mxu0
        %v2197 = vadd.f32 %v1985, %v2196
        %v2198 = vpop.f32.mrf.mxu0
        %2199 = vdwg.mxu0
        %v2200 = vmax.f32 %v2162, 0.0
        %v2201 = vmax.f32 %v2165, 0.0
        %v2202 = vmax.f32 %v2170, 0.0
        %v2203 = vmax.f32 %v2173, 0.0
        %v2204 = vmax.f32 %v2178, 0.0
        %v2205 = vmax.f32 %v2181, 0.0
        %v2206 = vmax.f32 %v2186, 0.0
        %v2207 = vmax.f32 %v2189, 0.0
        %v2208 = vmax.f32 %v2194, 0.0
        %v2209 = vmax.f32 %v2197, 0.0
        %v2210 = vadd.f32 %v2200, %v1944
        %v2211 = vadd.f32 %v2201, %v1945
        %v2212 = vadd.f32 %v2202, %v1946
        %v2213 = vadd.f32 %v2203, %v1947
        %v2214 = vadd.f32 %v2204, %v1948
        %v2215 = vadd.f32 %v2205, %v1949
        %v2216 = vadd.f32 %v2206, %v1950
        %v2217 = vadd.f32 %v2207, %v1951
        %v2218 = vadd.f32 %v2208, %v1952
        %v2219 = vadd.f32 %v2209, %v1953
        %s2220 = scalar_lea.vmem [#allocation7], 384
        %v2221 = vld [vmem:[%s2220] sm:$0xf]
        %v2222 = vld [vmem:[%s2220 + $0x4] sm:$0xf]
        %v2223 = vld [vmem:[%s2220 + $0x8] sm:$0xf]
        %v2224 = vld [vmem:[%s2220 + $0xc] sm:$0xf]
        %v2225 = vld [vmem:[%s2220 + $0x10] sm:$0xf]
        %v2226 = vld [vmem:[%s2220 + $0x14] sm:$0xf]
        %v2227 = vld [vmem:[%s2220 + $0x18] sm:$0xf]
        %v2228 = vld [vmem:[%s2220 + $0x1c] sm:$0xf]
        %v2229 = vld [vmem:[%s2220 + $0x20] sm:$0xf]
        %v2230 = vld [vmem:[%s2220 + $0x24] sm:$0xf]
        %v2231 = vld [vmem:[%s2220 + $0x28] sm:$0xf]
        %v2232 = vld [vmem:[%s2220 + $0x2c] sm:$0xf]
        %v2233 = vld [vmem:[%s2220 + $0x30] sm:$0xf]
        %v2234 = vld [vmem:[%s2220 + $0x34] sm:$0xf]
        %v2235 = vld [vmem:[%s2220 + $0x38] sm:$0xf]
        %v2236 = vld [vmem:[%s2220 + $0x3c] sm:$0xf]
        %v2237 = vld [vmem:[#allocation8 + $0x6] sm:$0x1]
        %v2238 = vpack.c.bf16 %v2118, %v2117
        %v2239 = vpack.c.bf16 %v2120, %v2119
        %v2240 = vpack.c.bf16 %v2122, %v2121
        %v2241 = vpack.c.bf16 %v2124, %v2123
        %v2242 = vpack.c.bf16 %v2126, %v2125
        %v2243 = vpack.c.bf16 %v2211, %v2210
        %v2244 = vpack.c.bf16 %v2213, %v2212
        %v2245 = vpack.c.bf16 %v2215, %v2214
        %v2246 = vpack.c.bf16 %v2217, %v2216
        %v2247 = vpack.c.bf16 %v2219, %v2218
        %v2248 = vlaneseq
        %v2249 = vshrl.u32 %v2248, 7
        %v2250 = vsub.s32 0, %v2249
        %v2251 = vrot.slane %v2237, %v2250
        %v2268 = vunpack.c.l.b16 %v2221
        %v2269 = vunpack.c.l.b16 %v2222
        %v2270 = vunpack.c.l.b16 %v2223
        %v2271 = vunpack.c.l.b16 %v2224
        %v2272 = vunpack.c.l.b16 %v2225
        %v2273 = vunpack.c.l.b16 %v2226
        %v2274 = vunpack.c.l.b16 %v2227
        %v2275 = vunpack.c.l.b16 %v2228
        %v2276 = vunpack.c.l.b16 %v2229
        %v2277 = vunpack.c.l.b16 %v2230
        %v2278 = vunpack.c.l.b16 %v2231
        %v2279 = vunpack.c.l.b16 %v2232
        %v2280 = vunpack.c.l.b16 %v2233
        %v2281 = vunpack.c.l.b16 %v2234
        %v2282 = vunpack.c.l.b16 %v2235
        %v2283 = vunpack.c.l.b16 %v2236
        %v2284 = vpack.c.b16 %v2269, %v2268
        %v2285 = vpack.c.b16 %v2271, %v2270
        %v2286 = vpack.c.b16 %v2273, %v2272
        %v2287 = vpack.c.b16 %v2275, %v2274
        %v2288 = vpack.c.b16 %v2277, %v2276
        %v2289 = vpack.c.b16 %v2279, %v2278
        %v2290 = vpack.c.b16 %v2281, %v2280
        %v2291 = vpack.c.b16 %v2283, %v2282
        %2300 = vmatprep.subr.bf16.mxu0 0
        %2301 = vmatpush1.bf16.msra.mxu0 %v2291
        %2302 = vmatprep.subr.bf16.mxu0 0
        %2303 = vmatpush1.bf16.msra.mxu0 %v2290
        %2304 = vmatprep.subr.bf16.mxu0 0
        %2305 = vmatpush1.bf16.msra.mxu0 %v2289
        %2306 = vmatprep.subr.bf16.mxu0 0
        %2307 = vmatpush1.bf16.msra.mxu0 %v2288
        %2308 = vmatprep.subr.bf16.mxu0 0
        %2309 = vmatpush1.bf16.msra.mxu0 %v2287
        %2310 = vmatprep.subr.bf16.mxu0 0
        %2311 = vmatpush1.bf16.msra.mxu0 %v2286
        %2312 = vmatprep.subr.bf16.mxu0 0
        %2313 = vmatpush1.bf16.msra.mxu0 %v2285
        %2314 = vmatprep.subr.bf16.mxu0 0
        %2315 = vmatpush1.bf16.msra.mxu0 %v2284
        %2316 = vmatprep.subr.bf16.mxu0 0
        %2317 = vmatpush2.bf16.msra.mxu0 0
        %2318 = vmatprep.subr.bf16.mxu0 0
        %2319 = vmatpush2.bf16.msra.mxu0 0
        %2320 = vmatprep.subr.bf16.mxu0 0
        %2321 = vmatpush2.bf16.msra.mxu0 0
        %2322 = vmatprep.subr.bf16.mxu0 0
        %2323 = vmatpush2.bf16.msra.mxu0 0
        %2324 = vmatprep.subr.bf16.mxu0 0
        %2325 = vmatpush2.bf16.msra.mxu0 0
        %2326 = vmatprep.subr.bf16.mxu0 0
        %2327 = vmatpush2.bf16.msra.mxu0 0
        %2328 = vmatprep.subr.bf16.mxu0 0
        %2329 = vmatpush2.bf16.msra.mxu0 0
        %2330 = vmatprep.subr.bf16.mxu0 0
        %2331 = vmatpush2.bf16.msra.mxu0 0
        %2332 = vmatprep.mubr.bf16.mxu0 0
        %2333 = vmatmul.mubr.bf16.gmra.mxu0 %v2238
        %v2334 = vpop.f32.mrf.mxu0
        %v2335 = vadd.f32 %v2251, %v2334
        %v2336 = vpop.f32.mrf.mxu0
        %v2337 = vpop.f32.mrf.mxu0
        %v2338 = vadd.f32 %v2251, %v2337
        %v2339 = vpop.f32.mrf.mxu0
        %2340 = vmatprep.mubr.bf16.mxu0 0
        %2341 = vmatmul.mubr.bf16.gmra.mxu0 %v2239
        %v2342 = vpop.f32.mrf.mxu0
        %v2343 = vadd.f32 %v2251, %v2342
        %v2344 = vpop.f32.mrf.mxu0
        %v2345 = vpop.f32.mrf.mxu0
        %v2346 = vadd.f32 %v2251, %v2345
        %v2347 = vpop.f32.mrf.mxu0
        %2348 = vmatprep.mubr.bf16.mxu0 0
        %2349 = vmatmul.mubr.bf16.gmra.mxu0 %v2240
        %v2350 = vpop.f32.mrf.mxu0
        %v2351 = vadd.f32 %v2251, %v2350
        %v2352 = vpop.f32.mrf.mxu0
        %v2353 = vpop.f32.mrf.mxu0
        %v2354 = vadd.f32 %v2251, %v2353
        %v2355 = vpop.f32.mrf.mxu0
        %2356 = vmatprep.mubr.bf16.mxu0 0
        %2357 = vmatmul.mubr.bf16.gmra.mxu0 %v2241
        %v2358 = vpop.f32.mrf.mxu0
        %v2359 = vadd.f32 %v2251, %v2358
        %v2360 = vpop.f32.mrf.mxu0
        %v2361 = vpop.f32.mrf.mxu0
        %v2362 = vadd.f32 %v2251, %v2361
        %v2363 = vpop.f32.mrf.mxu0
        %2364 = vmatprep.mubr.bf16.mxu0 0
        %2365 = vmatmul.mubr.bf16.gmra.mxu0 %v2242
        %v2366 = vpop.f32.mrf.mxu0
        %v2367 = vadd.f32 %v2251, %v2366
        %v2368 = vpop.f32.mrf.mxu0
        %v2369 = vpop.f32.mrf.mxu0
        %v2370 = vadd.f32 %v2251, %v2369
        %v2371 = vpop.f32.mrf.mxu0
        %2372 = vdwg.mxu0
        %v2373 = vmax.f32 %v2335, 0.0
        %v2374 = vmax.f32 %v2338, 0.0
        %v2375 = vmax.f32 %v2343, 0.0
        %v2376 = vmax.f32 %v2346, 0.0
        %v2377 = vmax.f32 %v2351, 0.0
        %v2378 = vmax.f32 %v2354, 0.0
        %v2379 = vmax.f32 %v2359, 0.0
        %v2380 = vmax.f32 %v2362, 0.0
        %v2381 = vmax.f32 %v2367, 0.0
        %v2382 = vmax.f32 %v2370, 0.0
        %v2383 = vadd.f32 %v2373, %v2117
        %v2384 = vadd.f32 %v2374, %v2118
        %v2385 = vadd.f32 %v2375, %v2119
        %v2386 = vadd.f32 %v2376, %v2120
        %v2387 = vadd.f32 %v2377, %v2121
        %v2388 = vadd.f32 %v2378, %v2122
        %v2389 = vadd.f32 %v2379, %v2123
        %v2390 = vadd.f32 %v2380, %v2124
        %v2391 = vadd.f32 %v2381, %v2125
        %v2392 = vadd.f32 %v2382, %v2126
        %2393 = vmatprep.subr.bf16.mxu0 0
        %2394 = vmatpush1.bf16.msra.mxu0 %v2291
        %2395 = vmatprep.subr.bf16.mxu0 0
        %2396 = vmatpush1.bf16.msra.mxu0 %v2290
        %2397 = vmatprep.subr.bf16.mxu0 0
        %2398 = vmatpush1.bf16.msra.mxu0 %v2289
        %2399 = vmatprep.subr.bf16.mxu0 0
        %2400 = vmatpush1.bf16.msra.mxu0 %v2288
        %2401 = vmatprep.subr.bf16.mxu0 0
        %2402 = vmatpush1.bf16.msra.mxu0 %v2287
        %2403 = vmatprep.subr.bf16.mxu0 0
        %2404 = vmatpush1.bf16.msra.mxu0 %v2286
        %2405 = vmatprep.subr.bf16.mxu0 0
        %2406 = vmatpush1.bf16.msra.mxu0 %v2285
        %2407 = vmatprep.subr.bf16.mxu0 0
        %2408 = vmatpush1.bf16.msra.mxu0 %v2284
        %2409 = vmatprep.subr.bf16.mxu0 0
        %2410 = vmatpush2.bf16.msra.mxu0 0
        %2411 = vmatprep.subr.bf16.mxu0 0
        %2412 = vmatpush2.bf16.msra.mxu0 0
        %2413 = vmatprep.subr.bf16.mxu0 0
        %2414 = vmatpush2.bf16.msra.mxu0 0
        %2415 = vmatprep.subr.bf16.mxu0 0
        %2416 = vmatpush2.bf16.msra.mxu0 0
        %2417 = vmatprep.subr.bf16.mxu0 0
        %2418 = vmatpush2.bf16.msra.mxu0 0
        %2419 = vmatprep.subr.bf16.mxu0 0
        %2420 = vmatpush2.bf16.msra.mxu0 0
        %2421 = vmatprep.subr.bf16.mxu0 0
        %2422 = vmatpush2.bf16.msra.mxu0 0
        %2423 = vmatprep.subr.bf16.mxu0 0
        %2424 = vmatpush2.bf16.msra.mxu0 0
        %2425 = vmatprep.mubr.bf16.mxu0 0
        %2426 = vmatmul.mubr.bf16.gmra.mxu0 %v2243
        %v2427 = vpop.f32.mrf.mxu0
        %v2428 = vadd.f32 %v2251, %v2427
        %v2429 = vpop.f32.mrf.mxu0
        %v2430 = vpop.f32.mrf.mxu0
        %v2431 = vadd.f32 %v2251, %v2430
        %v2432 = vpop.f32.mrf.mxu0
        %2433 = vmatprep.mubr.bf16.mxu0 0
        %2434 = vmatmul.mubr.bf16.gmra.mxu0 %v2244
        %v2435 = vpop.f32.mrf.mxu0
        %v2436 = vadd.f32 %v2251, %v2435
        %v2437 = vpop.f32.mrf.mxu0
        %v2438 = vpop.f32.mrf.mxu0
        %v2439 = vadd.f32 %v2251, %v2438
        %v2440 = vpop.f32.mrf.mxu0
        %2441 = vmatprep.mubr.bf16.mxu0 0
        %2442 = vmatmul.mubr.bf16.gmra.mxu0 %v2245
        %v2443 = vpop.f32.mrf.mxu0
        %v2444 = vadd.f32 %v2251, %v2443
        %v2445 = vpop.f32.mrf.mxu0
        %v2446 = vpop.f32.mrf.mxu0
        %v2447 = vadd.f32 %v2251, %v2446
        %v2448 = vpop.f32.mrf.mxu0
        %2449 = vmatprep.mubr.bf16.mxu0 0
        %2450 = vmatmul.mubr.bf16.gmra.mxu0 %v2246
        %v2451 = vpop.f32.mrf.mxu0
        %v2452 = vadd.f32 %v2251, %v2451
        %v2453 = vpop.f32.mrf.mxu0
        %v2454 = vpop.f32.mrf.mxu0
        %v2455 = vadd.f32 %v2251, %v2454
        %v2456 = vpop.f32.mrf.mxu0
        %2457 = vmatprep.mubr.bf16.mxu0 0
        %2458 = vmatmul.mubr.bf16.gmra.mxu0 %v2247
        %v2459 = vpop.f32.mrf.mxu0
        %v2460 = vadd.f32 %v2251, %v2459
        %v2461 = vpop.f32.mrf.mxu0
        %v2462 = vpop.f32.mrf.mxu0
        %v2463 = vadd.f32 %v2251, %v2462
        %v2464 = vpop.f32.mrf.mxu0
        %2465 = vdwg.mxu0
        %v2466 = vmax.f32 %v2428, 0.0
        %v2467 = vmax.f32 %v2431, 0.0
        %v2468 = vmax.f32 %v2436, 0.0
        %v2469 = vmax.f32 %v2439, 0.0
        %v2470 = vmax.f32 %v2444, 0.0
        %v2471 = vmax.f32 %v2447, 0.0
        %v2472 = vmax.f32 %v2452, 0.0
        %v2473 = vmax.f32 %v2455, 0.0
        %v2474 = vmax.f32 %v2460, 0.0
        %v2475 = vmax.f32 %v2463, 0.0
        %v2476 = vadd.f32 %v2466, %v2210
        %v2477 = vadd.f32 %v2467, %v2211
        %v2478 = vadd.f32 %v2468, %v2212
        %v2479 = vadd.f32 %v2469, %v2213
        %v2480 = vadd.f32 %v2470, %v2214
        %v2481 = vadd.f32 %v2471, %v2215
        %v2482 = vadd.f32 %v2472, %v2216
        %v2483 = vadd.f32 %v2473, %v2217
        %v2484 = vadd.f32 %v2474, %v2218
        %v2485 = vadd.f32 %v2475, %v2219
        %s2486 = scalar_lea.vmem [#allocation7], 448
        %v2487 = vld [vmem:[%s2486] sm:$0xf]
        %v2488 = vld [vmem:[%s2486 + $0x4] sm:$0xf]
        %v2489 = vld [vmem:[%s2486 + $0x8] sm:$0xf]
        %v2490 = vld [vmem:[%s2486 + $0xc] sm:$0xf]
        %v2491 = vld [vmem:[%s2486 + $0x10] sm:$0xf]
        %v2492 = vld [vmem:[%s2486 + $0x14] sm:$0xf]
        %v2493 = vld [vmem:[%s2486 + $0x18] sm:$0xf]
        %v2494 = vld [vmem:[%s2486 + $0x1c] sm:$0xf]
        %v2495 = vld [vmem:[%s2486 + $0x20] sm:$0xf]
        %v2496 = vld [vmem:[%s2486 + $0x24] sm:$0xf]
        %v2497 = vld [vmem:[%s2486 + $0x28] sm:$0xf]
        %v2498 = vld [vmem:[%s2486 + $0x2c] sm:$0xf]
        %v2499 = vld [vmem:[%s2486 + $0x30] sm:$0xf]
        %v2500 = vld [vmem:[%s2486 + $0x34] sm:$0xf]
        %v2501 = vld [vmem:[%s2486 + $0x38] sm:$0xf]
        %v2502 = vld [vmem:[%s2486 + $0x3c] sm:$0xf]
        %v2503 = vld [vmem:[#allocation8 + $0x7] sm:$0x1]
        %v2504 = vpack.c.bf16 %v2384, %v2383
        %v2505 = vpack.c.bf16 %v2386, %v2385
        %v2506 = vpack.c.bf16 %v2388, %v2387
        %v2507 = vpack.c.bf16 %v2390, %v2389
        %v2508 = vpack.c.bf16 %v2392, %v2391
        %v2509 = vpack.c.bf16 %v2477, %v2476
        %v2510 = vpack.c.bf16 %v2479, %v2478
        %v2511 = vpack.c.bf16 %v2481, %v2480
        %v2512 = vpack.c.bf16 %v2483, %v2482
        %v2513 = vpack.c.bf16 %v2485, %v2484
        %v2514 = vlaneseq
        %v2515 = vshrl.u32 %v2514, 7
        %v2516 = vsub.s32 0, %v2515
        %v2517 = vrot.slane %v2503, %v2516
        %v2534 = vunpack.c.l.b16 %v2487
        %v2535 = vunpack.c.l.b16 %v2488
        %v2536 = vunpack.c.l.b16 %v2489
        %v2537 = vunpack.c.l.b16 %v2490
        %v2538 = vunpack.c.l.b16 %v2491
        %v2539 = vunpack.c.l.b16 %v2492
        %v2540 = vunpack.c.l.b16 %v2493
        %v2541 = vunpack.c.l.b16 %v2494
        %v2542 = vunpack.c.l.b16 %v2495
        %v2543 = vunpack.c.l.b16 %v2496
        %v2544 = vunpack.c.l.b16 %v2497
        %v2545 = vunpack.c.l.b16 %v2498
        %v2546 = vunpack.c.l.b16 %v2499
        %v2547 = vunpack.c.l.b16 %v2500
        %v2548 = vunpack.c.l.b16 %v2501
        %v2549 = vunpack.c.l.b16 %v2502
        %v2550 = vpack.c.b16 %v2535, %v2534
        %v2551 = vpack.c.b16 %v2537, %v2536
        %v2552 = vpack.c.b16 %v2539, %v2538
        %v2553 = vpack.c.b16 %v2541, %v2540
        %v2554 = vpack.c.b16 %v2543, %v2542
        %v2555 = vpack.c.b16 %v2545, %v2544
        %v2556 = vpack.c.b16 %v2547, %v2546
        %v2557 = vpack.c.b16 %v2549, %v2548
        %2566 = vmatprep.subr.bf16.mxu0 0
        %2567 = vmatpush1.bf16.msra.mxu0 %v2557
        %2568 = vmatprep.subr.bf16.mxu0 0
        %2569 = vmatpush1.bf16.msra.mxu0 %v2556
        %2570 = vmatprep.subr.bf16.mxu0 0
        %2571 = vmatpush1.bf16.msra.mxu0 %v2555
        %2572 = vmatprep.subr.bf16.mxu0 0
        %2573 = vmatpush1.bf16.msra.mxu0 %v2554
        %2574 = vmatprep.subr.bf16.mxu0 0
        %2575 = vmatpush1.bf16.msra.mxu0 %v2553
        %2576 = vmatprep.subr.bf16.mxu0 0
        %2577 = vmatpush1.bf16.msra.mxu0 %v2552
        %2578 = vmatprep.subr.bf16.mxu0 0
        %2579 = vmatpush1.bf16.msra.mxu0 %v2551
        %2580 = vmatprep.subr.bf16.mxu0 0
        %2581 = vmatpush1.bf16.msra.mxu0 %v2550
        %2582 = vmatprep.subr.bf16.mxu0 0
        %2583 = vmatpush2.bf16.msra.mxu0 0
        %2584 = vmatprep.subr.bf16.mxu0 0
        %2585 = vmatpush2.bf16.msra.mxu0 0
        %2586 = vmatprep.subr.bf16.mxu0 0
        %2587 = vmatpush2.bf16.msra.mxu0 0
        %2588 = vmatprep.subr.bf16.mxu0 0
        %2589 = vmatpush2.bf16.msra.mxu0 0
        %2590 = vmatprep.subr.bf16.mxu0 0
        %2591 = vmatpush2.bf16.msra.mxu0 0
        %2592 = vmatprep.subr.bf16.mxu0 0
        %2593 = vmatpush2.bf16.msra.mxu0 0
        %2594 = vmatprep.subr.bf16.mxu0 0
        %2595 = vmatpush2.bf16.msra.mxu0 0
        %2596 = vmatprep.subr.bf16.mxu0 0
        %2597 = vmatpush2.bf16.msra.mxu0 0
        %2598 = vmatprep.mubr.bf16.mxu0 0
        %2599 = vmatmul.mubr.bf16.gmra.mxu0 %v2504
        %v2600 = vpop.f32.mrf.mxu0
        %v2601 = vadd.f32 %v2517, %v2600
        %v2602 = vpop.f32.mrf.mxu0
        %v2603 = vpop.f32.mrf.mxu0
        %v2604 = vadd.f32 %v2517, %v2603
        %v2605 = vpop.f32.mrf.mxu0
        %2606 = vmatprep.mubr.bf16.mxu0 0
        %2607 = vmatmul.mubr.bf16.gmra.mxu0 %v2505
        %v2608 = vpop.f32.mrf.mxu0
        %v2609 = vadd.f32 %v2517, %v2608
        %v2610 = vpop.f32.mrf.mxu0
        %v2611 = vpop.f32.mrf.mxu0
        %v2612 = vadd.f32 %v2517, %v2611
        %v2613 = vpop.f32.mrf.mxu0
        %2614 = vmatprep.mubr.bf16.mxu0 0
        %2615 = vmatmul.mubr.bf16.gmra.mxu0 %v2506
        %v2616 = vpop.f32.mrf.mxu0
        %v2617 = vadd.f32 %v2517, %v2616
        %v2618 = vpop.f32.mrf.mxu0
        %v2619 = vpop.f32.mrf.mxu0
        %v2620 = vadd.f32 %v2517, %v2619
        %v2621 = vpop.f32.mrf.mxu0
        %2622 = vmatprep.mubr.bf16.mxu0 0
        %2623 = vmatmul.mubr.bf16.gmra.mxu0 %v2507
        %v2624 = vpop.f32.mrf.mxu0
        %v2625 = vadd.f32 %v2517, %v2624
        %v2626 = vpop.f32.mrf.mxu0
        %v2627 = vpop.f32.mrf.mxu0
        %v2628 = vadd.f32 %v2517, %v2627
        %v2629 = vpop.f32.mrf.mxu0
        %2630 = vmatprep.mubr.bf16.mxu0 0
        %2631 = vmatmul.mubr.bf16.gmra.mxu0 %v2508
        %v2632 = vpop.f32.mrf.mxu0
        %v2633 = vadd.f32 %v2517, %v2632
        %v2634 = vpop.f32.mrf.mxu0
        %v2635 = vpop.f32.mrf.mxu0
        %v2636 = vadd.f32 %v2517, %v2635
        %v2637 = vpop.f32.mrf.mxu0
        %2638 = vdwg.mxu0
        %v2639 = vmax.f32 %v2601, 0.0
        %v2640 = vmax.f32 %v2604, 0.0
        %v2641 = vmax.f32 %v2609, 0.0
        %v2642 = vmax.f32 %v2612, 0.0
        %v2643 = vmax.f32 %v2617, 0.0
        %v2644 = vmax.f32 %v2620, 0.0
        %v2645 = vmax.f32 %v2625, 0.0
        %v2646 = vmax.f32 %v2628, 0.0
        %v2647 = vmax.f32 %v2633, 0.0
        %v2648 = vmax.f32 %v2636, 0.0
        %v2649 = vadd.f32 %v2639, %v2383
        %v2650 = vadd.f32 %v2640, %v2384
        %v2651 = vadd.f32 %v2641, %v2385
        %v2652 = vadd.f32 %v2642, %v2386
        %v2653 = vadd.f32 %v2643, %v2387
        %v2654 = vadd.f32 %v2644, %v2388
        %v2655 = vadd.f32 %v2645, %v2389
        %v2656 = vadd.f32 %v2646, %v2390
        %v2657 = vadd.f32 %v2647, %v2391
        %v2658 = vadd.f32 %v2648, %v2392
        %2659 = vmatprep.subr.bf16.mxu0 0
        %2660 = vmatpush1.bf16.msra.mxu0 %v2557
        %2661 = vmatprep.subr.bf16.mxu0 0
        %2662 = vmatpush1.bf16.msra.mxu0 %v2556
        %2663 = vmatprep.subr.bf16.mxu0 0
        %2664 = vmatpush1.bf16.msra.mxu0 %v2555
        %2665 = vmatprep.subr.bf16.mxu0 0
        %2666 = vmatpush1.bf16.msra.mxu0 %v2554
        %2667 = vmatprep.subr.bf16.mxu0 0
        %2668 = vmatpush1.bf16.msra.mxu0 %v2553
        %2669 = vmatprep.subr.bf16.mxu0 0
        %2670 = vmatpush1.bf16.msra.mxu0 %v2552
        %2671 = vmatprep.subr.bf16.mxu0 0
        %2672 = vmatpush1.bf16.msra.mxu0 %v2551
        %2673 = vmatprep.subr.bf16.mxu0 0
        %2674 = vmatpush1.bf16.msra.mxu0 %v2550
        %2675 = vmatprep.subr.bf16.mxu0 0
        %2676 = vmatpush2.bf16.msra.mxu0 0
        %2677 = vmatprep.subr.bf16.mxu0 0
        %2678 = vmatpush2.bf16.msra.mxu0 0
        %2679 = vmatprep.subr.bf16.mxu0 0
        %2680 = vmatpush2.bf16.msra.mxu0 0
        %2681 = vmatprep.subr.bf16.mxu0 0
        %2682 = vmatpush2.bf16.msra.mxu0 0
        %2683 = vmatprep.subr.bf16.mxu0 0
        %2684 = vmatpush2.bf16.msra.mxu0 0
        %2685 = vmatprep.subr.bf16.mxu0 0
        %2686 = vmatpush2.bf16.msra.mxu0 0
        %2687 = vmatprep.subr.bf16.mxu0 0
        %2688 = vmatpush2.bf16.msra.mxu0 0
        %2689 = vmatprep.subr.bf16.mxu0 0
        %2690 = vmatpush2.bf16.msra.mxu0 0
        %2691 = vmatprep.mubr.bf16.mxu0 0
        %2692 = vmatmul.mubr.bf16.gmra.mxu0 %v2509
        %v2693 = vpop.f32.mrf.mxu0
        %v2694 = vadd.f32 %v2517, %v2693
        %v2695 = vpop.f32.mrf.mxu0
        %v2696 = vpop.f32.mrf.mxu0
        %v2697 = vadd.f32 %v2517, %v2696
        %v2698 = vpop.f32.mrf.mxu0
        %2699 = vmatprep.mubr.bf16.mxu0 0
        %2700 = vmatmul.mubr.bf16.gmra.mxu0 %v2510
        %v2701 = vpop.f32.mrf.mxu0
        %v2702 = vadd.f32 %v2517, %v2701
        %v2703 = vpop.f32.mrf.mxu0
        %v2704 = vpop.f32.mrf.mxu0
        %v2705 = vadd.f32 %v2517, %v2704
        %v2706 = vpop.f32.mrf.mxu0
        %2707 = vmatprep.mubr.bf16.mxu0 0
        %2708 = vmatmul.mubr.bf16.gmra.mxu0 %v2511
        %v2709 = vpop.f32.mrf.mxu0
        %v2710 = vadd.f32 %v2517, %v2709
        %v2711 = vpop.f32.mrf.mxu0
        %v2712 = vpop.f32.mrf.mxu0
        %v2713 = vadd.f32 %v2517, %v2712
        %v2714 = vpop.f32.mrf.mxu0
        %2715 = vmatprep.mubr.bf16.mxu0 0
        %2716 = vmatmul.mubr.bf16.gmra.mxu0 %v2512
        %v2717 = vpop.f32.mrf.mxu0
        %v2718 = vadd.f32 %v2517, %v2717
        %v2719 = vpop.f32.mrf.mxu0
        %v2720 = vpop.f32.mrf.mxu0
        %v2721 = vadd.f32 %v2517, %v2720
        %v2722 = vpop.f32.mrf.mxu0
        %2723 = vmatprep.mubr.bf16.mxu0 0
        %2724 = vmatmul.mubr.bf16.gmra.mxu0 %v2513
        %v2725 = vpop.f32.mrf.mxu0
        %v2726 = vadd.f32 %v2517, %v2725
        %v2727 = vpop.f32.mrf.mxu0
        %v2728 = vpop.f32.mrf.mxu0
        %v2729 = vadd.f32 %v2517, %v2728
        %v2730 = vpop.f32.mrf.mxu0
        %2731 = vdwg.mxu0
        %v2732 = vmax.f32 %v2694, 0.0
        %v2733 = vmax.f32 %v2697, 0.0
        %v2734 = vmax.f32 %v2702, 0.0
        %v2735 = vmax.f32 %v2705, 0.0
        %v2736 = vmax.f32 %v2710, 0.0
        %v2737 = vmax.f32 %v2713, 0.0
        %v2738 = vmax.f32 %v2718, 0.0
        %v2739 = vmax.f32 %v2721, 0.0
        %v2740 = vmax.f32 %v2726, 0.0
        %v2741 = vmax.f32 %v2729, 0.0
        %v2742 = vadd.f32 %v2732, %v2476
        %v2743 = vadd.f32 %v2733, %v2477
        %v2744 = vadd.f32 %v2734, %v2478
        %v2745 = vadd.f32 %v2735, %v2479
        %v2746 = vadd.f32 %v2736, %v2480
        %v2747 = vadd.f32 %v2737, %v2481
        %v2748 = vadd.f32 %v2738, %v2482
        %v2749 = vadd.f32 %v2739, %v2483
        %v2750 = vadd.f32 %v2740, %v2484
        %v2751 = vadd.f32 %v2741, %v2485
        %s2752 = scalar_lea.vmem [#allocation7], 512
        %v2753 = vld [vmem:[%s2752] sm:$0xf]
        %v2754 = vld [vmem:[%s2752 + $0x4] sm:$0xf]
        %v2755 = vld [vmem:[%s2752 + $0x8] sm:$0xf]
        %v2756 = vld [vmem:[%s2752 + $0xc] sm:$0xf]
        %v2757 = vld [vmem:[%s2752 + $0x10] sm:$0xf]
        %v2758 = vld [vmem:[%s2752 + $0x14] sm:$0xf]
        %v2759 = vld [vmem:[%s2752 + $0x18] sm:$0xf]
        %v2760 = vld [vmem:[%s2752 + $0x1c] sm:$0xf]
        %v2761 = vld [vmem:[%s2752 + $0x20] sm:$0xf]
        %v2762 = vld [vmem:[%s2752 + $0x24] sm:$0xf]
        %v2763 = vld [vmem:[%s2752 + $0x28] sm:$0xf]
        %v2764 = vld [vmem:[%s2752 + $0x2c] sm:$0xf]
        %v2765 = vld [vmem:[%s2752 + $0x30] sm:$0xf]
        %v2766 = vld [vmem:[%s2752 + $0x34] sm:$0xf]
        %v2767 = vld [vmem:[%s2752 + $0x38] sm:$0xf]
        %v2768 = vld [vmem:[%s2752 + $0x3c] sm:$0xf]
        %v2769 = vld [vmem:[#allocation8 + $0x8] sm:$0x1]
        %v2770 = vpack.c.bf16 %v2650, %v2649
        %v2771 = vpack.c.bf16 %v2652, %v2651
        %v2772 = vpack.c.bf16 %v2654, %v2653
        %v2773 = vpack.c.bf16 %v2656, %v2655
        %v2774 = vpack.c.bf16 %v2658, %v2657
        %v2775 = vpack.c.bf16 %v2743, %v2742
        %v2776 = vpack.c.bf16 %v2745, %v2744
        %v2777 = vpack.c.bf16 %v2747, %v2746
        %v2778 = vpack.c.bf16 %v2749, %v2748
        %v2779 = vpack.c.bf16 %v2751, %v2750
        %v2780 = vlaneseq
        %v2781 = vshrl.u32 %v2780, 7
        %v2782 = vsub.s32 0, %v2781
        %v2783 = vrot.slane %v2769, %v2782
        %v2800 = vunpack.c.l.b16 %v2753
        %v2801 = vunpack.c.l.b16 %v2754
        %v2802 = vunpack.c.l.b16 %v2755
        %v2803 = vunpack.c.l.b16 %v2756
        %v2804 = vunpack.c.l.b16 %v2757
        %v2805 = vunpack.c.l.b16 %v2758
        %v2806 = vunpack.c.l.b16 %v2759
        %v2807 = vunpack.c.l.b16 %v2760
        %v2808 = vunpack.c.l.b16 %v2761
        %v2809 = vunpack.c.l.b16 %v2762
        %v2810 = vunpack.c.l.b16 %v2763
        %v2811 = vunpack.c.l.b16 %v2764
        %v2812 = vunpack.c.l.b16 %v2765
        %v2813 = vunpack.c.l.b16 %v2766
        %v2814 = vunpack.c.l.b16 %v2767
        %v2815 = vunpack.c.l.b16 %v2768
        %v2816 = vpack.c.b16 %v2801, %v2800
        %v2817 = vpack.c.b16 %v2803, %v2802
        %v2818 = vpack.c.b16 %v2805, %v2804
        %v2819 = vpack.c.b16 %v2807, %v2806
        %v2820 = vpack.c.b16 %v2809, %v2808
        %v2821 = vpack.c.b16 %v2811, %v2810
        %v2822 = vpack.c.b16 %v2813, %v2812
        %v2823 = vpack.c.b16 %v2815, %v2814
        %2832 = vmatprep.subr.bf16.mxu0 0
        %2833 = vmatpush1.bf16.msra.mxu0 %v2823
        %2834 = vmatprep.subr.bf16.mxu0 0
        %2835 = vmatpush1.bf16.msra.mxu0 %v2822
        %2836 = vmatprep.subr.bf16.mxu0 0
        %2837 = vmatpush1.bf16.msra.mxu0 %v2821
        %2838 = vmatprep.subr.bf16.mxu0 0
        %2839 = vmatpush1.bf16.msra.mxu0 %v2820
        %2840 = vmatprep.subr.bf16.mxu0 0
        %2841 = vmatpush1.bf16.msra.mxu0 %v2819
        %2842 = vmatprep.subr.bf16.mxu0 0
        %2843 = vmatpush1.bf16.msra.mxu0 %v2818
        %2844 = vmatprep.subr.bf16.mxu0 0
        %2845 = vmatpush1.bf16.msra.mxu0 %v2817
        %2846 = vmatprep.subr.bf16.mxu0 0
        %2847 = vmatpush1.bf16.msra.mxu0 %v2816
        %2848 = vmatprep.subr.bf16.mxu0 0
        %2849 = vmatpush2.bf16.msra.mxu0 0
        %2850 = vmatprep.subr.bf16.mxu0 0
        %2851 = vmatpush2.bf16.msra.mxu0 0
        %2852 = vmatprep.subr.bf16.mxu0 0
        %2853 = vmatpush2.bf16.msra.mxu0 0
        %2854 = vmatprep.subr.bf16.mxu0 0
        %2855 = vmatpush2.bf16.msra.mxu0 0
        %2856 = vmatprep.subr.bf16.mxu0 0
        %2857 = vmatpush2.bf16.msra.mxu0 0
        %2858 = vmatprep.subr.bf16.mxu0 0
        %2859 = vmatpush2.bf16.msra.mxu0 0
        %2860 = vmatprep.subr.bf16.mxu0 0
        %2861 = vmatpush2.bf16.msra.mxu0 0
        %2862 = vmatprep.subr.bf16.mxu0 0
        %2863 = vmatpush2.bf16.msra.mxu0 0
        %2864 = vmatprep.mubr.bf16.mxu0 0
        %2865 = vmatmul.mubr.bf16.gmra.mxu0 %v2770
        %v2866 = vpop.f32.mrf.mxu0
        %v2867 = vadd.f32 %v2783, %v2866
        %v2868 = vpop.f32.mrf.mxu0
        %v2869 = vpop.f32.mrf.mxu0
        %v2870 = vadd.f32 %v2783, %v2869
        %v2871 = vpop.f32.mrf.mxu0
        %2872 = vmatprep.mubr.bf16.mxu0 0
        %2873 = vmatmul.mubr.bf16.gmra.mxu0 %v2771
        %v2874 = vpop.f32.mrf.mxu0
        %v2875 = vadd.f32 %v2783, %v2874
        %v2876 = vpop.f32.mrf.mxu0
        %v2877 = vpop.f32.mrf.mxu0
        %v2878 = vadd.f32 %v2783, %v2877
        %v2879 = vpop.f32.mrf.mxu0
        %2880 = vmatprep.mubr.bf16.mxu0 0
        %2881 = vmatmul.mubr.bf16.gmra.mxu0 %v2772
        %v2882 = vpop.f32.mrf.mxu0
        %v2883 = vadd.f32 %v2783, %v2882
        %v2884 = vpop.f32.mrf.mxu0
        %v2885 = vpop.f32.mrf.mxu0
        %v2886 = vadd.f32 %v2783, %v2885
        %v2887 = vpop.f32.mrf.mxu0
        %2888 = vmatprep.mubr.bf16.mxu0 0
        %2889 = vmatmul.mubr.bf16.gmra.mxu0 %v2773
        %v2890 = vpop.f32.mrf.mxu0
        %v2891 = vadd.f32 %v2783, %v2890
        %v2892 = vpop.f32.mrf.mxu0
        %v2893 = vpop.f32.mrf.mxu0
        %v2894 = vadd.f32 %v2783, %v2893
        %v2895 = vpop.f32.mrf.mxu0
        %2896 = vmatprep.mubr.bf16.mxu0 0
        %2897 = vmatmul.mubr.bf16.gmra.mxu0 %v2774
        %v2898 = vpop.f32.mrf.mxu0
        %v2899 = vadd.f32 %v2783, %v2898
        %v2900 = vpop.f32.mrf.mxu0
        %v2901 = vpop.f32.mrf.mxu0
        %v2902 = vadd.f32 %v2783, %v2901
        %v2903 = vpop.f32.mrf.mxu0
        %2904 = vdwg.mxu0
        %v2905 = vmax.f32 %v2867, 0.0
        %v2906 = vmax.f32 %v2870, 0.0
        %v2907 = vmax.f32 %v2875, 0.0
        %v2908 = vmax.f32 %v2878, 0.0
        %v2909 = vmax.f32 %v2883, 0.0
        %v2910 = vmax.f32 %v2886, 0.0
        %v2911 = vmax.f32 %v2891, 0.0
        %v2912 = vmax.f32 %v2894, 0.0
        %v2913 = vmax.f32 %v2899, 0.0
        %v2914 = vmax.f32 %v2902, 0.0
        %v2915 = vadd.f32 %v2905, %v2649
        %v2916 = vadd.f32 %v2906, %v2650
        %v2917 = vadd.f32 %v2907, %v2651
        %v2918 = vadd.f32 %v2908, %v2652
        %v2919 = vadd.f32 %v2909, %v2653
        %v2920 = vadd.f32 %v2910, %v2654
        %v2921 = vadd.f32 %v2911, %v2655
        %v2922 = vadd.f32 %v2912, %v2656
        %v2923 = vadd.f32 %v2913, %v2657
        %v2924 = vadd.f32 %v2914, %v2658
        %2925 = vmatprep.subr.bf16.mxu0 0
        %2926 = vmatpush1.bf16.msra.mxu0 %v2823
        %2927 = vmatprep.subr.bf16.mxu0 0
        %2928 = vmatpush1.bf16.msra.mxu0 %v2822
        %2929 = vmatprep.subr.bf16.mxu0 0
        %2930 = vmatpush1.bf16.msra.mxu0 %v2821
        %2931 = vmatprep.subr.bf16.mxu0 0
        %2932 = vmatpush1.bf16.msra.mxu0 %v2820
        %2933 = vmatprep.subr.bf16.mxu0 0
        %2934 = vmatpush1.bf16.msra.mxu0 %v2819
        %2935 = vmatprep.subr.bf16.mxu0 0
        %2936 = vmatpush1.bf16.msra.mxu0 %v2818
        %2937 = vmatprep.subr.bf16.mxu0 0
        %2938 = vmatpush1.bf16.msra.mxu0 %v2817
        %2939 = vmatprep.subr.bf16.mxu0 0
        %2940 = vmatpush1.bf16.msra.mxu0 %v2816
        %2941 = vmatprep.subr.bf16.mxu0 0
        %2942 = vmatpush2.bf16.msra.mxu0 0
        %2943 = vmatprep.subr.bf16.mxu0 0
        %2944 = vmatpush2.bf16.msra.mxu0 0
        %2945 = vmatprep.subr.bf16.mxu0 0
        %2946 = vmatpush2.bf16.msra.mxu0 0
        %2947 = vmatprep.subr.bf16.mxu0 0
        %2948 = vmatpush2.bf16.msra.mxu0 0
        %2949 = vmatprep.subr.bf16.mxu0 0
        %2950 = vmatpush2.bf16.msra.mxu0 0
        %2951 = vmatprep.subr.bf16.mxu0 0
        %2952 = vmatpush2.bf16.msra.mxu0 0
        %2953 = vmatprep.subr.bf16.mxu0 0
        %2954 = vmatpush2.bf16.msra.mxu0 0
        %2955 = vmatprep.subr.bf16.mxu0 0
        %2956 = vmatpush2.bf16.msra.mxu0 0
        %2957 = vmatprep.mubr.bf16.mxu0 0
        %2958 = vmatmul.mubr.bf16.gmra.mxu0 %v2775
        %v2959 = vpop.f32.mrf.mxu0
        %v2960 = vadd.f32 %v2783, %v2959
        %v2961 = vpop.f32.mrf.mxu0
        %v2962 = vpop.f32.mrf.mxu0
        %v2963 = vadd.f32 %v2783, %v2962
        %v2964 = vpop.f32.mrf.mxu0
        %2965 = vmatprep.mubr.bf16.mxu0 0
        %2966 = vmatmul.mubr.bf16.gmra.mxu0 %v2776
        %v2967 = vpop.f32.mrf.mxu0
        %v2968 = vadd.f32 %v2783, %v2967
        %v2969 = vpop.f32.mrf.mxu0
        %v2970 = vpop.f32.mrf.mxu0
        %v2971 = vadd.f32 %v2783, %v2970
        %v2972 = vpop.f32.mrf.mxu0
        %2973 = vmatprep.mubr.bf16.mxu0 0
        %2974 = vmatmul.mubr.bf16.gmra.mxu0 %v2777
        %v2975 = vpop.f32.mrf.mxu0
        %v2976 = vadd.f32 %v2783, %v2975
        %v2977 = vpop.f32.mrf.mxu0
        %v2978 = vpop.f32.mrf.mxu0
        %v2979 = vadd.f32 %v2783, %v2978
        %v2980 = vpop.f32.mrf.mxu0
        %2981 = vmatprep.mubr.bf16.mxu0 0
        %2982 = vmatmul.mubr.bf16.gmra.mxu0 %v2778
        %v2983 = vpop.f32.mrf.mxu0
        %v2984 = vadd.f32 %v2783, %v2983
        %v2985 = vpop.f32.mrf.mxu0
        %v2986 = vpop.f32.mrf.mxu0
        %v2987 = vadd.f32 %v2783, %v2986
        %v2988 = vpop.f32.mrf.mxu0
        %2989 = vmatprep.mubr.bf16.mxu0 0
        %2990 = vmatmul.mubr.bf16.gmra.mxu0 %v2779
        %v2991 = vpop.f32.mrf.mxu0
        %v2992 = vadd.f32 %v2783, %v2991
        %v2993 = vpop.f32.mrf.mxu0
        %v2994 = vpop.f32.mrf.mxu0
        %v2995 = vadd.f32 %v2783, %v2994
        %v2996 = vpop.f32.mrf.mxu0
        %2997 = vdwg.mxu0
        %v2998 = vmax.f32 %v2960, 0.0
        %v2999 = vmax.f32 %v2963, 0.0
        %v3000 = vmax.f32 %v2968, 0.0
        %v3001 = vmax.f32 %v2971, 0.0
        %v3002 = vmax.f32 %v2976, 0.0
        %v3003 = vmax.f32 %v2979, 0.0
        %v3004 = vmax.f32 %v2984, 0.0
        %v3005 = vmax.f32 %v2987, 0.0
        %v3006 = vmax.f32 %v2992, 0.0
        %v3007 = vmax.f32 %v2995, 0.0
        %v3008 = vadd.f32 %v2998, %v2742
        %v3009 = vadd.f32 %v2999, %v2743
        %v3010 = vadd.f32 %v3000, %v2744
        %v3011 = vadd.f32 %v3001, %v2745
        %v3012 = vadd.f32 %v3002, %v2746
        %v3013 = vadd.f32 %v3003, %v2747
        %v3014 = vadd.f32 %v3004, %v2748
        %v3015 = vadd.f32 %v3005, %v2749
        %v3016 = vadd.f32 %v3006, %v2750
        %v3017 = vadd.f32 %v3007, %v2751
        %v3018 = vld [vmem:[#allocation10] sm:$0xf]
        %v3019 = vld [vmem:[#allocation10 + $0x4] sm:$0xf]
        %v3020 = vld [vmem:[#allocation10 + $0x8] sm:$0xf]
        %v3021 = vld [vmem:[#allocation10 + $0xc] sm:$0xf]
        %v3022 = vld [vmem:[#allocation10 + $0x10] sm:$0xf]
        %v3023 = vld [vmem:[#allocation10 + $0x14] sm:$0xf]
        %v3024 = vld [vmem:[#allocation10 + $0x18] sm:$0xf]
        %v3025 = vld [vmem:[#allocation10 + $0x1c] sm:$0xf]
        %v3026 = vld [vmem:[#allocation10 + $0x20] sm:$0xf]
        %v3027 = vld [vmem:[#allocation10 + $0x24] sm:$0xf]
        %v3028 = vld [vmem:[#allocation10 + $0x28] sm:$0xf]
        %v3029 = vld [vmem:[#allocation10 + $0x2c] sm:$0xf]
        %v3030 = vld [vmem:[#allocation10 + $0x30] sm:$0xf]
        %v3031 = vld [vmem:[#allocation10 + $0x34] sm:$0xf]
        %v3032 = vld [vmem:[#allocation10 + $0x38] sm:$0xf]
        %v3033 = vld [vmem:[#allocation10 + $0x3c] sm:$0xf]
        %v3034 = vld [vmem:[%s6] sm:$0x1]
        %v3035 = vpack.c.bf16 %v2916, %v2915
        %v3036 = vpack.c.bf16 %v2918, %v2917
        %v3037 = vpack.c.bf16 %v2920, %v2919
        %v3038 = vpack.c.bf16 %v2922, %v2921
        %v3039 = vpack.c.bf16 %v2924, %v2923
        %v3041 = vlaneseq
        %v3042 = vshrl.u32 %v3041, 7
        %v3043 = vsub.s32 0, %v3042
        %v3044 = vrot.slane %v3034, %v3043
        %v3062 = vunpack.c.l.b16 %v3018
        %v3063 = vunpack.c.l.b16 %v3019
        %v3064 = vunpack.c.l.b16 %v3020
        %v3065 = vunpack.c.l.b16 %v3021
        %v3066 = vunpack.c.l.b16 %v3022
        %v3067 = vunpack.c.l.b16 %v3023
        %v3068 = vunpack.c.l.b16 %v3024
        %v3069 = vunpack.c.l.b16 %v3025
        %v3070 = vunpack.c.l.b16 %v3026
        %v3071 = vunpack.c.l.b16 %v3027
        %v3072 = vunpack.c.l.b16 %v3028
        %v3073 = vunpack.c.l.b16 %v3029
        %v3074 = vunpack.c.l.b16 %v3030
        %v3075 = vunpack.c.l.b16 %v3031
        %v3076 = vunpack.c.l.b16 %v3032
        %v3077 = vunpack.c.l.b16 %v3033
        %v3078 = vpack.c.b16 %v3063, %v3062
        %v3079 = vpack.c.b16 %v3065, %v3064
        %v3080 = vpack.c.b16 %v3067, %v3066
        %v3081 = vpack.c.b16 %v3069, %v3068
        %v3082 = vpack.c.b16 %v3071, %v3070
        %v3083 = vpack.c.b16 %v3073, %v3072
        %v3084 = vpack.c.b16 %v3075, %v3074
        %v3085 = vpack.c.b16 %v3077, %v3076
        %3094 = vmatprep.subr.bf16.mxu0 0
        %3095 = vmatpush1.bf16.msra.mxu0 %v3085
        %3096 = vmatprep.subr.bf16.mxu0 0
        %3097 = vmatpush1.bf16.msra.mxu0 %v3084
        %3098 = vmatprep.subr.bf16.mxu0 0
        %3099 = vmatpush1.bf16.msra.mxu0 %v3083
        %3100 = vmatprep.subr.bf16.mxu0 0
        %3101 = vmatpush1.bf16.msra.mxu0 %v3082
        %3102 = vmatprep.subr.bf16.mxu0 0
        %3103 = vmatpush1.bf16.msra.mxu0 %v3081
        %3104 = vmatprep.subr.bf16.mxu0 0
        %3105 = vmatpush1.bf16.msra.mxu0 %v3080
        %3106 = vmatprep.subr.bf16.mxu0 0
        %3107 = vmatpush1.bf16.msra.mxu0 %v3079
        %3108 = vmatprep.subr.bf16.mxu0 0
        %3109 = vmatpush1.bf16.msra.mxu0 %v3078
        %3110 = vmatprep.subr.bf16.mxu0 0
        %3111 = vmatpush2.bf16.msra.mxu0 0
        %3112 = vmatprep.subr.bf16.mxu0 0
        %3113 = vmatpush2.bf16.msra.mxu0 0
        %3114 = vmatprep.subr.bf16.mxu0 0
        %3115 = vmatpush2.bf16.msra.mxu0 0
        %3116 = vmatprep.subr.bf16.mxu0 0
        %3117 = vmatpush2.bf16.msra.mxu0 0
        %3118 = vmatprep.subr.bf16.mxu0 0
        %3119 = vmatpush2.bf16.msra.mxu0 0
        %3120 = vmatprep.subr.bf16.mxu0 0
        %3121 = vmatpush2.bf16.msra.mxu0 0
        %3122 = vmatprep.subr.bf16.mxu0 0
        %3123 = vmatpush2.bf16.msra.mxu0 0
        %3124 = vmatprep.subr.bf16.mxu0 0
        %3125 = vmatpush2.bf16.msra.mxu0 0
        %3126 = vmatprep.mubr.bf16.mxu0 0
        %3127 = vmatmul.mubr.bf16.gmra.mxu0 %v3035
        %v3128 = vpop.f32.mrf.mxu0
        %v3129 = vadd.f32 %v3044, %v3128
        %v3130 = vpop.f32.mrf.mxu0
        %v3131 = vpop.f32.mrf.mxu0
        %v3132 = vadd.f32 %v3044, %v3131
        %v3133 = vpop.f32.mrf.mxu0
        %3134 = vmatprep.mubr.bf16.mxu0 0
        %3135 = vmatmul.mubr.bf16.gmra.mxu0 %v3036
        %v3136 = vpop.f32.mrf.mxu0
        %v3137 = vadd.f32 %v3044, %v3136
        %v3138 = vpop.f32.mrf.mxu0
        %v3139 = vpop.f32.mrf.mxu0
        %v3140 = vadd.f32 %v3044, %v3139
        %v3141 = vpop.f32.mrf.mxu0
        %3142 = vmatprep.mubr.bf16.mxu0 0
        %3143 = vmatmul.mubr.bf16.gmra.mxu0 %v3037
        %v3144 = vpop.f32.mrf.mxu0
        %v3145 = vadd.f32 %v3044, %v3144
        %v3146 = vpop.f32.mrf.mxu0
        %v3147 = vpop.f32.mrf.mxu0
        %v3148 = vadd.f32 %v3044, %v3147
        %v3149 = vpop.f32.mrf.mxu0
        %3150 = vmatprep.mubr.bf16.mxu0 0
        %3151 = vmatmul.mubr.bf16.gmra.mxu0 %v3038
        %v3152 = vpop.f32.mrf.mxu0
        %v3153 = vadd.f32 %v3044, %v3152
        %v3154 = vpop.f32.mrf.mxu0
        %v3155 = vpop.f32.mrf.mxu0
        %v3156 = vadd.f32 %v3044, %v3155
        %v3157 = vpop.f32.mrf.mxu0
        %3158 = vmatprep.mubr.bf16.mxu0 0
        %3159 = vmatmul.mubr.bf16.gmra.mxu0 %v3039
        %v3160 = vpop.f32.mrf.mxu0
        %v3161 = vadd.f32 %v3044, %v3160
        %v3162 = vpop.f32.mrf.mxu0
        %v3163 = vpop.f32.mrf.mxu0
        %v3164 = vadd.f32 %v3044, %v3163
        %v3165 = vpop.f32.mrf.mxu0
        %3166 = vdwg.mxu0
        %v3167 = vpack.c.bf16 %v3009, %v3008
        %v3168 = vpack.c.bf16 %v3011, %v3010
        %v3169 = vpack.c.bf16 %v3013, %v3012
        %v3170 = vpack.c.bf16 %v3015, %v3014
        %v3171 = vpack.c.bf16 %v3017, %v3016
        %3172 = vmatprep.subr.bf16.mxu0 0
        %3173 = vmatpush1.bf16.msra.mxu0 %v3085
        %3174 = vmatprep.subr.bf16.mxu0 0
        %3175 = vmatpush1.bf16.msra.mxu0 %v3084
        %3176 = vmatprep.subr.bf16.mxu0 0
        %3177 = vmatpush1.bf16.msra.mxu0 %v3083
        %3178 = vmatprep.subr.bf16.mxu0 0
        %3179 = vmatpush1.bf16.msra.mxu0 %v3082
        %3180 = vmatprep.subr.bf16.mxu0 0
        %3181 = vmatpush1.bf16.msra.mxu0 %v3081
        %3182 = vmatprep.subr.bf16.mxu0 0
        %3183 = vmatpush1.bf16.msra.mxu0 %v3080
        %3184 = vmatprep.subr.bf16.mxu0 0
        %3185 = vmatpush1.bf16.msra.mxu0 %v3079
        %3186 = vmatprep.subr.bf16.mxu0 0
        %3187 = vmatpush1.bf16.msra.mxu0 %v3078
        %3188 = vmatprep.subr.bf16.mxu0 0
        %3189 = vmatpush2.bf16.msra.mxu0 0
        %3190 = vmatprep.subr.bf16.mxu0 0
        %3191 = vmatpush2.bf16.msra.mxu0 0
        %3192 = vmatprep.subr.bf16.mxu0 0
        %3193 = vmatpush2.bf16.msra.mxu0 0
        %3194 = vmatprep.subr.bf16.mxu0 0
        %3195 = vmatpush2.bf16.msra.mxu0 0
        %3196 = vmatprep.subr.bf16.mxu0 0
        %3197 = vmatpush2.bf16.msra.mxu0 0
        %3198 = vmatprep.subr.bf16.mxu0 0
        %3199 = vmatpush2.bf16.msra.mxu0 0
        %3200 = vmatprep.subr.bf16.mxu0 0
        %3201 = vmatpush2.bf16.msra.mxu0 0
        %3202 = vmatprep.subr.bf16.mxu0 0
        %3203 = vmatpush2.bf16.msra.mxu0 0
        %3204 = vmatprep.mubr.bf16.mxu0 0
        %3205 = vmatmul.mubr.bf16.gmra.mxu0 %v3167
        %v3206 = vpop.f32.mrf.mxu0
        %v3207 = vadd.f32 %v3044, %v3206
        %v3208 = vpop.f32.mrf.mxu0
        %v3209 = vpop.f32.mrf.mxu0
        %v3210 = vadd.f32 %v3044, %v3209
        %v3211 = vpop.f32.mrf.mxu0
        %3212 = vmatprep.mubr.bf16.mxu0 0
        %3213 = vmatmul.mubr.bf16.gmra.mxu0 %v3168
        %v3214 = vpop.f32.mrf.mxu0
        %v3215 = vadd.f32 %v3044, %v3214
        %v3216 = vpop.f32.mrf.mxu0
        %v3217 = vpop.f32.mrf.mxu0
        %v3218 = vadd.f32 %v3044, %v3217
        %v3219 = vpop.f32.mrf.mxu0
        %3220 = vmatprep.mubr.bf16.mxu0 0
        %3221 = vmatmul.mubr.bf16.gmra.mxu0 %v3169
        %v3222 = vpop.f32.mrf.mxu0
        %v3223 = vadd.f32 %v3044, %v3222
        %v3224 = vpop.f32.mrf.mxu0
        %v3225 = vpop.f32.mrf.mxu0
        %v3226 = vadd.f32 %v3044, %v3225
        %v3227 = vpop.f32.mrf.mxu0
        %3228 = vmatprep.mubr.bf16.mxu0 0
        %3229 = vmatmul.mubr.bf16.gmra.mxu0 %v3170
        %v3230 = vpop.f32.mrf.mxu0
        %v3231 = vadd.f32 %v3044, %v3230
        %v3232 = vpop.f32.mrf.mxu0
        %v3233 = vpop.f32.mrf.mxu0
        %v3234 = vadd.f32 %v3044, %v3233
        %v3235 = vpop.f32.mrf.mxu0
        %3236 = vmatprep.mubr.bf16.mxu0 0
        %3237 = vmatmul.mubr.bf16.gmra.mxu0 %v3171
        %v3238 = vpop.f32.mrf.mxu0
        %v3239 = vadd.f32 %v3044, %v3238
        %v3240 = vpop.f32.mrf.mxu0
        %v3241 = vpop.f32.mrf.mxu0
        %v3242 = vadd.f32 %v3044, %v3241
        %v3243 = vpop.f32.mrf.mxu0
        %3244 = vdwg.mxu0
        %3245 = vst [vmem:[%s354] sm:$0xff] %v3129
        %3246 = vst [vmem:[%s354 + $0x8] sm:$0xff] %v3132
        %3247 = vst [vmem:[%s354 + $0x10] sm:$0xff] %v3137
        %3248 = vst [vmem:[%s354 + $0x18] sm:$0xff] %v3140
        %3249 = vst [vmem:[%s354 + $0x20] sm:$0xff] %v3145
        %3250 = vst [vmem:[%s354 + $0x28] sm:$0xff] %v3148
        %3251 = vst [vmem:[%s354 + $0x30] sm:$0xff] %v3153
        %3252 = vst [vmem:[%s354 + $0x38] sm:$0xff] %v3156
        %3253 = vst [vmem:[%s354 + $0x40] sm:$0xff] %v3161
        %3254 = vst [vmem:[%s354 + $0x48] sm:$0xff] %v3164
        %3255 = vst [vmem:[%s354 + $0x50] sm:$0xff] %v3207
        %3256 = vst [vmem:[%s354 + $0x58] sm:$0xff] %v3210
        %3257 = vst [vmem:[%s354 + $0x60] sm:$0xff] %v3215
        %3258 = vst [vmem:[%s354 + $0x68] sm:$0xff] %v3218
        %3259 = vst [vmem:[%s354 + $0x70] sm:$0xff] %v3223
        %3260 = vst [vmem:[%s354 + $0x78] sm:$0xff] %v3226
        %3261 = vst [vmem:[%s354 + $0x80] sm:$0xff] %v3231
        %3262 = vst [vmem:[%s354 + $0x88] sm:$0xff] %v3234
        %3263 = vst [vmem:[%s354 + $0x90] sm:$0xff] %v3239
        %3264 = vst [vmem:[%s354 + $0x98] sm:$0xff] %v3242
        %s3265 = sand.u32 %s186, 1
        %s3266 = scalar_lea.sflag [#allocation4], %s3265
        %s3267 = sand.u32 %s186, 1
        %s3268 = smul.addr %s3267, 160
        %s3269 = scalar_lea.vmem [#allocation11], %s3268
        // Predicated region
        $region69: #{tpu_custom_call.1} parent=47 // pred_check
          %p3270 = pneg %p196
        $region70: #{tpu_custom_call.1} parent=47 // pred_check_branch
          %3272 = sbr.rel (%p3270) target = $region72
        $region71: #{tpu_custom_call.1} parent=47 // pred_region
          %s3273 = smul.u32 20, %s26
          %s3275 = ssub.s32 2560, 2560
          %3276 = vsyncadd %s3266, %s3275
          %s3277 = smul.addr %s3273, 128
          %s3278 = scalar_lea.hbm %s7, %s3277
          %s3279 = sshll.u32 %s3269, 4
          %s3280 = int_to_ptr.vmem [resolvable:$true] %s3279
          %3285 = dma.vmem_to_hbm [thread:$0]  %s3280, 2560, %s3278, %s3266, 128, 128, 8
        $region72: #{tpu_custom_call.1} parent=47 // pred_fallthru
          _
      $region48: #{tpu_custom_call.1} parent=5 // pred_fallthru
        _
      %p3286 = scmp.le.s32.totalorder 2, %s21
      // Predicated region
      $region73: #{tpu_custom_call.1} parent=5 // pred_check
        %p3287 = pneg %p3286
      $region74: #{tpu_custom_call.1} parent=5 // pred_check_branch
        %3289 = sbr.rel (%p3287) target = $region76
      $region75: #{tpu_custom_call.1} parent=5 // pred_region
        %s3290 = ssub.s32 %s21, 2
        // Predicated region
        $region77: #{tpu_custom_call.1} parent=75 // pred_check
          %p3291 = pneg %p202
        $region78: #{tpu_custom_call.1} parent=75 // pred_check_branch
          %3293 = sbr.rel (%p3291) target = $region80
        $region79: #{tpu_custom_call.1} parent=75 // pred_region
          %s3294 = sand.u32 %s187, 1
          %s3295 = scalar_lea.sflag [#allocation4], %s3294
          %s3296 = sand.u32 %s187, 1
          %s3297 = smul.addr %s3296, 160
          %s3298 = scalar_lea.vmem [#allocation11], %s3297
          %3299 = dma.done %s3295, 2560
        $region80: #{tpu_custom_call.1} parent=75 // pred_fallthru
          _
      $region76: #{tpu_custom_call.1} parent=5 // pred_fallthru
        _
    $region6: #{tpu_custom_call.1} parent=1 // loop_footer
      %s25 = sadd.s32 1, %s21
    $region7: #{tpu_custom_call.1} parent=1 // loop_footer_branch
      %20 = sbr.rel target = $region3
    $region8: #{tpu_custom_call.1} parent=1 // loop_exit
      _
    %3300 = vsyncpa [#allocation3], 1
    %s3301 = scalar_lea.sflag [#allocation3], 1
    %3302 = vsyncpa %s3301, 1
    %3303 = vsyncpa [#allocation6], 1
    %3304 = vsyncpa [#allocation9], 1
    %3305 = vsyncpa [#allocation4], 1
    %s3306 = scalar_lea.sflag [#allocation4], 1
    %3307 = vsyncpa %s3306, 1

</llo_original>
